<compile_context>
chip_gen: v6e
topology: v6e:2x2x1
jax: 0.10.0
libtpu: 0.0.40
codegen_flags: <defaults>
</compile_context>

<pallas_src>
import jax
import jax.numpy as jnp
from jax.experimental import pallas as pl
from jax.experimental.pallas import tpu as pltpu


# ----------------------------- kernel helpers -------------------------------

def _layernorm(x, g, b, eps=1e-12):
    mu = jnp.mean(x, axis=-1, keepdims=True)
    var = jnp.mean((x - mu) ** 2, axis=-1, keepdims=True)
    return (x - mu) * jax.lax.rsqrt(var + eps) * g + b


# ------------------------------- the kernel ---------------------------------

def entity_encoder_kernel(
    self_ref, other_ref, adjrel_ref, addmask_ref, wmask_ref,
    w_fc_ref, b_fc_ref,
    w_dense_ref, b_dense_ref,
    w_qkv_ref, b_qkv_ref,
    wo_ref, bo_ref,
    ln1_g_ref, ln1_b_ref,
    w_ff1_ref, b_ff1_ref, w_ff2_ref, b_ff2_ref,
    ln2_g_ref, ln2_b_ref,
    wp_ref, bp_ref,
    w_out_ref, b_out_ref,
    out_ref,
    h_s,                        # VMEM scratch [tn, L, H] f32
):
    f32 = jnp.float32
    bf16 = jnp.bfloat16

    x_self = self_ref[...]      # [tn, E]  f32
    x_other = other_ref[...]    # [tn, E]  f32
    addmask = addmask_ref[...]  # [tn, L]  additive attention mask (0 / -1e9)
    wmask = wmask_ref[...]      # [tn, L]  exact masked-mean weights

    tn, e = x_self.shape
    _, l, hdim = h_s.shape
    a = l - 1

    # token-0 relative features: fc(other - self)                    [tn, E]
    rr = (jnp.dot(x_other - x_self, w_fc_ref[...], preferred_element_type=f32)
          + b_fc_ref[...])

    # dense + tanh.  Neighbors: one big K=2E bf16 matmul over the host-built
    # [adj | rel] stream.  Token 0: same resident weight, sublane-sliced.
    wd = w_dense_ref[...]       # [2E, H] bf16
    bd = b_dense_ref[...]       # [1, H]  f32

    h0 = jnp.tanh(
        jnp.dot(x_self.astype(bf16), wd[:e], preferred_element_type=f32)
        + jnp.dot(rr.astype(bf16), wd[e:], preferred_element_type=f32)
        + bd)                                                        # [tn, H]

    adjrel = adjrel_ref[...].astype(bf16)                            # [tn*A, 2E]
    hr = jnp.tanh(jnp.dot(adjrel, wd, preferred_element_type=f32) + bd)  # [tn*A, H]

    # assemble the [tn, L, H] sequence in VMEM scratch (no concat)
    h_s[:, 0:1, :] = h0[:, None, :]
    h_s[:, 1:, :] = hr.reshape(tn, a, hdim)

    h3 = h_s[...]                              # [tn, L, H]
    h2d = h3.reshape(tn * l, hdim)             # [tn*L, H]
    h2d_bf = h2d.astype(bf16)

    # --- single-head self-attention: fused QKV projection ---
    qkv = (jnp.dot(h2d_bf, w_qkv_ref[...], preferred_element_type=f32)
           + b_qkv_ref[...])                   # [tn*L, 3H]
    q = qkv[:, :hdim].reshape(tn, l, hdim)
    k = qkv[:, hdim:2 * hdim].reshape(tn, l, hdim)
    v = qkv[:, 2 * hdim:].reshape(tn, l, hdim)

    # tiny L x L attention core (not an MXU target; stays f32)
    scale = 1.0 / (float(hdim) ** 0.5)
    scores = jnp.einsum('nqh,nkh->nqk', q, k, preferred_element_type=f32) * scale
    scores = scores + addmask[:, None, :]
    scores = scores - jnp.max(scores, axis=-1, keepdims=True)
    p = jnp.exp(scores)
    p = p * pl.reciprocal(jnp.sum(p, axis=-1, keepdims=True), approx=True)

    ctx = jnp.einsum('nqk,nkh->nqh', p, v, preferred_element_type=f32)
    attn_out = (jnp.dot(ctx.reshape(tn * l, hdim).astype(bf16), wo_ref[...],
                        preferred_element_type=f32) + bo_ref[...])
    h1 = _layernorm(h2d + attn_out, ln1_g_ref[...], ln1_b_ref[...])  # [tn*L, H]

    # --- feed forward ---
    ff = (jnp.dot(h1.astype(bf16), w_ff1_ref[...], preferred_element_type=f32)
          + b_ff1_ref[...])
    ff = jax.nn.gelu(ff, approximate=True)
    ff = (jnp.dot(ff.astype(bf16), w_ff2_ref[...], preferred_element_type=f32)
          + b_ff2_ref[...])
    h2_2d = _layernorm(h1 + ff, ln2_g_ref[...], ln2_b_ref[...])      # [tn*L, H]
    h2 = h2_2d.reshape(tn, l, hdim)

    # --- BERT-style pooler (first token) ---
    pooled = jnp.tanh(jnp.dot(h2[:, 0, :], wp_ref[...],
                              preferred_element_type=f32) + bp_ref[...])

    # --- masked mean (weights already normalized on host -> exact) ---
    mean = jnp.sum(h2 * wmask[:, :, None], axis=1)                   # [tn, H]

    # --- output head: tanh(out_dense(pooled + mean)) ---
    out = jnp.tanh(jnp.dot(pooled + mean, w_out_ref[...],
                           preferred_element_type=f32) + b_out_ref[...])
    out_ref[...] = out.astype(out_ref.dtype)


# ------------------------------- wrapper -------------------------------------

def _vmem_limit_bytes():
    """Generation-aware VMEM limit: ~half of physical (v7x 64 MiB/TC -> 32 MiB,
    v5e/v6e 128 MiB -> 64 MiB), conservative fallback if the query fails."""
    cap = 64 << 20
    try:
        info = pltpu.get_tpu_info()
        cap = int(getattr(info, "vmem_capacity_bytes", cap))
    except Exception:
        pass
    return max(32 << 20, min(cap // 2, 96 << 20))


def _choose_tile_n(n_total, a, e, h, ffn, vmem_limit_bytes):
    """Largest multiple-of-8 divisor of n_total that fits a padding-aware VMEM
    budget; keeps the grid >= 2 when possible for pipelining / megacore."""
    l = a + 1
    lanes = lambda c: ((c + 127) // 128) * 128          # pad columns to 128 lanes

    # streamed tiles, double-buffered by the BlockSpec pipeline (f32 bytes/row)
    stream = 2 * 4 * (2 * lanes(e)                      # self, other
                      + a * lanes(2 * e)                # adj|rel rows per node
                      + 2 * lanes(l)                    # addmask, wmask
                      + lanes(h))                       # output
    # in-kernel temporaries per node row (conservative, mostly f32)
    temps = 4 * (lanes(e)                               # rr
                 + (a + l) * lanes(h)                   # hr + h_s scratch
                 + l * (lanes(3 * h) + 3 * lanes(h))    # qkv + q/k/v
                 + 2 * l * lanes(l)                     # scores, probs
                 + 4 * l * lanes(h)                     # ctx, attn_out, h1, h2
                 + l * lanes(ffn)                       # ffn hidden
                 + 4 * lanes(h))                        # pooled, mean, out, slack
    temps += 2 * (a * lanes(2 * e) + 2 * l * lanes(h) + l * lanes(ffn))   # bf16 casts
    per_row = stream + temps

    budget = int(vmem_limit_bytes * 0.7)
    upper = min(max(8, budget // per_row), n_total)
    if n_total >= 16:
        upper = min(upper, n_total // 2)                # prefer grid >= 2
    upper = max(8, (upper // 8) * 8)
    for cand in range(upper, 7, -8):                    # multiple-of-8 divisors
        if n_total % cand == 0:
            return cand
    return n_total                                      # full block (block == array dims)


def _prepare_weights(params):
    bf16 = jnp.bfloat16
    w_qkv = jnp.concatenate([params["wq"], params["wk"], params["wv"]], axis=1)
    b_qkv = jnp.concatenate([params["bq"], params["bk"], params["bv"]], axis=1)
    return [
        params["w_fc"], params["b_fc"],
        params["w_dense"].astype(bf16), params["b_dense"],
        w_qkv.astype(bf16), b_qkv,
        params["wo"].astype(bf16), params["bo"],
        params["ln1_g"], params["ln1_b"],
        params["w_ff1"].astype(bf16), params["b_ff1"],
        params["w_ff2"].astype(bf16), params["b_ff2"],
        params["ln2_g"], params["ln2_b"],
        params["wp"], params["bp"],
        params["w_out"], params["b_out"],
    ]


def _encode_fused(self_x, other_x, adjrel2d, addmask, wmask, params):
    n, e = self_x.shape
    l = addmask.shape[1]
    a = l - 1
    h = params["w_dense"].shape[1]
    ffn = params["w_ff1"].shape[1]

    vmem_limit = _vmem_limit_bytes()
    tn = _choose_tile_n(n, a, e, h, ffn, vmem_limit)
    assert n % tn == 0

    weight_args = _prepare_weights(params)

    in_specs = [
        pl.BlockSpec((tn, e), lambda i: (i, 0)),                # self
        pl.BlockSpec((tn, e), lambda i: (i, 0)),                # other
        pl.BlockSpec((tn * a, 2 * e), lambda i: (i, 0)),        # [adj | rel] stream
        pl.BlockSpec((tn, l), lambda i: (i, 0)),                # additive attn mask
        pl.BlockSpec((tn, l), lambda i: (i, 0)),                # mean weights
    ]
    for w in weight_args:
        # weights are grid-invariant; default-arg capture of ndim is intentional
        in_specs.append(pl.BlockSpec(w.shape, lambda i, nd=w.ndim: (0,) * nd))

    return pl.pallas_call(
        entity_encoder_kernel,
        out_shape=jax.ShapeDtypeStruct((n, h), jnp.float32),
        grid=(n // tn,),
        in_specs=in_specs,
        out_specs=pl.BlockSpec((tn, h), lambda i: (i, 0)),
        scratch_shapes=[pltpu.VMEM((tn, l, h), jnp.float32)],
        compiler_params=pltpu.CompilerParams(
            dimension_semantics=("parallel",),
            vmem_limit_bytes=vmem_limit),
    )(self_x, other_x, adjrel2d, addmask, wmask, *weight_args)


def my_entity_encoder(src, src_rel, src_adj, src_mask,
                      dst, dst_rel, dst_adj, dst_mask, params):
    """Fused: both views share weights, so stack along N and run one kernel."""
    n, e = src.shape
    a = src_rel.shape[1]

    self_x = jnp.concatenate([src, dst], axis=0)
    other_x = jnp.concatenate([dst, src], axis=0)
    # [adj | rel] per token, node-major, pre-flattened (row-major view; free)
    adjrel = jnp.concatenate(
        [jnp.concatenate([src_adj, src_rel], axis=-1),
         jnp.concatenate([dst_adj, dst_rel], axis=-1)], axis=0,
    ).reshape(2 * n * a, 2 * e)

    mask = jnp.concatenate([src_mask, dst_mask], axis=0).astype(jnp.float32)
    amask = jnp.concatenate([jnp.ones((2 * n, 1), jnp.float32), mask], axis=1)
    addmask = (1.0 - amask) * (-1e9)                       # additive attention mask
    wmask = amask / jnp.sum(amask, axis=-1, keepdims=True)  # exact mean weights

    out = _encode_fused(self_x, other_x, adjrel, addmask, wmask, params)
    return out[:n], out[n:]


# --------------------------- parameter creation ------------------------------

def init_params(key, embed_dim, hidden_size, ffn_dim):
    ks = iter(jax.random.split(key, 32))

    def lin(fan_in, fan_out):
        w = jax.random.normal(next(ks), (fan_in, fan_out), jnp.float32) * 0.02
        b = jax.random.normal(next(ks), (1, fan_out), jnp.float32) * 0.02
        return w, b

    p = {}
    p["w_fc"], p["b_fc"] = lin(embed_dim, embed_dim)
    p["w_dense"], p["b_dense"] = lin(2 * embed_dim, hidden_size)
    p["wq"], p["bq"] = lin(hidden_size, hidden_size)
    p["wk"], p["bk"] = lin(hidden_size, hidden_size)
    p["wv"], p["bv"] = lin(hidden_size, hidden_size)
    p["wo"], p["bo"] = lin(hidden_size, hidden_size)
    p["ln1_g"] = jnp.ones((1, hidden_size), jnp.float32)
    p["ln1_b"] = jnp.zeros((1, hidden_size), jnp.float32)
    p["w_ff1"], p["b_ff1"] = lin(hidden_size, ffn_dim)
    p["w_ff2"], p["b_ff2"] = lin(ffn_dim, hidden_size)
    p["ln2_g"] = jnp.ones((1, hidden_size), jnp.float32)
    p["ln2_b"] = jnp.zeros((1, hidden_size), jnp.float32)
    p["wp"], p["bp"] = lin(hidden_size, hidden_size)
    p["w_out"], p["b_out"] = lin(hidden_size, hidden_size)
    return p


# --------------------------- pure-JAX reference ------------------------------

def encode_ref(self_x, other_x, rel, adj, mask, p):
    rr = (other_x - self_x) @ p["w_fc"] + p["b_fc"]
    tok0 = jnp.concatenate([self_x, rr], axis=-1)[:, None, :]
    toks = jnp.concatenate([adj, rel], axis=-1)
    seq = jnp.concatenate([tok0, toks], axis=1)
    amask = jnp.concatenate(
        [jnp.ones((self_x.shape[0], 1), jnp.float32), mask], axis=1)
    h = jnp.tanh(seq @ p["w_dense"] + p["b_dense"])
    hdim = h.shape[-1]

    def proj(x, w, b):
        return jnp.einsum('nlh,hk->nlk', x, w) + b

    q, k, v = (proj(h, p["wq"], p["bq"]), proj(h, p["wk"], p["bk"]),
               proj(h, p["wv"], p["bv"]))
    s = jnp.einsum('nqh,nkh->nqk', q, k) / jnp.sqrt(jnp.float32(hdim))
    s = s + (1.0 - amask)[:, None, :] * (-1e9)
    pr = jax.nn.softmax(s, axis=-1)
    ctx = jnp.einsum('nqk,nkh->nqh', pr, v)
    h1 = _layernorm(h + proj(ctx, p["wo"], p["bo"]), p["ln1_g"], p["ln1_b"])
    ff = jax.nn.gelu(proj(h1, p["w_ff1"], p["b_ff1"]), approximate=True)
    h2 = _layernorm(h1 + proj(ff, p["w_ff2"], p["b_ff2"]), p["ln2_g"], p["ln2_b"])
    pooled = jnp.tanh(h2[:, 0, :] @ p["wp"] + p["bp"])
    mean = (jnp.sum(h2 * amask[:, :, None], axis=1)
            / jnp.sum(amask, axis=-1, keepdims=True))
    return jnp.tanh((pooled + mean) @ p["w_out"] + p["b_out"])


# ----------------------------------- main ------------------------------------

if __name__ == "__main__":
    N, A, E, H = 8, 7, 32, 32     # N = batch*num_nodes, A = max_adj, L = 8
    FFN = 4 * H

    key = jax.random.PRNGKey(0)
    k = jax.random.split(key, 10)
    src = jax.random.normal(k[0], (N, E), jnp.float32)
    dst = jax.random.normal(k[1], (N, E), jnp.float32)
    src_rel = jax.random.normal(k[2], (N, A, E), jnp.float32)
    src_adj = jax.random.normal(k[3], (N, A, E), jnp.float32)
    src_mask = (jax.random.uniform(k[4], (N, A)) > 0.3).astype(jnp.float32)
    dst_rel = jax.random.normal(k[5], (N, A, E), jnp.float32)
    dst_adj = jax.random.normal(k[6], (N, A, E), jnp.float32)
    dst_mask = (jax.random.uniform(k[7], (N, A)) > 0.3).astype(jnp.float32)
    params = init_params(k[8], E, H, FFN)

    encoder = jax.jit(my_entity_encoder)
    src_out, dst_out = encoder(src, src_rel, src_adj, src_mask,
                               dst, dst_rel, dst_adj, dst_mask, params)
    jax.block_until_ready((src_out, dst_out))

    src_exp = encode_ref(src, dst, src_rel, src_adj, src_mask, params)
    dst_exp = encode_ref(dst, src, dst_rel, dst_adj, dst_mask, params)
    assert src_out.shape == (N, H) and dst_out.shape == (N, H)
    # tolerance covers bf16 MXU operands (f32 accumulation) and the EUP
    # approximate reciprocal used for the softmax denominator; the masked-mean
    # divide is now exact.
    assert jnp.allclose(src_out, src_exp, atol=2e-2, rtol=2e-2)
    assert jnp.allclose(dst_out, dst_exp, atol=2e-2, rtol=2e-2)
    print("KERNEL_OK")
</pallas_src>

<mosaic_0001>
module attributes {stable_mosaic.version = 11 : i64} {
  func.func @entity_encoder_kernel(%arg0: i32, %arg1: memref<8x32xf32, #tpu.memory_space<vmem>>, %arg2: memref<8x32xf32, #tpu.memory_space<vmem>>, %arg3: memref<56x64xf32, #tpu.memory_space<vmem>>, %arg4: memref<8x8xf32, #tpu.memory_space<vmem>>, %arg5: memref<8x8xf32, #tpu.memory_space<vmem>>, %arg6: memref<32x32xf32, #tpu.memory_space<vmem>>, %arg7: memref<1x32xf32, #tpu.memory_space<vmem>>, %arg8: memref<64x32xbf16, #tpu.memory_space<vmem>>, %arg9: memref<1x32xf32, #tpu.memory_space<vmem>>, %arg10: memref<32x96xbf16, #tpu.memory_space<vmem>>, %arg11: memref<1x96xf32, #tpu.memory_space<vmem>>, %arg12: memref<32x32xbf16, #tpu.memory_space<vmem>>, %arg13: memref<1x32xf32, #tpu.memory_space<vmem>>, %arg14: memref<1x32xf32, #tpu.memory_space<vmem>>, %arg15: memref<1x32xf32, #tpu.memory_space<vmem>>, %arg16: memref<32x128xbf16, #tpu.memory_space<vmem>>, %arg17: memref<1x128xf32, #tpu.memory_space<vmem>>, %arg18: memref<128x32xbf16, #tpu.memory_space<vmem>>, %arg19: memref<1x32xf32, #tpu.memory_space<vmem>>, %arg20: memref<1x32xf32, #tpu.memory_space<vmem>>, %arg21: memref<1x32xf32, #tpu.memory_space<vmem>>, %arg22: memref<32x32xf32, #tpu.memory_space<vmem>>, %arg23: memref<1x32xf32, #tpu.memory_space<vmem>>, %arg24: memref<32x32xf32, #tpu.memory_space<vmem>>, %arg25: memref<1x32xf32, #tpu.memory_space<vmem>>, %arg26: memref<8x32xf32, #tpu.memory_space<vmem>>, %arg27: memref<8x8x32xf32, #tpu.memory_space<vmem>>) attributes {dimension_semantics = [#tpu.dimension_semantics<parallel>], iteration_bounds = array<i64: 2>, scalar_prefetch = 0 : i64, scratch_operands = 1 : i64, tpu.core_type = #tpu.core_type<tc>, window_params = [{transform_indices = @transform_0, window_bounds = array<i64: 8, 32>}, {transform_indices = @transform_1, window_bounds = array<i64: 8, 32>}, {transform_indices = @transform_2, window_bounds = array<i64: 56, 64>}, {transform_indices = @transform_3, window_bounds = array<i64: 8, 8>}, {transform_indices = @transform_4, window_bounds = array<i64: 8, 8>}, {pipeline_mode = #tpu.pipeline_mode<synchronous>, transform_indices = @transform_5, window_bounds = array<i64: 32, 32>}, {pipeline_mode = #tpu.pipeline_mode<synchronous>, transform_indices = @transform_6, window_bounds = array<i64: 1, 32>}, {pipeline_mode = #tpu.pipeline_mode<synchronous>, transform_indices = @transform_7, window_bounds = array<i64: 64, 32>}, {pipeline_mode = #tpu.pipeline_mode<synchronous>, transform_indices = @transform_8, window_bounds = array<i64: 1, 32>}, {pipeline_mode = #tpu.pipeline_mode<synchronous>, transform_indices = @transform_9, window_bounds = array<i64: 32, 96>}, {pipeline_mode = #tpu.pipeline_mode<synchronous>, transform_indices = @transform_10, window_bounds = array<i64: 1, 96>}, {pipeline_mode = #tpu.pipeline_mode<synchronous>, transform_indices = @transform_11, window_bounds = array<i64: 32, 32>}, {pipeline_mode = #tpu.pipeline_mode<synchronous>, transform_indices = @transform_12, window_bounds = array<i64: 1, 32>}, {pipeline_mode = #tpu.pipeline_mode<synchronous>, transform_indices = @transform_13, window_bounds = array<i64: 1, 32>}, {pipeline_mode = #tpu.pipeline_mode<synchronous>, transform_indices = @transform_14, window_bounds = array<i64: 1, 32>}, {pipeline_mode = #tpu.pipeline_mode<synchronous>, transform_indices = @transform_15, window_bounds = array<i64: 32, 128>}, {pipeline_mode = #tpu.pipeline_mode<synchronous>, transform_indices = @transform_16, window_bounds = array<i64: 1, 128>}, {pipeline_mode = #tpu.pipeline_mode<synchronous>, transform_indices = @transform_17, window_bounds = array<i64: 128, 32>}, {pipeline_mode = #tpu.pipeline_mode<synchronous>, transform_indices = @transform_18, window_bounds = array<i64: 1, 32>}, {pipeline_mode = #tpu.pipeline_mode<synchronous>, transform_indices = @transform_19, window_bounds = array<i64: 1, 32>}, {pipeline_mode = #tpu.pipeline_mode<synchronous>, transform_indices = @transform_20, window_bounds = array<i64: 1, 32>}, {pipeline_mode = #tpu.pipeline_mode<synchronous>, transform_indices = @transform_21, window_bounds = array<i64: 32, 32>}, {pipeline_mode = #tpu.pipeline_mode<synchronous>, transform_indices = @transform_22, window_bounds = array<i64: 1, 32>}, {pipeline_mode = #tpu.pipeline_mode<synchronous>, transform_indices = @transform_23, window_bounds = array<i64: 32, 32>}, {pipeline_mode = #tpu.pipeline_mode<synchronous>, transform_indices = @transform_24, window_bounds = array<i64: 1, 32>}, {transform_indices = @transform_25, window_bounds = array<i64: 8, 32>}]} {
    %c0 = arith.constant 0 : index
    %c0_0 = arith.constant 0 : index
    %0 = vector.load %arg1[%c0, %c0_0] : memref<8x32xf32, #tpu.memory_space<vmem>>, vector<8x32xf32>
    %c0_1 = arith.constant 0 : index
    %c0_2 = arith.constant 0 : index
    %1 = vector.load %arg2[%c0_1, %c0_2] : memref<8x32xf32, #tpu.memory_space<vmem>>, vector<8x32xf32>
    %c0_3 = arith.constant 0 : index
    %c0_4 = arith.constant 0 : index
    %2 = vector.load %arg4[%c0_3, %c0_4] : memref<8x8xf32, #tpu.memory_space<vmem>>, vector<8x8xf32>
    %c0_5 = arith.constant 0 : index
    %c0_6 = arith.constant 0 : index
    %3 = vector.load %arg5[%c0_5, %c0_6] : memref<8x8xf32, #tpu.memory_space<vmem>>, vector<8x8xf32>
    %4 = arith.subf %1, %0 : vector<8x32xf32>
    %c0_7 = arith.constant 0 : index
    %c0_8 = arith.constant 0 : index
    %5 = vector.load %arg6[%c0_7, %c0_8] : memref<32x32xf32, #tpu.memory_space<vmem>>, vector<32x32xf32>
    %cst = arith.constant dense<0.000000e+00> : vector<8x32xf32>
    %6 = tpu.matmul %4, %5, %cst {dimension_numbers = #tpu.dot_dimension_numbers<[1], [0], [0], [1], [0, 0, 1, 1], [], []>} : vector<8x32xf32>, vector<32x32xf32>, vector<8x32xf32> -> vector<8x32xf32>
    %c0_9 = arith.constant 0 : index
    %c0_10 = arith.constant 0 : index
    %7 = vector.load %arg7[%c0_9, %c0_10] : memref<1x32xf32, #tpu.memory_space<vmem>>, vector<1x32xf32>
    %8 = vector.broadcast %7 : vector<1x32xf32> to vector<8x32xf32>
    %9 = arith.addf %6, %8 : vector<8x32xf32>
    %c0_11 = arith.constant 0 : index
    %c0_12 = arith.constant 0 : index
    %10 = vector.load %arg8[%c0_11, %c0_12] : memref<64x32xbf16, #tpu.memory_space<vmem>>, vector<64x32xbf16>
    %c0_13 = arith.constant 0 : index
    %c0_14 = arith.constant 0 : index
    %11 = vector.load %arg9[%c0_13, %c0_14] : memref<1x32xf32, #tpu.memory_space<vmem>>, vector<1x32xf32>
    %12 = arith.truncf %0 : vector<8x32xf32> to vector<8x32xbf16>
    %13 = vector.extract_strided_slice %10 {offsets = [0, 0], sizes = [32, 32], strides = [1, 1]} : vector<64x32xbf16> to vector<32x32xbf16>
    %cst_15 = arith.constant dense<0.000000e+00> : vector<8x32xf32>
    %14 = tpu.matmul %12, %13, %cst_15 {dimension_numbers = #tpu.dot_dimension_numbers<[1], [0], [0], [1], [0, 0, 1, 1], [], []>} : vector<8x32xbf16>, vector<32x32xbf16>, vector<8x32xf32> -> vector<8x32xf32>
    %15 = arith.truncf %9 : vector<8x32xf32> to vector<8x32xbf16>
    %16 = vector.extract_strided_slice %10 {offsets = [32, 0], sizes = [32, 32], strides = [1, 1]} : vector<64x32xbf16> to vector<32x32xbf16>
    %cst_16 = arith.constant dense<0.000000e+00> : vector<8x32xf32>
    %17 = tpu.matmul %15, %16, %cst_16 {dimension_numbers = #tpu.dot_dimension_numbers<[1], [0], [0], [1], [0, 0, 1, 1], [], []>} : vector<8x32xbf16>, vector<32x32xbf16>, vector<8x32xf32> -> vector<8x32xf32>
    %18 = arith.addf %14, %17 : vector<8x32xf32>
    %19 = vector.broadcast %11 : vector<1x32xf32> to vector<8x32xf32>
    %20 = arith.addf %18, %19 : vector<8x32xf32>
    %21 = math.tanh %20 : vector<8x32xf32>
    %c0_17 = arith.constant 0 : index
    %c0_18 = arith.constant 0 : index
    %22 = vector.load %arg3[%c0_17, %c0_18] : memref<56x64xf32, #tpu.memory_space<vmem>>, vector<56x64xf32>
    %23 = arith.truncf %22 : vector<56x64xf32> to vector<56x64xbf16>
    %cst_19 = arith.constant dense<0.000000e+00> : vector<56x32xf32>
    %24 = tpu.matmul %23, %10, %cst_19 {dimension_numbers = #tpu.dot_dimension_numbers<[1], [0], [0], [1], [0, 0, 1, 1], [], []>} : vector<56x64xbf16>, vector<64x32xbf16>, vector<56x32xf32> -> vector<56x32xf32>
    %25 = vector.broadcast %11 : vector<1x32xf32> to vector<56x32xf32>
    %26 = arith.addf %24, %25 : vector<56x32xf32>
    %27 = math.tanh %26 : vector<56x32xf32>
    %28 = vector.shape_cast %21 : vector<8x32xf32> to vector<8x1x32xf32>
    %c0_20 = arith.constant 0 : index
    %c0_21 = arith.constant 0 : index
    %c0_22 = arith.constant 0 : index
    %29 = vector.load %arg27[%c0_20, %c0_21, %c0_22] : memref<8x8x32xf32, #tpu.memory_space<vmem>>, vector<8x1x32xf32>
    tpu.vector_store %arg27[%c0_20, %c0_21, %c0_22], %28 {strides = array<i32>} : memref<8x8x32xf32, #tpu.memory_space<vmem>>, vector<8x1x32xf32>,
    %30 = vector.shape_cast %27 : vector<56x32xf32> to vector<8x7x32xf32>
    %c0_23 = arith.constant 0 : index
    %c1 = arith.constant 1 : index
    %c0_24 = arith.constant 0 : index
    %31 = vector.load %arg27[%c0_23, %c1, %c0_24] : memref<8x8x32xf32, #tpu.memory_space<vmem>>, vector<8x7x32xf32>
    tpu.vector_store %arg27[%c0_23, %c1, %c0_24], %30 {strides = array<i32>} : memref<8x8x32xf32, #tpu.memory_space<vmem>>, vector<8x7x32xf32>,
    %c0_25 = arith.constant 0 : index
    %c0_26 = arith.constant 0 : index
    %c0_27 = arith.constant 0 : index
    %32 = vector.load %arg27[%c0_25, %c0_26, %c0_27] : memref<8x8x32xf32, #tpu.memory_space<vmem>>, vector<8x8x32xf32>
    %33 = vector.shape_cast %32 : vector<8x8x32xf32> to vector<64x32xf32>
    %34 = arith.truncf %33 : vector<64x32xf32> to vector<64x32xbf16>
    %c0_28 = arith.constant 0 : index
    %c0_29 = arith.constant 0 : index
    %35 = vector.load %arg10[%c0_28, %c0_29] : memref<32x96xbf16, #tpu.memory_space<vmem>>, vector<32x96xbf16>
    %cst_30 = arith.constant dense<0.000000e+00> : vector<64x96xf32>
    %36 = tpu.matmul %34, %35, %cst_30 {dimension_numbers = #tpu.dot_dimension_numbers<[1], [0], [0], [1], [0, 0, 1, 1], [], []>} : vector<64x32xbf16>, vector<32x96xbf16>, vector<64x96xf32> -> vector<64x96xf32>
    %c0_31 = arith.constant 0 : index
    %c0_32 = arith.constant 0 : index
    %37 = vector.load %arg11[%c0_31, %c0_32] : memref<1x96xf32, #tpu.memory_space<vmem>>, vector<1x96xf32>
    %38 = vector.broadcast %37 : vector<1x96xf32> to vector<64x96xf32>
    %39 = arith.addf %36, %38 : vector<64x96xf32>
    %40 = vector.extract_strided_slice %39 {offsets = [0, 0], sizes = [64, 32], strides = [1, 1]} : vector<64x96xf32> to vector<64x32xf32>
    %41 = vector.shape_cast %40 : vector<64x32xf32> to vector<8x8x32xf32>
    %42 = vector.extract_strided_slice %39 {offsets = [0, 32], sizes = [64, 32], strides = [1, 1]} : vector<64x96xf32> to vector<64x32xf32>
    %43 = vector.shape_cast %42 : vector<64x32xf32> to vector<8x8x32xf32>
    %44 = vector.extract_strided_slice %39 {offsets = [0, 64], sizes = [64, 32], strides = [1, 1]} : vector<64x96xf32> to vector<64x32xf32>
    %45 = vector.shape_cast %44 : vector<64x32xf32> to vector<8x8x32xf32>
    "tpu.trace_start"() <{level = 10 : i32, message = "nqh,nkh->nqk"}> : () -> ()
    %cst_33 = arith.constant dense<0.000000e+00> : vector<8x8x8xf32>
    %46 = tpu.matmul %41, %43, %cst_33 {dimension_numbers = #tpu.dot_dimension_numbers<[2], [2], [1], [1], [0, 0, 0, 1, 1, 1], [0], [0]>} : vector<8x8x32xf32>, vector<8x8x32xf32>, vector<8x8x8xf32> -> vector<8x8x8xf32>
    "tpu.trace_stop"() : () -> ()
    %cst_34 = arith.constant 0.176776692 : f32
    %47 = vector.broadcast %cst_34 : f32 to vector<8x8x8xf32>
    %48 = arith.mulf %46, %47 : vector<8x8x8xf32>
    %49 = vector.shape_cast %2 : vector<8x8xf32> to vector<8x1x8xf32>
    %50 = vector.broadcast %49 : vector<8x1x8xf32> to vector<8x8x8xf32>
    %51 = arith.addf %48, %50 : vector<8x8x8xf32>
    %cst_35 = arith.constant dense<0xFF800000> : vector<8x8xf32>
    %52 = vector.multi_reduction <maximumf>, %51, %cst_35 [2] : vector<8x8x8xf32> to vector<8x8xf32>
    %53 = vector.shape_cast %52 : vector<8x8xf32> to vector<8x8x1xf32>
    %54 = vector.broadcast %53 : vector<8x8x1xf32> to vector<8x8x8xf32>
    %55 = arith.subf %51, %54 : vector<8x8x8xf32>
    %56 = math.exp %55 : vector<8x8x8xf32>
    %cst_36 = arith.constant dense<0.000000e+00> : vector<8x8xf32>
    %57 = vector.multi_reduction <add>, %56, %cst_36 [2] : vector<8x8x8xf32> to vector<8x8xf32>
    %58 = vector.shape_cast %57 : vector<8x8xf32> to vector<8x8x1xf32>
    %59 = tpu.reciprocal %58 {approx = true} : vector<8x8x1xf32> -> vector<8x8x1xf32>
    %60 = vector.broadcast %59 : vector<8x8x1xf32> to vector<8x8x8xf32>
    %61 = arith.mulf %56, %60 : vector<8x8x8xf32>
    "tpu.trace_start"() <{level = 10 : i32, message = "nqk,nkh->nqh"}> : () -> ()
    %cst_37 = arith.constant dense<0.000000e+00> : vector<8x8x32xf32>
    %62 = tpu.matmul %61, %45, %cst_37 {dimension_numbers = #tpu.dot_dimension_numbers<[2], [1], [1], [2], [0, 0, 0, 1, 1, 2], [0], [0]>} : vector<8x8x8xf32>, vector<8x8x32xf32>, vector<8x8x32xf32> -> vector<8x8x32xf32>
    "tpu.trace_stop"() : () -> ()
    %63 = vector.shape_cast %62 : vector<8x8x32xf32> to vector<64x32xf32>
    %64 = arith.truncf %63 : vector<64x32xf32> to vector<64x32xbf16>
    %c0_38 = arith.constant 0 : index
    %c0_39 = arith.constant 0 : index
    %65 = vector.load %arg12[%c0_38, %c0_39] : memref<32x32xbf16, #tpu.memory_space<vmem>>, vector<32x32xbf16>
    %cst_40 = arith.constant dense<0.000000e+00> : vector<64x32xf32>
    %66 = tpu.matmul %64, %65, %cst_40 {dimension_numbers = #tpu.dot_dimension_numbers<[1], [0], [0], [1], [0, 0, 1, 1], [], []>} : vector<64x32xbf16>, vector<32x32xbf16>, vector<64x32xf32> -> vector<64x32xf32>
    %c0_41 = arith.constant 0 : index
    %c0_42 = arith.constant 0 : index
    %67 = vector.load %arg13[%c0_41, %c0_42] : memref<1x32xf32, #tpu.memory_space<vmem>>, vector<1x32xf32>
    %68 = vector.broadcast %67 : vector<1x32xf32> to vector<64x32xf32>
    %69 = arith.addf %66, %68 : vector<64x32xf32>
    %70 = arith.addf %33, %69 : vector<64x32xf32>
    %c0_43 = arith.constant 0 : index
    %c0_44 = arith.constant 0 : index
    %71 = vector.load %arg14[%c0_43, %c0_44] : memref<1x32xf32, #tpu.memory_space<vmem>>, vector<1x32xf32>
    %c0_45 = arith.constant 0 : index
    %c0_46 = arith.constant 0 : index
    %72 = vector.load %arg15[%c0_45, %c0_46] : memref<1x32xf32, #tpu.memory_space<vmem>>, vector<1x32xf32>
    %cst_47 = arith.constant dense<0.000000e+00> : vector<64xf32>
    %73 = vector.multi_reduction <add>, %70, %cst_47 [1] : vector<64x32xf32> to vector<64xf32>
    %74 = vector.shape_cast %73 : vector<64xf32> to vector<64x1xf32>
    %cst_48 = arith.constant 3.200000e+01 : f32
    %75 = vector.broadcast %cst_48 : f32 to vector<64x1xf32>
    %76 = arith.divf %74, %75 : vector<64x1xf32>
    %77 = vector.broadcast %76 : vector<64x1xf32> to vector<64x32xf32>
    %78 = arith.subf %70, %77 : vector<64x32xf32>
    %79 = arith.mulf %78, %78 : vector<64x32xf32>
    %cst_49 = arith.constant dense<0.000000e+00> : vector<64xf32>
    %80 = vector.multi_reduction <add>, %79, %cst_49 [1] : vector<64x32xf32> to vector<64xf32>
    %81 = vector.shape_cast %80 : vector<64xf32> to vector<64x1xf32>
    %cst_50 = arith.constant 3.200000e+01 : f32
    %82 = vector.broadcast %cst_50 : f32 to vector<64x1xf32>
    %83 = arith.divf %81, %82 : vector<64x1xf32>
    %84 = vector.broadcast %76 : vector<64x1xf32> to vector<64x32xf32>
    %85 = arith.subf %70, %84 : vector<64x32xf32>
    %cst_51 = arith.constant 9.99999996E-13 : f32
    %86 = vector.broadcast %cst_51 : f32 to vector<64x1xf32>
    %87 = arith.addf %83, %86 : vector<64x1xf32>
    %88 = math.rsqrt %87 : vector<64x1xf32>
    %89 = vector.broadcast %88 : vector<64x1xf32> to vector<64x32xf32>
    %90 = arith.mulf %85, %89 : vector<64x32xf32>
    %91 = vector.broadcast %71 : vector<1x32xf32> to vector<64x32xf32>
    %92 = arith.mulf %90, %91 : vector<64x32xf32>
    %93 = vector.broadcast %72 : vector<1x32xf32> to vector<64x32xf32>
    %94 = arith.addf %92, %93 : vector<64x32xf32>
    %95 = arith.truncf %94 : vector<64x32xf32> to vector<64x32xbf16>
    %c0_52 = arith.constant 0 : index
    %c0_53 = arith.constant 0 : index
    %96 = vector.load %arg16[%c0_52, %c0_53] : memref<32x128xbf16, #tpu.memory_space<vmem>>, vector<32x128xbf16>
    %cst_54 = arith.constant dense<0.000000e+00> : vector<64x128xf32>
    %97 = tpu.matmul %95, %96, %cst_54 {dimension_numbers = #tpu.dot_dimension_numbers<[1], [0], [0], [1], [0, 0, 1, 1], [], []>} : vector<64x32xbf16>, vector<32x128xbf16>, vector<64x128xf32> -> vector<64x128xf32>
    %c0_55 = arith.constant 0 : index
    %c0_56 = arith.constant 0 : index
    %98 = vector.load %arg17[%c0_55, %c0_56] : memref<1x128xf32, #tpu.memory_space<vmem>>, vector<1x128xf32>
    %99 = vector.broadcast %98 : vector<1x128xf32> to vector<64x128xf32>
    %100 = arith.addf %97, %99 : vector<64x128xf32>
    %101 = arith.mulf %100, %100 : vector<64x128xf32>
    %102 = arith.mulf %100, %101 : vector<64x128xf32>
    %cst_57 = arith.constant 4.471500e-02 : f32
    %103 = vector.broadcast %cst_57 : f32 to vector<64x128xf32>
    %104 = arith.mulf %103, %102 : vector<64x128xf32>
    %105 = arith.addf %100, %104 : vector<64x128xf32>
    %cst_58 = arith.constant 0.797884583 : f32
    %106 = vector.broadcast %cst_58 : f32 to vector<64x128xf32>
    %107 = arith.mulf %106, %105 : vector<64x128xf32>
    %108 = math.tanh %107 : vector<64x128xf32>
    %cst_59 = arith.constant 1.000000e+00 : f32
    %109 = vector.broadcast %cst_59 : f32 to vector<64x128xf32>
    %110 = arith.addf %109, %108 : vector<64x128xf32>
    %cst_60 = arith.constant 5.000000e-01 : f32
    %111 = vector.broadcast %cst_60 : f32 to vector<64x128xf32>
    %112 = arith.mulf %111, %110 : vector<64x128xf32>
    %113 = arith.mulf %100, %112 : vector<64x128xf32>
    %114 = arith.truncf %113 : vector<64x128xf32> to vector<64x128xbf16>
    %c0_61 = arith.constant 0 : index
    %c0_62 = arith.constant 0 : index
    %115 = vector.load %arg18[%c0_61, %c0_62] : memref<128x32xbf16, #tpu.memory_space<vmem>>, vector<128x32xbf16>
    %cst_63 = arith.constant dense<0.000000e+00> : vector<64x32xf32>
    %116 = tpu.matmul %114, %115, %cst_63 {dimension_numbers = #tpu.dot_dimension_numbers<[1], [0], [0], [1], [0, 0, 1, 1], [], []>} : vector<64x128xbf16>, vector<128x32xbf16>, vector<64x32xf32> -> vector<64x32xf32>
    %c0_64 = arith.constant 0 : index
    %c0_65 = arith.constant 0 : index
    %117 = vector.load %arg19[%c0_64, %c0_65] : memref<1x32xf32, #tpu.memory_space<vmem>>, vector<1x32xf32>
    %118 = vector.broadcast %117 : vector<1x32xf32> to vector<64x32xf32>
    %119 = arith.addf %116, %118 : vector<64x32xf32>
    %120 = arith.addf %94, %119 : vector<64x32xf32>
    %c0_66 = arith.constant 0 : index
    %c0_67 = arith.constant 0 : index
    %121 = vector.load %arg20[%c0_66, %c0_67] : memref<1x32xf32, #tpu.memory_space<vmem>>, vector<1x32xf32>
    %c0_68 = arith.constant 0 : index
    %c0_69 = arith.constant 0 : index
    %122 = vector.load %arg21[%c0_68, %c0_69] : memref<1x32xf32, #tpu.memory_space<vmem>>, vector<1x32xf32>
    %cst_70 = arith.constant dense<0.000000e+00> : vector<64xf32>
    %123 = vector.multi_reduction <add>, %120, %cst_70 [1] : vector<64x32xf32> to vector<64xf32>
    %124 = vector.shape_cast %123 : vector<64xf32> to vector<64x1xf32>
    %cst_71 = arith.constant 3.200000e+01 : f32
    %125 = vector.broadcast %cst_71 : f32 to vector<64x1xf32>
    %126 = arith.divf %124, %125 : vector<64x1xf32>
    %127 = vector.broadcast %126 : vector<64x1xf32> to vector<64x32xf32>
    %128 = arith.subf %120, %127 : vector<64x32xf32>
    %129 = arith.mulf %128, %128 : vector<64x32xf32>
    %cst_72 = arith.constant dense<0.000000e+00> : vector<64xf32>
    %130 = vector.multi_reduction <add>, %129, %cst_72 [1] : vector<64x32xf32> to vector<64xf32>
    %131 = vector.shape_cast %130 : vector<64xf32> to vector<64x1xf32>
    %cst_73 = arith.constant 3.200000e+01 : f32
    %132 = vector.broadcast %cst_73 : f32 to vector<64x1xf32>
    %133 = arith.divf %131, %132 : vector<64x1xf32>
    %134 = vector.broadcast %126 : vector<64x1xf32> to vector<64x32xf32>
    %135 = arith.subf %120, %134 : vector<64x32xf32>
    %cst_74 = arith.constant 9.99999996E-13 : f32
    %136 = vector.broadcast %cst_74 : f32 to vector<64x1xf32>
    %137 = arith.addf %133, %136 : vector<64x1xf32>
    %138 = math.rsqrt %137 : vector<64x1xf32>
    %139 = vector.broadcast %138 : vector<64x1xf32> to vector<64x32xf32>
    %140 = arith.mulf %135, %139 : vector<64x32xf32>
    %141 = vector.broadcast %121 : vector<1x32xf32> to vector<64x32xf32>
    %142 = arith.mulf %140, %141 : vector<64x32xf32>
    %143 = vector.broadcast %122 : vector<1x32xf32> to vector<64x32xf32>
    %144 = arith.addf %142, %143 : vector<64x32xf32>
    %145 = vector.shape_cast %144 : vector<64x32xf32> to vector<8x8x32xf32>
    %146 = vector.extract_strided_slice %145 {offsets = [0, 0, 0], sizes = [8, 1, 32], strides = [1, 1, 1]} : vector<8x8x32xf32> to vector<8x1x32xf32>
    %147 = vector.shape_cast %146 : vector<8x1x32xf32> to vector<8x32xf32>
    %c0_75 = arith.constant 0 : index
    %c0_76 = arith.constant 0 : index
    %148 = vector.load %arg22[%c0_75, %c0_76] : memref<32x32xf32, #tpu.memory_space<vmem>>, vector<32x32xf32>
    %cst_77 = arith.constant dense<0.000000e+00> : vector<8x32xf32>
    %149 = tpu.matmul %147, %148, %cst_77 {dimension_numbers = #tpu.dot_dimension_numbers<[1], [0], [0], [1], [0, 0, 1, 1], [], []>} : vector<8x32xf32>, vector<32x32xf32>, vector<8x32xf32> -> vector<8x32xf32>
    %c0_78 = arith.constant 0 : index
    %c0_79 = arith.constant 0 : index
    %150 = vector.load %arg23[%c0_78, %c0_79] : memref<1x32xf32, #tpu.memory_space<vmem>>, vector<1x32xf32>
    %151 = vector.broadcast %150 : vector<1x32xf32> to vector<8x32xf32>
    %152 = arith.addf %149, %151 : vector<8x32xf32>
    %153 = math.tanh %152 : vector<8x32xf32>
    %154 = vector.shape_cast %3 : vector<8x8xf32> to vector<8x8x1xf32>
    %155 = vector.broadcast %154 : vector<8x8x1xf32> to vector<8x8x32xf32>
    %156 = arith.mulf %145, %155 : vector<8x8x32xf32>
    %cst_80 = arith.constant dense<0.000000e+00> : vector<8x32xf32>
    %157 = vector.multi_reduction <add>, %156, %cst_80 [1] : vector<8x8x32xf32> to vector<8x32xf32>
    %158 = arith.addf %153, %157 : vector<8x32xf32>
    %c0_81 = arith.constant 0 : index
    %c0_82 = arith.constant 0 : index
    %159 = vector.load %arg24[%c0_81, %c0_82] : memref<32x32xf32, #tpu.memory_space<vmem>>, vector<32x32xf32>
    %cst_83 = arith.constant dense<0.000000e+00> : vector<8x32xf32>
    %160 = tpu.matmul %158, %159, %cst_83 {dimension_numbers = #tpu.dot_dimension_numbers<[1], [0], [0], [1], [0, 0, 1, 1], [], []>} : vector<8x32xf32>, vector<32x32xf32>, vector<8x32xf32> -> vector<8x32xf32>
    %c0_84 = arith.constant 0 : index
    %c0_85 = arith.constant 0 : index
    %161 = vector.load %arg25[%c0_84, %c0_85] : memref<1x32xf32, #tpu.memory_space<vmem>>, vector<1x32xf32>
    %162 = vector.broadcast %161 : vector<1x32xf32> to vector<8x32xf32>
    %163 = arith.addf %160, %162 : vector<8x32xf32>
    %164 = math.tanh %163 : vector<8x32xf32>
    %c0_86 = arith.constant 0 : index
    %c0_87 = arith.constant 0 : index
    %165 = vector.load %arg26[%c0_86, %c0_87] : memref<8x32xf32, #tpu.memory_space<vmem>>, vector<8x32xf32>
    tpu.vector_store %arg26[%c0_86, %c0_87], %164 {strides = array<i32>} : memref<8x32xf32, #tpu.memory_space<vmem>>, vector<8x32xf32>,
    return
  }
  func.func @transform_0(%arg0: i32) -> (i32, i32) {
    %c0_i32 = arith.constant 0 : i32
    %c0_i32_0 = arith.constant 0 : i32
    return %arg0, %c0_i32 : i32, i32
  }
  func.func @transform_1(%arg0: i32) -> (i32, i32) {
    %c0_i32 = arith.constant 0 : i32
    %c0_i32_0 = arith.constant 0 : i32
    return %arg0, %c0_i32 : i32, i32
  }
  func.func @transform_2(%arg0: i32) -> (i32, i32) {
    %c0_i32 = arith.constant 0 : i32
    %c0_i32_0 = arith.constant 0 : i32
    return %arg0, %c0_i32 : i32, i32
  }
  func.func @transform_3(%arg0: i32) -> (i32, i32) {
    %c0_i32 = arith.constant 0 : i32
    %c0_i32_0 = arith.constant 0 : i32
    return %arg0, %c0_i32 : i32, i32
  }
  func.func @transform_4(%arg0: i32) -> (i32, i32) {
    %c0_i32 = arith.constant 0 : i32
    %c0_i32_0 = arith.constant 0 : i32
    return %arg0, %c0_i32 : i32, i32
  }
  func.func @transform_5(%arg0: i32) -> (i32, i32) {
    %c0_i32 = arith.constant 0 : i32
    %c0_i32_0 = arith.constant 0 : i32
    %c0_i32_1 = arith.constant 0 : i32
    return %c0_i32, %c0_i32_0 : i32, i32
  }
  func.func @transform_6(%arg0: i32) -> (i32, i32) {
    %c0_i32 = arith.constant 0 : i32
    %c0_i32_0 = arith.constant 0 : i32
    %c0_i32_1 = arith.constant 0 : i32
    return %c0_i32, %c0_i32_0 : i32, i32
  }
  func.func @transform_7(%arg0: i32) -> (i32, i32) {
    %c0_i32 = arith.constant 0 : i32
    %c0_i32_0 = arith.constant 0 : i32
    %c0_i32_1 = arith.constant 0 : i32
    return %c0_i32, %c0_i32_0 : i32, i32
  }
  func.func @transform_8(%arg0: i32) -> (i32, i32) {
    %c0_i32 = arith.constant 0 : i32
    %c0_i32_0 = arith.constant 0 : i32
    %c0_i32_1 = arith.constant 0 : i32
    return %c0_i32, %c0_i32_0 : i32, i32
  }
  func.func @transform_9(%arg0: i32) -> (i32, i32) {
    %c0_i32 = arith.constant 0 : i32
    %c0_i32_0 = arith.constant 0 : i32
    %c0_i32_1 = arith.constant 0 : i32
    return %c0_i32, %c0_i32_0 : i32, i32
  }
  func.func @transform_10(%arg0: i32) -> (i32, i32) {
    %c0_i32 = arith.constant 0 : i32
    %c0_i32_0 = arith.constant 0 : i32
    %c0_i32_1 = arith.constant 0 : i32
    return %c0_i32, %c0_i32_0 : i32, i32
  }
  func.func @transform_11(%arg0: i32) -> (i32, i32) {
    %c0_i32 = arith.constant 0 : i32
    %c0_i32_0 = arith.constant 0 : i32
    %c0_i32_1 = arith.constant 0 : i32
    return %c0_i32, %c0_i32_0 : i32, i32
  }
  func.func @transform_12(%arg0: i32) -> (i32, i32) {
    %c0_i32 = arith.constant 0 : i32
    %c0_i32_0 = arith.constant 0 : i32
    %c0_i32_1 = arith.constant 0 : i32
    return %c0_i32, %c0_i32_0 : i32, i32
  }
  func.func @transform_13(%arg0: i32) -> (i32, i32) {
    %c0_i32 = arith.constant 0 : i32
    %c0_i32_0 = arith.constant 0 : i32
    %c0_i32_1 = arith.constant 0 : i32
    return %c0_i32, %c0_i32_0 : i32, i32
  }
  func.func @transform_14(%arg0: i32) -> (i32, i32) {
    %c0_i32 = arith.constant 0 : i32
    %c0_i32_0 = arith.constant 0 : i32
    %c0_i32_1 = arith.constant 0 : i32
    return %c0_i32, %c0_i32_0 : i32, i32
  }
  func.func @transform_15(%arg0: i32) -> (i32, i32) {
    %c0_i32 = arith.constant 0 : i32
    %c0_i32_0 = arith.constant 0 : i32
    %c0_i32_1 = arith.constant 0 : i32
    return %c0_i32, %c0_i32_0 : i32, i32
  }
  func.func @transform_16(%arg0: i32) -> (i32, i32) {
    %c0_i32 = arith.constant 0 : i32
    %c0_i32_0 = arith.constant 0 : i32
    %c0_i32_1 = arith.constant 0 : i32
    return %c0_i32, %c0_i32_0 : i32, i32
  }
  func.func @transform_17(%arg0: i32) -> (i32, i32) {
    %c0_i32 = arith.constant 0 : i32
    %c0_i32_0 = arith.constant 0 : i32
    %c0_i32_1 = arith.constant 0 : i32
    return %c0_i32, %c0_i32_0 : i32, i32
  }
  func.func @transform_18(%arg0: i32) -> (i32, i32) {
    %c0_i32 = arith.constant 0 : i32
    %c0_i32_0 = arith.constant 0 : i32
    %c0_i32_1 = arith.constant 0 : i32
    return %c0_i32, %c0_i32_0 : i32, i32
  }
  func.func @transform_19(%arg0: i32) -> (i32, i32) {
    %c0_i32 = arith.constant 0 : i32
    %c0_i32_0 = arith.constant 0 : i32
    %c0_i32_1 = arith.constant 0 : i32
    return %c0_i32, %c0_i32_0 : i32, i32
  }
  func.func @transform_20(%arg0: i32) -> (i32, i32) {
    %c0_i32 = arith.constant 0 : i32
    %c0_i32_0 = arith.constant 0 : i32
    %c0_i32_1 = arith.constant 0 : i32
    return %c0_i32, %c0_i32_0 : i32, i32
  }
  func.func @transform_21(%arg0: i32) -> (i32, i32) {
    %c0_i32 = arith.constant 0 : i32
    %c0_i32_0 = arith.constant 0 : i32
    %c0_i32_1 = arith.constant 0 : i32
    return %c0_i32, %c0_i32_0 : i32, i32
  }
  func.func @transform_22(%arg0: i32) -> (i32, i32) {
    %c0_i32 = arith.constant 0 : i32
    %c0_i32_0 = arith.constant 0 : i32
    %c0_i32_1 = arith.constant 0 : i32
    return %c0_i32, %c0_i32_0 : i32, i32
  }
  func.func @transform_23(%arg0: i32) -> (i32, i32) {
    %c0_i32 = arith.constant 0 : i32
    %c0_i32_0 = arith.constant 0 : i32
    %c0_i32_1 = arith.constant 0 : i32
    return %c0_i32, %c0_i32_0 : i32, i32
  }
  func.func @transform_24(%arg0: i32) -> (i32, i32) {
    %c0_i32 = arith.constant 0 : i32
    %c0_i32_0 = arith.constant 0 : i32
    %c0_i32_1 = arith.constant 0 : i32
    return %c0_i32, %c0_i32_0 : i32, i32
  }
  func.func @transform_25(%arg0: i32) -> (i32, i32) {
    %c0_i32 = arith.constant 0 : i32
    %c0_i32_0 = arith.constant 0 : i32
    return %arg0, %c0_i32 : i32, i32
  }
}

</mosaic_0001>

<llo_original>
// kernel: my_entity_encoder.1
$region0: #{my_entity_encoder.1}
  #allocation0 [shape = 'u32[]', space=smem, size = 0x4, offset = 0x4, fixed_abs, tag = 'smem constant byte address 0x4 - core index']
  #allocation1 [shape = 'u32[144,128]{1,0:T(1,128)}', space=vmem, size = 0x12000, scoped, tag = 'internal scratch']
  #allocation2 [shape = 'f32[8,8,32]{2,1,0:T(8,128)}', space=vmem, size = 0x8000, scoped, tag = 'scratch operand']
  %s0 = inlined_call_operand.vmem [shape: f32[16,32], index: 0, kind: input, shape index: {}]
  %s1 = inlined_call_operand.vmem [shape: f32[16,32], index: 1, kind: input, shape index: {}]
  %s2 = inlined_call_operand.vmem [shape: f32[112,64], index: 2, kind: input, shape index: {}]
  %s3 = inlined_call_operand.vmem [shape: f32[16,8], index: 3, kind: input, shape index: {}]
  %s4 = inlined_call_operand.vmem [shape: f32[16,8], index: 4, kind: input, shape index: {}]
  %s5 = inlined_call_operand.vmem [shape: f32[32,32], index: 5, kind: input, shape index: {}]
  %s6 = inlined_call_operand.vmem [shape: f32[1,32], index: 6, kind: input, shape index: {}]
  %s7 = inlined_call_operand.vmem [shape: bf16[64,32], index: 7, kind: input, shape index: {}]
  %s8 = inlined_call_operand.vmem [shape: f32[1,32], index: 8, kind: input, shape index: {}]
  %s9 = inlined_call_operand.vmem [shape: bf16[32,96], index: 9, kind: input, shape index: {}]
  %s10 = inlined_call_operand.vmem [shape: f32[1,96], index: 10, kind: input, shape index: {}]
  %s11 = inlined_call_operand.vmem [shape: bf16[32,32], index: 11, kind: input, shape index: {}]
  %s12 = inlined_call_operand.vmem [shape: f32[1,32], index: 12, kind: input, shape index: {}]
  %s13 = inlined_call_operand.vmem [shape: f32[1,32], index: 13, kind: input, shape index: {}]
  %s14 = inlined_call_operand.vmem [shape: f32[1,32], index: 14, kind: input, shape index: {}]
  %s15 = inlined_call_operand.vmem [shape: bf16[32,128], index: 15, kind: input, shape index: {}]
  %s16 = inlined_call_operand.vmem [shape: f32[1,128], index: 16, kind: input, shape index: {}]
  %s17 = inlined_call_operand.vmem [shape: bf16[128,32], index: 17, kind: input, shape index: {}]
  %s18 = inlined_call_operand.vmem [shape: f32[1,32], index: 18, kind: input, shape index: {}]
  %s19 = inlined_call_operand.vmem [shape: f32[1,32], index: 19, kind: input, shape index: {}]
  %s20 = inlined_call_operand.vmem [shape: f32[1,32], index: 20, kind: input, shape index: {}]
  %s21 = inlined_call_operand.vmem [shape: f32[32,32], index: 21, kind: input, shape index: {}]
  %s22 = inlined_call_operand.vmem [shape: f32[1,32], index: 22, kind: input, shape index: {}]
  %s23 = inlined_call_operand.vmem [shape: f32[32,32], index: 23, kind: input, shape index: {}]
  %s24 = inlined_call_operand.vmem [shape: f32[1,32], index: 24, kind: input, shape index: {}]
  %s25 = inlined_call_operand.vmem [shape: f32[16,32], index: 25, kind: output, shape index: {}]
  %s26 = sld [smem:[#allocation0]]
  $region133: #{my_entity_encoder.1} parent=0
    _
  %s28 = ssub.s32 1, %s26
  %s29 = scalar_select 0, %s28, %s26
  loop: start=0, step=1, limit=4
  $region2: #{my_entity_encoder.1} parent=0 // loop_pre_header
    _
  $region3: #{my_entity_encoder.1} parent=0 // loop_header
    %s31 = sphi 0, %s35
    %p32 = scmp.ge.s32.totalorder %s31, 4
    %s41 = sphi 0, %s43
    %s44 = sphi 0, %s41
    %s45 = sphi 0, %s44
    %s61 = sphi 0, %s45
    %s67 = sphi 0, %s69
    %s70 = sphi 0, %s67
    %s71 = sphi 0, %s70
    %s87 = sphi 0, %s71
    %s93 = sphi 0, %s95
    %s96 = sphi 0, %s93
    %s97 = sphi 0, %s96
    %s113 = sphi 0, %s97
    %s119 = sphi 0, %s121
    %s122 = sphi 0, %s119
    %s123 = sphi 0, %s122
    %s139 = sphi 0, %s123
    %s145 = sphi 0, %s147
    %s148 = sphi 0, %s145
    %s149 = sphi 0, %s148
    %s165 = sphi 0, %s149
    %s169 = sphi 0, %s169
    %s171 = sphi 0, %s169
    %s172 = sphi 0, %s171
    %s186 = sphi 0, %s172
    %s190 = sphi 0, %s190
    %s192 = sphi 0, %s190
    %s193 = sphi 0, %s192
    %s207 = sphi 0, %s193
    %s211 = sphi 0, %s211
    %s213 = sphi 0, %s211
    %s214 = sphi 0, %s213
    %s228 = sphi 0, %s214
    %s232 = sphi 0, %s232
    %s234 = sphi 0, %s232
    %s235 = sphi 0, %s234
    %s249 = sphi 0, %s235
    %s253 = sphi 0, %s253
    %s255 = sphi 0, %s253
    %s256 = sphi 0, %s255
    %s270 = sphi 0, %s256
    %s274 = sphi 0, %s274
    %s276 = sphi 0, %s274
    %s277 = sphi 0, %s276
    %s291 = sphi 0, %s277
    %s295 = sphi 0, %s295
    %s297 = sphi 0, %s295
    %s298 = sphi 0, %s297
    %s312 = sphi 0, %s298
    %s316 = sphi 0, %s316
    %s318 = sphi 0, %s316
    %s319 = sphi 0, %s318
    %s333 = sphi 0, %s319
    %s337 = sphi 0, %s337
    %s339 = sphi 0, %s337
    %s340 = sphi 0, %s339
    %s354 = sphi 0, %s340
    %s358 = sphi 0, %s358
    %s360 = sphi 0, %s358
    %s361 = sphi 0, %s360
    %s375 = sphi 0, %s361
    %s379 = sphi 0, %s379
    %s381 = sphi 0, %s379
    %s382 = sphi 0, %s381
    %s396 = sphi 0, %s382
    %s400 = sphi 0, %s400
    %s402 = sphi 0, %s400
    %s403 = sphi 0, %s402
    %s417 = sphi 0, %s403
    %s421 = sphi 0, %s421
    %s423 = sphi 0, %s421
    %s424 = sphi 0, %s423
    %s438 = sphi 0, %s424
    %s442 = sphi 0, %s442
    %s444 = sphi 0, %s442
    %s445 = sphi 0, %s444
    %s459 = sphi 0, %s445
    %s463 = sphi 0, %s463
    %s465 = sphi 0, %s463
    %s466 = sphi 0, %s465
    %s480 = sphi 0, %s466
    %s484 = sphi 0, %s484
    %s486 = sphi 0, %s484
    %s487 = sphi 0, %s486
    %s501 = sphi 0, %s487
    %s505 = sphi 0, %s505
    %s507 = sphi 0, %s505
    %s508 = sphi 0, %s507
    %s522 = sphi 0, %s508
    %s526 = sphi 0, %s526
    %s528 = sphi 0, %s526
    %s529 = sphi 0, %s528
    %s543 = sphi 0, %s529
    %s547 = sphi 0, %s547
    %s549 = sphi 0, %s547
    %s550 = sphi 0, %s549
    %s564 = sphi 0, %s550
    %s568 = sphi 0, %s568
    %s570 = sphi 0, %s568
    %s571 = sphi 0, %s570
    %s585 = sphi 0, %s571
    %s591 = sphi 0, %s593
    %s594 = sphi 0, %s591
    %s595 = sphi 0, %s594
    %s611 = sphi 0, %s595
  $region4: #{my_entity_encoder.1} parent=0 // loop_header_branch
    %34 = sbr.rel (%p32) target = $region8
  $region5: #{my_entity_encoder.1} parent=0 // loop_body
    %s36 = ssub.s32 %s31, 1
    %s37 = ssub.s32 %s31, 2
    %s38 = sadd.s32 %s31, 1
    %s39 = ssub.s32 %s31, %s38
    %p40 = scmp.eq.s32.totalorder %s39, 0
    %s42 = sadd.s32 %s41, 1
    %s43 = scalar_select %p40, %s41, %s42
    %p46 = pneg %p40
    %p47 = scmp.eq.s32.totalorder %s31, 1
    %p48 = por %p46, %p47
    %p49 = scmp.ne.s32.totalorder %s41, %s44
    %p50 = scmp.eq.s32.totalorder %s31, 0
    %p51 = por %p49, %p50
    %p52 = scmp.ne.s32.totalorder %s41, %s44
    %p53 = scmp.eq.s32.totalorder %s36, 1
    %p54 = por %p52, %p53
    %p55 = scmp.ne.s32.totalorder %s44, %s45
    %p56 = scmp.eq.s32.totalorder %s36, 0
    %p57 = por %p55, %p56
    %p58 = scmp.ne.s32.totalorder %s44, %s45
    %p59 = scmp.eq.s32.totalorder %s37, 1
    %p60 = por %p58, %p59
    %p62 = scmp.ne.s32.totalorder %s45, %s61
    %p63 = scmp.eq.s32.totalorder %s37, 0
    %p64 = por %p62, %p63
    %s65 = ssub.s32 %s31, %s38
    %p66 = scmp.eq.s32.totalorder %s65, 0
    %s68 = sadd.s32 %s67, 1
    %s69 = scalar_select %p66, %s67, %s68
    %p72 = pneg %p66
    %p73 = scmp.eq.s32.totalorder %s31, 1
    %p74 = por %p72, %p73
    %p75 = scmp.ne.s32.totalorder %s67, %s70
    %p76 = scmp.eq.s32.totalorder %s31, 0
    %p77 = por %p75, %p76
    %p78 = scmp.ne.s32.totalorder %s67, %s70
    %p79 = scmp.eq.s32.totalorder %s36, 1
    %p80 = por %p78, %p79
    %p81 = scmp.ne.s32.totalorder %s70, %s71
    %p82 = scmp.eq.s32.totalorder %s36, 0
    %p83 = por %p81, %p82
    %p84 = scmp.ne.s32.totalorder %s70, %s71
    %p85 = scmp.eq.s32.totalorder %s37, 1
    %p86 = por %p84, %p85
    %p88 = scmp.ne.s32.totalorder %s71, %s87
    %p89 = scmp.eq.s32.totalorder %s37, 0
    %p90 = por %p88, %p89
    %s91 = ssub.s32 %s31, %s38
    %p92 = scmp.eq.s32.totalorder %s91, 0
    %s94 = sadd.s32 %s93, 1
    %s95 = scalar_select %p92, %s93, %s94
    %p98 = pneg %p92
    %p99 = scmp.eq.s32.totalorder %s31, 1
    %p100 = por %p98, %p99
    %p101 = scmp.ne.s32.totalorder %s93, %s96
    %p102 = scmp.eq.s32.totalorder %s31, 0
    %p103 = por %p101, %p102
    %p104 = scmp.ne.s32.totalorder %s93, %s96
    %p105 = scmp.eq.s32.totalorder %s36, 1
    %p106 = por %p104, %p105
    %p107 = scmp.ne.s32.totalorder %s96, %s97
    %p108 = scmp.eq.s32.totalorder %s36, 0
    %p109 = por %p107, %p108
    %p110 = scmp.ne.s32.totalorder %s96, %s97
    %p111 = scmp.eq.s32.totalorder %s37, 1
    %p112 = por %p110, %p111
    %p114 = scmp.ne.s32.totalorder %s97, %s113
    %p115 = scmp.eq.s32.totalorder %s37, 0
    %p116 = por %p114, %p115
    %s117 = ssub.s32 %s31, %s38
    %p118 = scmp.eq.s32.totalorder %s117, 0
    %s120 = sadd.s32 %s119, 1
    %s121 = scalar_select %p118, %s119, %s120
    %p124 = pneg %p118
    %p125 = scmp.eq.s32.totalorder %s31, 1
    %p126 = por %p124, %p125
    %p127 = scmp.ne.s32.totalorder %s119, %s122
    %p128 = scmp.eq.s32.totalorder %s31, 0
    %p129 = por %p127, %p128
    %p130 = scmp.ne.s32.totalorder %s119, %s122
    %p131 = scmp.eq.s32.totalorder %s36, 1
    %p132 = por %p130, %p131
    %p133 = scmp.ne.s32.totalorder %s122, %s123
    %p134 = scmp.eq.s32.totalorder %s36, 0
    %p135 = por %p133, %p134
    %p136 = scmp.ne.s32.totalorder %s122, %s123
    %p137 = scmp.eq.s32.totalorder %s37, 1
    %p138 = por %p136, %p137
    %p140 = scmp.ne.s32.totalorder %s123, %s139
    %p141 = scmp.eq.s32.totalorder %s37, 0
    %p142 = por %p140, %p141
    %s143 = ssub.s32 %s31, %s38
    %p144 = scmp.eq.s32.totalorder %s143, 0
    %s146 = sadd.s32 %s145, 1
    %s147 = scalar_select %p144, %s145, %s146
    %p150 = pneg %p144
    %p151 = scmp.eq.s32.totalorder %s31, 1
    %p152 = por %p150, %p151
    %p153 = scmp.ne.s32.totalorder %s145, %s148
    %p154 = scmp.eq.s32.totalorder %s31, 0
    %p155 = por %p153, %p154
    %p156 = scmp.ne.s32.totalorder %s145, %s148
    %p157 = scmp.eq.s32.totalorder %s36, 1
    %p158 = por %p156, %p157
    %p159 = scmp.ne.s32.totalorder %s148, %s149
    %p160 = scmp.eq.s32.totalorder %s36, 0
    %p161 = por %p159, %p160
    %p162 = scmp.ne.s32.totalorder %s148, %s149
    %p163 = scmp.eq.s32.totalorder %s37, 1
    %p164 = por %p162, %p163
    %p166 = scmp.ne.s32.totalorder %s149, %s165
    %p167 = scmp.eq.s32.totalorder %s37, 0
    %p168 = por %p166, %p167
    %s170 = sadd.s32 %s169, 1
    %p173 = scmp.eq.s32.totalorder %s31, 1
    %p174 = scmp.ne.s32.totalorder %s169, %s171
    %p175 = scmp.eq.s32.totalorder %s31, 0
    %p176 = por %p174, %p175
    %p177 = scmp.ne.s32.totalorder %s169, %s171
    %p178 = scmp.eq.s32.totalorder %s36, 1
    %p179 = por %p177, %p178
    %p180 = scmp.ne.s32.totalorder %s171, %s172
    %p181 = scmp.eq.s32.totalorder %s36, 0
    %p182 = por %p180, %p181
    %p183 = scmp.ne.s32.totalorder %s171, %s172
    %p184 = scmp.eq.s32.totalorder %s37, 1
    %p185 = por %p183, %p184
    %p187 = scmp.ne.s32.totalorder %s172, %s186
    %p188 = scmp.eq.s32.totalorder %s37, 0
    %p189 = por %p187, %p188
    %s191 = sadd.s32 %s190, 1
    %p194 = scmp.eq.s32.totalorder %s31, 1
    %p195 = scmp.ne.s32.totalorder %s190, %s192
    %p196 = scmp.eq.s32.totalorder %s31, 0
    %p197 = por %p195, %p196
    %p198 = scmp.ne.s32.totalorder %s190, %s192
    %p199 = scmp.eq.s32.totalorder %s36, 1
    %p200 = por %p198, %p199
    %p201 = scmp.ne.s32.totalorder %s192, %s193
    %p202 = scmp.eq.s32.totalorder %s36, 0
    %p203 = por %p201, %p202
    %p204 = scmp.ne.s32.totalorder %s192, %s193
    %p205 = scmp.eq.s32.totalorder %s37, 1
    %p206 = por %p204, %p205
    %p208 = scmp.ne.s32.totalorder %s193, %s207
    %p209 = scmp.eq.s32.totalorder %s37, 0
    %p210 = por %p208, %p209
    %s212 = sadd.s32 %s211, 1
    %p215 = scmp.eq.s32.totalorder %s31, 1
    %p216 = scmp.ne.s32.totalorder %s211, %s213
    %p217 = scmp.eq.s32.totalorder %s31, 0
    %p218 = por %p216, %p217
    %p219 = scmp.ne.s32.totalorder %s211, %s213
    %p220 = scmp.eq.s32.totalorder %s36, 1
    %p221 = por %p219, %p220
    %p222 = scmp.ne.s32.totalorder %s213, %s214
    %p223 = scmp.eq.s32.totalorder %s36, 0
    %p224 = por %p222, %p223
    %p225 = scmp.ne.s32.totalorder %s213, %s214
    %p226 = scmp.eq.s32.totalorder %s37, 1
    %p227 = por %p225, %p226
    %p229 = scmp.ne.s32.totalorder %s214, %s228
    %p230 = scmp.eq.s32.totalorder %s37, 0
    %p231 = por %p229, %p230
    %s233 = sadd.s32 %s232, 1
    %p236 = scmp.eq.s32.totalorder %s31, 1
    %p237 = scmp.ne.s32.totalorder %s232, %s234
    %p238 = scmp.eq.s32.totalorder %s31, 0
    %p239 = por %p237, %p238
    %p240 = scmp.ne.s32.totalorder %s232, %s234
    %p241 = scmp.eq.s32.totalorder %s36, 1
    %p242 = por %p240, %p241
    %p243 = scmp.ne.s32.totalorder %s234, %s235
    %p244 = scmp.eq.s32.totalorder %s36, 0
    %p245 = por %p243, %p244
    %p246 = scmp.ne.s32.totalorder %s234, %s235
    %p247 = scmp.eq.s32.totalorder %s37, 1
    %p248 = por %p246, %p247
    %p250 = scmp.ne.s32.totalorder %s235, %s249
    %p251 = scmp.eq.s32.totalorder %s37, 0
    %p252 = por %p250, %p251
    %s254 = sadd.s32 %s253, 1
    %p257 = scmp.eq.s32.totalorder %s31, 1
    %p258 = scmp.ne.s32.totalorder %s253, %s255
    %p259 = scmp.eq.s32.totalorder %s31, 0
    %p260 = por %p258, %p259
    %p261 = scmp.ne.s32.totalorder %s253, %s255
    %p262 = scmp.eq.s32.totalorder %s36, 1
    %p263 = por %p261, %p262
    %p264 = scmp.ne.s32.totalorder %s255, %s256
    %p265 = scmp.eq.s32.totalorder %s36, 0
    %p266 = por %p264, %p265
    %p267 = scmp.ne.s32.totalorder %s255, %s256
    %p268 = scmp.eq.s32.totalorder %s37, 1
    %p269 = por %p267, %p268
    %p271 = scmp.ne.s32.totalorder %s256, %s270
    %p272 = scmp.eq.s32.totalorder %s37, 0
    %p273 = por %p271, %p272
    %s275 = sadd.s32 %s274, 1
    %p278 = scmp.eq.s32.totalorder %s31, 1
    %p279 = scmp.ne.s32.totalorder %s274, %s276
    %p280 = scmp.eq.s32.totalorder %s31, 0
    %p281 = por %p279, %p280
    %p282 = scmp.ne.s32.totalorder %s274, %s276
    %p283 = scmp.eq.s32.totalorder %s36, 1
    %p284 = por %p282, %p283
    %p285 = scmp.ne.s32.totalorder %s276, %s277
    %p286 = scmp.eq.s32.totalorder %s36, 0
    %p287 = por %p285, %p286
    %p288 = scmp.ne.s32.totalorder %s276, %s277
    %p289 = scmp.eq.s32.totalorder %s37, 1
    %p290 = por %p288, %p289
    %p292 = scmp.ne.s32.totalorder %s277, %s291
    %p293 = scmp.eq.s32.totalorder %s37, 0
    %p294 = por %p292, %p293
    %s296 = sadd.s32 %s295, 1
    %p299 = scmp.eq.s32.totalorder %s31, 1
    %p300 = scmp.ne.s32.totalorder %s295, %s297
    %p301 = scmp.eq.s32.totalorder %s31, 0
    %p302 = por %p300, %p301
    %p303 = scmp.ne.s32.totalorder %s295, %s297
    %p304 = scmp.eq.s32.totalorder %s36, 1
    %p305 = por %p303, %p304
    %p306 = scmp.ne.s32.totalorder %s297, %s298
    %p307 = scmp.eq.s32.totalorder %s36, 0
    %p308 = por %p306, %p307
    %p309 = scmp.ne.s32.totalorder %s297, %s298
    %p310 = scmp.eq.s32.totalorder %s37, 1
    %p311 = por %p309, %p310
    %p313 = scmp.ne.s32.totalorder %s298, %s312
    %p314 = scmp.eq.s32.totalorder %s37, 0
    %p315 = por %p313, %p314
    %s317 = sadd.s32 %s316, 1
    %p320 = scmp.eq.s32.totalorder %s31, 1
    %p321 = scmp.ne.s32.totalorder %s316, %s318
    %p322 = scmp.eq.s32.totalorder %s31, 0
    %p323 = por %p321, %p322
    %p324 = scmp.ne.s32.totalorder %s316, %s318
    %p325 = scmp.eq.s32.totalorder %s36, 1
    %p326 = por %p324, %p325
    %p327 = scmp.ne.s32.totalorder %s318, %s319
    %p328 = scmp.eq.s32.totalorder %s36, 0
    %p329 = por %p327, %p328
    %p330 = scmp.ne.s32.totalorder %s318, %s319
    %p331 = scmp.eq.s32.totalorder %s37, 1
    %p332 = por %p330, %p331
    %p334 = scmp.ne.s32.totalorder %s319, %s333
    %p335 = scmp.eq.s32.totalorder %s37, 0
    %p336 = por %p334, %p335
    %s338 = sadd.s32 %s337, 1
    %p341 = scmp.eq.s32.totalorder %s31, 1
    %p342 = scmp.ne.s32.totalorder %s337, %s339
    %p343 = scmp.eq.s32.totalorder %s31, 0
    %p344 = por %p342, %p343
    %p345 = scmp.ne.s32.totalorder %s337, %s339
    %p346 = scmp.eq.s32.totalorder %s36, 1
    %p347 = por %p345, %p346
    %p348 = scmp.ne.s32.totalorder %s339, %s340
    %p349 = scmp.eq.s32.totalorder %s36, 0
    %p350 = por %p348, %p349
    %p351 = scmp.ne.s32.totalorder %s339, %s340
    %p352 = scmp.eq.s32.totalorder %s37, 1
    %p353 = por %p351, %p352
    %p355 = scmp.ne.s32.totalorder %s340, %s354
    %p356 = scmp.eq.s32.totalorder %s37, 0
    %p357 = por %p355, %p356
    %s359 = sadd.s32 %s358, 1
    %p362 = scmp.eq.s32.totalorder %s31, 1
    %p363 = scmp.ne.s32.totalorder %s358, %s360
    %p364 = scmp.eq.s32.totalorder %s31, 0
    %p365 = por %p363, %p364
    %p366 = scmp.ne.s32.totalorder %s358, %s360
    %p367 = scmp.eq.s32.totalorder %s36, 1
    %p368 = por %p366, %p367
    %p369 = scmp.ne.s32.totalorder %s360, %s361
    %p370 = scmp.eq.s32.totalorder %s36, 0
    %p371 = por %p369, %p370
    %p372 = scmp.ne.s32.totalorder %s360, %s361
    %p373 = scmp.eq.s32.totalorder %s37, 1
    %p374 = por %p372, %p373
    %p376 = scmp.ne.s32.totalorder %s361, %s375
    %p377 = scmp.eq.s32.totalorder %s37, 0
    %p378 = por %p376, %p377
    %s380 = sadd.s32 %s379, 1
    %p383 = scmp.eq.s32.totalorder %s31, 1
    %p384 = scmp.ne.s32.totalorder %s379, %s381
    %p385 = scmp.eq.s32.totalorder %s31, 0
    %p386 = por %p384, %p385
    %p387 = scmp.ne.s32.totalorder %s379, %s381
    %p388 = scmp.eq.s32.totalorder %s36, 1
    %p389 = por %p387, %p388
    %p390 = scmp.ne.s32.totalorder %s381, %s382
    %p391 = scmp.eq.s32.totalorder %s36, 0
    %p392 = por %p390, %p391
    %p393 = scmp.ne.s32.totalorder %s381, %s382
    %p394 = scmp.eq.s32.totalorder %s37, 1
    %p395 = por %p393, %p394
    %p397 = scmp.ne.s32.totalorder %s382, %s396
    %p398 = scmp.eq.s32.totalorder %s37, 0
    %p399 = por %p397, %p398
    %s401 = sadd.s32 %s400, 1
    %p404 = scmp.eq.s32.totalorder %s31, 1
    %p405 = scmp.ne.s32.totalorder %s400, %s402
    %p406 = scmp.eq.s32.totalorder %s31, 0
    %p407 = por %p405, %p406
    %p408 = scmp.ne.s32.totalorder %s400, %s402
    %p409 = scmp.eq.s32.totalorder %s36, 1
    %p410 = por %p408, %p409
    %p411 = scmp.ne.s32.totalorder %s402, %s403
    %p412 = scmp.eq.s32.totalorder %s36, 0
    %p413 = por %p411, %p412
    %p414 = scmp.ne.s32.totalorder %s402, %s403
    %p415 = scmp.eq.s32.totalorder %s37, 1
    %p416 = por %p414, %p415
    %p418 = scmp.ne.s32.totalorder %s403, %s417
    %p419 = scmp.eq.s32.totalorder %s37, 0
    %p420 = por %p418, %p419
    %s422 = sadd.s32 %s421, 1
    %p425 = scmp.eq.s32.totalorder %s31, 1
    %p426 = scmp.ne.s32.totalorder %s421, %s423
    %p427 = scmp.eq.s32.totalorder %s31, 0
    %p428 = por %p426, %p427
    %p429 = scmp.ne.s32.totalorder %s421, %s423
    %p430 = scmp.eq.s32.totalorder %s36, 1
    %p431 = por %p429, %p430
    %p432 = scmp.ne.s32.totalorder %s423, %s424
    %p433 = scmp.eq.s32.totalorder %s36, 0
    %p434 = por %p432, %p433
    %p435 = scmp.ne.s32.totalorder %s423, %s424
    %p436 = scmp.eq.s32.totalorder %s37, 1
    %p437 = por %p435, %p436
    %p439 = scmp.ne.s32.totalorder %s424, %s438
    %p440 = scmp.eq.s32.totalorder %s37, 0
    %p441 = por %p439, %p440
    %s443 = sadd.s32 %s442, 1
    %p446 = scmp.eq.s32.totalorder %s31, 1
    %p447 = scmp.ne.s32.totalorder %s442, %s444
    %p448 = scmp.eq.s32.totalorder %s31, 0
    %p449 = por %p447, %p448
    %p450 = scmp.ne.s32.totalorder %s442, %s444
    %p451 = scmp.eq.s32.totalorder %s36, 1
    %p452 = por %p450, %p451
    %p453 = scmp.ne.s32.totalorder %s444, %s445
    %p454 = scmp.eq.s32.totalorder %s36, 0
    %p455 = por %p453, %p454
    %p456 = scmp.ne.s32.totalorder %s444, %s445
    %p457 = scmp.eq.s32.totalorder %s37, 1
    %p458 = por %p456, %p457
    %p460 = scmp.ne.s32.totalorder %s445, %s459
    %p461 = scmp.eq.s32.totalorder %s37, 0
    %p462 = por %p460, %p461
    %s464 = sadd.s32 %s463, 1
    %p467 = scmp.eq.s32.totalorder %s31, 1
    %p468 = scmp.ne.s32.totalorder %s463, %s465
    %p469 = scmp.eq.s32.totalorder %s31, 0
    %p470 = por %p468, %p469
    %p471 = scmp.ne.s32.totalorder %s463, %s465
    %p472 = scmp.eq.s32.totalorder %s36, 1
    %p473 = por %p471, %p472
    %p474 = scmp.ne.s32.totalorder %s465, %s466
    %p475 = scmp.eq.s32.totalorder %s36, 0
    %p476 = por %p474, %p475
    %p477 = scmp.ne.s32.totalorder %s465, %s466
    %p478 = scmp.eq.s32.totalorder %s37, 1
    %p479 = por %p477, %p478
    %p481 = scmp.ne.s32.totalorder %s466, %s480
    %p482 = scmp.eq.s32.totalorder %s37, 0
    %p483 = por %p481, %p482
    %s485 = sadd.s32 %s484, 1
    %p488 = scmp.eq.s32.totalorder %s31, 1
    %p489 = scmp.ne.s32.totalorder %s484, %s486
    %p490 = scmp.eq.s32.totalorder %s31, 0
    %p491 = por %p489, %p490
    %p492 = scmp.ne.s32.totalorder %s484, %s486
    %p493 = scmp.eq.s32.totalorder %s36, 1
    %p494 = por %p492, %p493
    %p495 = scmp.ne.s32.totalorder %s486, %s487
    %p496 = scmp.eq.s32.totalorder %s36, 0
    %p497 = por %p495, %p496
    %p498 = scmp.ne.s32.totalorder %s486, %s487
    %p499 = scmp.eq.s32.totalorder %s37, 1
    %p500 = por %p498, %p499
    %p502 = scmp.ne.s32.totalorder %s487, %s501
    %p503 = scmp.eq.s32.totalorder %s37, 0
    %p504 = por %p502, %p503
    %s506 = sadd.s32 %s505, 1
    %p509 = scmp.eq.s32.totalorder %s31, 1
    %p510 = scmp.ne.s32.totalorder %s505, %s507
    %p511 = scmp.eq.s32.totalorder %s31, 0
    %p512 = por %p510, %p511
    %p513 = scmp.ne.s32.totalorder %s505, %s507
    %p514 = scmp.eq.s32.totalorder %s36, 1
    %p515 = por %p513, %p514
    %p516 = scmp.ne.s32.totalorder %s507, %s508
    %p517 = scmp.eq.s32.totalorder %s36, 0
    %p518 = por %p516, %p517
    %p519 = scmp.ne.s32.totalorder %s507, %s508
    %p520 = scmp.eq.s32.totalorder %s37, 1
    %p521 = por %p519, %p520
    %p523 = scmp.ne.s32.totalorder %s508, %s522
    %p524 = scmp.eq.s32.totalorder %s37, 0
    %p525 = por %p523, %p524
    %s527 = sadd.s32 %s526, 1
    %p530 = scmp.eq.s32.totalorder %s31, 1
    %p531 = scmp.ne.s32.totalorder %s526, %s528
    %p532 = scmp.eq.s32.totalorder %s31, 0
    %p533 = por %p531, %p532
    %p534 = scmp.ne.s32.totalorder %s526, %s528
    %p535 = scmp.eq.s32.totalorder %s36, 1
    %p536 = por %p534, %p535
    %p537 = scmp.ne.s32.totalorder %s528, %s529
    %p538 = scmp.eq.s32.totalorder %s36, 0
    %p539 = por %p537, %p538
    %p540 = scmp.ne.s32.totalorder %s528, %s529
    %p541 = scmp.eq.s32.totalorder %s37, 1
    %p542 = por %p540, %p541
    %p544 = scmp.ne.s32.totalorder %s529, %s543
    %p545 = scmp.eq.s32.totalorder %s37, 0
    %p546 = por %p544, %p545
    %s548 = sadd.s32 %s547, 1
    %p551 = scmp.eq.s32.totalorder %s31, 1
    %p552 = scmp.ne.s32.totalorder %s547, %s549
    %p553 = scmp.eq.s32.totalorder %s31, 0
    %p554 = por %p552, %p553
    %p555 = scmp.ne.s32.totalorder %s547, %s549
    %p556 = scmp.eq.s32.totalorder %s36, 1
    %p557 = por %p555, %p556
    %p558 = scmp.ne.s32.totalorder %s549, %s550
    %p559 = scmp.eq.s32.totalorder %s36, 0
    %p560 = por %p558, %p559
    %p561 = scmp.ne.s32.totalorder %s549, %s550
    %p562 = scmp.eq.s32.totalorder %s37, 1
    %p563 = por %p561, %p562
    %p565 = scmp.ne.s32.totalorder %s550, %s564
    %p566 = scmp.eq.s32.totalorder %s37, 0
    %p567 = por %p565, %p566
    %s569 = sadd.s32 %s568, 1
    %p572 = scmp.eq.s32.totalorder %s31, 1
    %p573 = scmp.ne.s32.totalorder %s568, %s570
    %p574 = scmp.eq.s32.totalorder %s31, 0
    %p575 = por %p573, %p574
    %p576 = scmp.ne.s32.totalorder %s568, %s570
    %p577 = scmp.eq.s32.totalorder %s36, 1
    %p578 = por %p576, %p577
    %p579 = scmp.ne.s32.totalorder %s570, %s571
    %p580 = scmp.eq.s32.totalorder %s36, 0
    %p581 = por %p579, %p580
    %p582 = scmp.ne.s32.totalorder %s570, %s571
    %p583 = scmp.eq.s32.totalorder %s37, 1
    %p584 = por %p582, %p583
    %p586 = scmp.ne.s32.totalorder %s571, %s585
    %p587 = scmp.eq.s32.totalorder %s37, 0
    %p588 = por %p586, %p587
    %s589 = ssub.s32 %s31, %s38
    %p590 = scmp.eq.s32.totalorder %s589, 0
    %s592 = sadd.s32 %s591, 1
    %s593 = scalar_select %p590, %s591, %s592
    %p596 = pneg %p590
    %p597 = scmp.eq.s32.totalorder %s31, 1
    %p598 = por %p596, %p597
    %p599 = scmp.ne.s32.totalorder %s591, %s594
    %p600 = scmp.eq.s32.totalorder %s31, 0
    %p601 = por %p599, %p600
    %p602 = scmp.ne.s32.totalorder %s591, %s594
    %p603 = scmp.eq.s32.totalorder %s36, 1
    %p604 = por %p602, %p603
    %p605 = scmp.ne.s32.totalorder %s594, %s595
    %p606 = scmp.eq.s32.totalorder %s36, 0
    %p607 = por %p605, %p606
    %p608 = scmp.ne.s32.totalorder %s594, %s595
    %p609 = scmp.eq.s32.totalorder %s37, 1
    %p610 = por %p608, %p609
    %p612 = scmp.ne.s32.totalorder %s595, %s611
    %p613 = scmp.eq.s32.totalorder %s37, 0
    %p614 = por %p612, %p613
    %p615 = scmp.le.s32.totalorder 1, %s31
    %p616 = scmp.lt.s32.totalorder %s31, 3
    %p617 = pnand %p615, %p616
    %p618 = pneg %p617
    // Predicated region
    $region9: #{my_entity_encoder.1} parent=5 // pred_check
      _
    $region10: #{my_entity_encoder.1} parent=5 // pred_check_branch
      %620 = sbr.rel (%p617) target = $region12
    $region11: #{my_entity_encoder.1} parent=5 // pred_region
      %s621 = ssub.s32 %s31, 1
      // Predicated region
      $region13: #{my_entity_encoder.1} parent=11 // pred_check
        %p622 = pneg %p182
      $region14: #{my_entity_encoder.1} parent=11 // pred_check_branch
        %624 = sbr.rel (%p622) target = $region16
      $region15: #{my_entity_encoder.1} parent=11 // pred_region
        _
      $region16: #{my_entity_encoder.1} parent=11 // pred_fallthru
        _
      // Predicated region
      $region17: #{my_entity_encoder.1} parent=11 // pred_check
        %p625 = pneg %p203
      $region18: #{my_entity_encoder.1} parent=11 // pred_check_branch
        %627 = sbr.rel (%p625) target = $region20
      $region19: #{my_entity_encoder.1} parent=11 // pred_region
        _
      $region20: #{my_entity_encoder.1} parent=11 // pred_fallthru
        _
      // Predicated region
      $region21: #{my_entity_encoder.1} parent=11 // pred_check
        %p628 = pneg %p224
      $region22: #{my_entity_encoder.1} parent=11 // pred_check_branch
        %630 = sbr.rel (%p628) target = $region24
      $region23: #{my_entity_encoder.1} parent=11 // pred_region
        _
      $region24: #{my_entity_encoder.1} parent=11 // pred_fallthru
        _
      // Predicated region
      $region25: #{my_entity_encoder.1} parent=11 // pred_check
        %p631 = pneg %p245
      $region26: #{my_entity_encoder.1} parent=11 // pred_check_branch
        %633 = sbr.rel (%p631) target = $region28
      $region27: #{my_entity_encoder.1} parent=11 // pred_region
        _
      $region28: #{my_entity_encoder.1} parent=11 // pred_fallthru
        _
      // Predicated region
      $region29: #{my_entity_encoder.1} parent=11 // pred_check
        %p634 = pneg %p266
      $region30: #{my_entity_encoder.1} parent=11 // pred_check_branch
        %636 = sbr.rel (%p634) target = $region32
      $region31: #{my_entity_encoder.1} parent=11 // pred_region
        _
      $region32: #{my_entity_encoder.1} parent=11 // pred_fallthru
        _
      // Predicated region
      $region33: #{my_entity_encoder.1} parent=11 // pred_check
        %p637 = pneg %p287
      $region34: #{my_entity_encoder.1} parent=11 // pred_check_branch
        %639 = sbr.rel (%p637) target = $region36
      $region35: #{my_entity_encoder.1} parent=11 // pred_region
        _
      $region36: #{my_entity_encoder.1} parent=11 // pred_fallthru
        _
      // Predicated region
      $region37: #{my_entity_encoder.1} parent=11 // pred_check
        %p640 = pneg %p308
      $region38: #{my_entity_encoder.1} parent=11 // pred_check_branch
        %642 = sbr.rel (%p640) target = $region40
      $region39: #{my_entity_encoder.1} parent=11 // pred_region
        _
      $region40: #{my_entity_encoder.1} parent=11 // pred_fallthru
        _
      // Predicated region
      $region41: #{my_entity_encoder.1} parent=11 // pred_check
        %p643 = pneg %p329
      $region42: #{my_entity_encoder.1} parent=11 // pred_check_branch
        %645 = sbr.rel (%p643) target = $region44
      $region43: #{my_entity_encoder.1} parent=11 // pred_region
        _
      $region44: #{my_entity_encoder.1} parent=11 // pred_fallthru
        _
      // Predicated region
      $region45: #{my_entity_encoder.1} parent=11 // pred_check
        %p646 = pneg %p350
      $region46: #{my_entity_encoder.1} parent=11 // pred_check_branch
        %648 = sbr.rel (%p646) target = $region48
      $region47: #{my_entity_encoder.1} parent=11 // pred_region
        _
      $region48: #{my_entity_encoder.1} parent=11 // pred_fallthru
        _
      // Predicated region
      $region49: #{my_entity_encoder.1} parent=11 // pred_check
        %p649 = pneg %p371
      $region50: #{my_entity_encoder.1} parent=11 // pred_check_branch
        %651 = sbr.rel (%p649) target = $region52
      $region51: #{my_entity_encoder.1} parent=11 // pred_region
        _
      $region52: #{my_entity_encoder.1} parent=11 // pred_fallthru
        _
      // Predicated region
      $region53: #{my_entity_encoder.1} parent=11 // pred_check
        %p652 = pneg %p392
      $region54: #{my_entity_encoder.1} parent=11 // pred_check_branch
        %654 = sbr.rel (%p652) target = $region56
      $region55: #{my_entity_encoder.1} parent=11 // pred_region
        _
      $region56: #{my_entity_encoder.1} parent=11 // pred_fallthru
        _
      // Predicated region
      $region57: #{my_entity_encoder.1} parent=11 // pred_check
        %p655 = pneg %p413
      $region58: #{my_entity_encoder.1} parent=11 // pred_check_branch
        %657 = sbr.rel (%p655) target = $region60
      $region59: #{my_entity_encoder.1} parent=11 // pred_region
        _
      $region60: #{my_entity_encoder.1} parent=11 // pred_fallthru
        _
      // Predicated region
      $region61: #{my_entity_encoder.1} parent=11 // pred_check
        %p658 = pneg %p434
      $region62: #{my_entity_encoder.1} parent=11 // pred_check_branch
        %660 = sbr.rel (%p658) target = $region64
      $region63: #{my_entity_encoder.1} parent=11 // pred_region
        _
      $region64: #{my_entity_encoder.1} parent=11 // pred_fallthru
        _
      // Predicated region
      $region65: #{my_entity_encoder.1} parent=11 // pred_check
        %p661 = pneg %p455
      $region66: #{my_entity_encoder.1} parent=11 // pred_check_branch
        %663 = sbr.rel (%p661) target = $region68
      $region67: #{my_entity_encoder.1} parent=11 // pred_region
        _
      $region68: #{my_entity_encoder.1} parent=11 // pred_fallthru
        _
      // Predicated region
      $region69: #{my_entity_encoder.1} parent=11 // pred_check
        %p664 = pneg %p476
      $region70: #{my_entity_encoder.1} parent=11 // pred_check_branch
        %666 = sbr.rel (%p664) target = $region72
      $region71: #{my_entity_encoder.1} parent=11 // pred_region
        _
      $region72: #{my_entity_encoder.1} parent=11 // pred_fallthru
        _
      // Predicated region
      $region73: #{my_entity_encoder.1} parent=11 // pred_check
        %p667 = pneg %p497
      $region74: #{my_entity_encoder.1} parent=11 // pred_check_branch
        %669 = sbr.rel (%p667) target = $region76
      $region75: #{my_entity_encoder.1} parent=11 // pred_region
        _
      $region76: #{my_entity_encoder.1} parent=11 // pred_fallthru
        _
      // Predicated region
      $region77: #{my_entity_encoder.1} parent=11 // pred_check
        %p670 = pneg %p518
      $region78: #{my_entity_encoder.1} parent=11 // pred_check_branch
        %672 = sbr.rel (%p670) target = $region80
      $region79: #{my_entity_encoder.1} parent=11 // pred_region
        _
      $region80: #{my_entity_encoder.1} parent=11 // pred_fallthru
        _
      // Predicated region
      $region81: #{my_entity_encoder.1} parent=11 // pred_check
        %p673 = pneg %p539
      $region82: #{my_entity_encoder.1} parent=11 // pred_check_branch
        %675 = sbr.rel (%p673) target = $region84
      $region83: #{my_entity_encoder.1} parent=11 // pred_region
        _
      $region84: #{my_entity_encoder.1} parent=11 // pred_fallthru
        _
      // Predicated region
      $region85: #{my_entity_encoder.1} parent=11 // pred_check
        %p676 = pneg %p560
      $region86: #{my_entity_encoder.1} parent=11 // pred_check_branch
        %678 = sbr.rel (%p676) target = $region88
      $region87: #{my_entity_encoder.1} parent=11 // pred_region
        _
      $region88: #{my_entity_encoder.1} parent=11 // pred_fallthru
        _
      // Predicated region
      $region89: #{my_entity_encoder.1} parent=11 // pred_check
        %p679 = pneg %p581
      $region90: #{my_entity_encoder.1} parent=11 // pred_check_branch
        %681 = sbr.rel (%p679) target = $region92
      $region91: #{my_entity_encoder.1} parent=11 // pred_region
        _
      $region92: #{my_entity_encoder.1} parent=11 // pred_fallthru
        _
    $region12: #{my_entity_encoder.1} parent=5 // pred_fallthru
      _
    %p682 = scmp.lt.s32.totalorder %s31, 2
    // Predicated region
    $region93: #{my_entity_encoder.1} parent=5 // pred_check
      %p683 = pneg %p682
    $region94: #{my_entity_encoder.1} parent=5 // pred_check_branch
      %685 = sbr.rel (%p683) target = $region96
    $region95: #{my_entity_encoder.1} parent=5 // pred_region
      // Predicated region
      $region97: #{my_entity_encoder.1} parent=95 // pred_check
        %p686 = pneg %p51
      $region98: #{my_entity_encoder.1} parent=95 // pred_check_branch
        %688 = sbr.rel (%p686) target = $region100
      $region99: #{my_entity_encoder.1} parent=95 // pred_region
        %p689 = scmp.lt.s32.totalorder %s31, 1
        %s690 = scalar_select %p689, %s31, 1
        %s691 = smul.addr %s690, 8
        %s692 = scalar_lea.vmem %s0, %s691
      $region100: #{my_entity_encoder.1} parent=95 // pred_fallthru
        _
      // Predicated region
      $region101: #{my_entity_encoder.1} parent=95 // pred_check
        %p693 = pneg %p77
      $region102: #{my_entity_encoder.1} parent=95 // pred_check_branch
        %695 = sbr.rel (%p693) target = $region104
      $region103: #{my_entity_encoder.1} parent=95 // pred_region
        %p696 = scmp.lt.s32.totalorder %s31, 1
        %s697 = scalar_select %p696, %s31, 1
        %s698 = smul.addr %s697, 8
        %s699 = scalar_lea.vmem %s1, %s698
      $region104: #{my_entity_encoder.1} parent=95 // pred_fallthru
        _
      // Predicated region
      $region105: #{my_entity_encoder.1} parent=95 // pred_check
        %p700 = pneg %p103
      $region106: #{my_entity_encoder.1} parent=95 // pred_check_branch
        %702 = sbr.rel (%p700) target = $region108
      $region107: #{my_entity_encoder.1} parent=95 // pred_region
        %s703 = smul.u32 7, %s31
        %p704 = scmp.lt.s32.totalorder %s703, 13
        %s705 = scalar_select %p704, %s703, 13
        %s706 = smul.addr %s705, 8
        %s707 = scalar_lea.vmem %s2, %s706
        %s708 = smul.u32 7, %s31
      $region108: #{my_entity_encoder.1} parent=95 // pred_fallthru
        _
      // Predicated region
      $region109: #{my_entity_encoder.1} parent=95 // pred_check
        %p709 = pneg %p129
      $region110: #{my_entity_encoder.1} parent=95 // pred_check_branch
        %711 = sbr.rel (%p709) target = $region112
      $region111: #{my_entity_encoder.1} parent=95 // pred_region
        %p712 = scmp.lt.s32.totalorder %s31, 1
        %s713 = scalar_select %p712, %s31, 1
        %s714 = smul.addr %s713, 8
        %s715 = scalar_lea.vmem %s3, %s714
      $region112: #{my_entity_encoder.1} parent=95 // pred_fallthru
        _
      // Predicated region
      $region113: #{my_entity_encoder.1} parent=95 // pred_check
        %p716 = pneg %p155
      $region114: #{my_entity_encoder.1} parent=95 // pred_check_branch
        %718 = sbr.rel (%p716) target = $region116
      $region115: #{my_entity_encoder.1} parent=95 // pred_region
        %p719 = scmp.lt.s32.totalorder %s31, 1
        %s720 = scalar_select %p719, %s31, 1
        %s721 = smul.addr %s720, 8
        %s722 = scalar_lea.vmem %s4, %s721
      $region116: #{my_entity_encoder.1} parent=95 // pred_fallthru
        _
    $region96: #{my_entity_encoder.1} parent=5 // pred_fallthru
      _
    %p723 = scmp.le.s32.totalorder 1, %s31
    %p724 = scmp.lt.s32.totalorder %s31, 3
    %p725 = pnand %p723, %p724
    %p726 = pneg %p725
    // Predicated region
    $region117: #{my_entity_encoder.1} parent=5 // pred_check
      _
    $region118: #{my_entity_encoder.1} parent=5 // pred_check_branch
      %728 = sbr.rel (%p725) target = $region120
    $region119: #{my_entity_encoder.1} parent=5 // pred_region
      %s729 = ssub.s32 %s31, 1
      %p730 = scmp.lt.s32.totalorder %s36, 1
      %s731 = scalar_select %p730, %s36, 1
      %s732 = smul.addr %s731, 8
      %s733 = scalar_lea.vmem %s0, %s732
      %p734 = pneg %p57
      %p735 = pneg %p54
      %p736 = scmp.lt.s32.totalorder %s36, 1
      %s737 = scalar_select %p736, %s36, 1
      %s738 = smul.addr %s737, 8
      %s739 = scalar_lea.vmem %s1, %s738
      %p740 = pneg %p83
      %p741 = pneg %p80
      %s742 = smul.u32 7, %s36
      %p743 = scmp.lt.s32.totalorder %s742, 13
      %s744 = scalar_select %p743, %s742, 13
      %s745 = smul.addr %s744, 8
      %s746 = scalar_lea.vmem %s2, %s745
      %p747 = pneg %p109
      %p748 = pneg %p106
      %p749 = scmp.lt.s32.totalorder %s36, 1
      %s750 = scalar_select %p749, %s36, 1
      %s751 = smul.addr %s750, 8
      %s752 = scalar_lea.vmem %s3, %s751
      %p753 = pneg %p135
      %p754 = pneg %p132
      %p755 = scmp.lt.s32.totalorder %s36, 1
      %s756 = scalar_select %p755, %s36, 1
      %s757 = smul.addr %s756, 8
      %s758 = scalar_lea.vmem %s4, %s757
      %p759 = pneg %p161
      %p760 = pneg %p158
      %p761 = pneg %p182
      %p762 = pneg %p179
      %p763 = pneg %p203
      %p764 = pneg %p200
      %p765 = pneg %p224
      %p766 = pneg %p221
      %p767 = pneg %p245
      %p768 = pneg %p242
      %p769 = pneg %p266
      %p770 = pneg %p263
      %p771 = pneg %p287
      %p772 = pneg %p284
      %p773 = pneg %p308
      %p774 = pneg %p305
      %p775 = pneg %p329
      %p776 = pneg %p326
      %p777 = pneg %p350
      %p778 = pneg %p347
      %p779 = pneg %p371
      %p780 = pneg %p368
      %p781 = pneg %p392
      %p782 = pneg %p389
      %p783 = pneg %p413
      %p784 = pneg %p410
      %p785 = pneg %p434
      %p786 = pneg %p431
      %p787 = pneg %p455
      %p788 = pneg %p452
      %p789 = pneg %p476
      %p790 = pneg %p473
      %p791 = pneg %p497
      %p792 = pneg %p494
      %p793 = pneg %p518
      %p794 = pneg %p515
      %p795 = pneg %p539
      %p796 = pneg %p536
      %p797 = pneg %p560
      %p798 = pneg %p557
      %p799 = pneg %p581
      %p800 = pneg %p578
      %p801 = pneg %p607
      %p802 = pneg %p604
      %p803 = scmp.lt.s32.totalorder %s36, 1
      %s804 = scalar_select %p803, %s36, 1
      %s805 = smul.addr %s804, 8
      %s806 = scalar_lea.vmem %s25, %s805
      %p807 = scmp.lt.s32.totalorder %s36, 1
      %s808 = scalar_select %p807, %s36, 1
      %s809 = smul.addr %s808, 8
      %s810 = scalar_lea.vmem %s0, %s809
      %p811 = scmp.lt.s32.totalorder %s36, 1
      %s812 = scalar_select %p811, %s36, 1
      %s813 = smul.addr %s812, 8
      %s814 = scalar_lea.vmem %s1, %s813
      %s815 = smul.u32 7, %s36
      %p816 = scmp.lt.s32.totalorder %s815, 13
      %s817 = scalar_select %p816, %s815, 13
      %s818 = smul.addr %s817, 8
      %s819 = scalar_lea.vmem %s2, %s818
      %s820 = smul.u32 7, %s36
      %p821 = scmp.lt.s32.totalorder %s36, 1
      %s822 = scalar_select %p821, %s36, 1
      %s823 = smul.addr %s822, 8
      %s824 = scalar_lea.vmem %s3, %s823
      %p825 = scmp.lt.s32.totalorder %s36, 1
      %s826 = scalar_select %p825, %s36, 1
      %s827 = smul.addr %s826, 8
      %s828 = scalar_lea.vmem %s4, %s827
      %p829 = scmp.lt.s32.totalorder %s36, 1
      %s830 = scalar_select %p829, %s36, 1
      %s831 = smul.addr %s830, 8
      %s832 = scalar_lea.vmem %s25, %s831
      %v834 = vld [vmem:[%s810] sm:$0xff]
      %v835 = vld [vmem:[%s814] sm:$0xff]
      %v836 = vld [vmem:[%s824] sm:$0xff]
      %v837 = vld [vmem:[%s828] sm:$0xff]
      %v838 = vsub.f32 %v835, %v834
      %v839 = vld [vmem:[%s5] sm:$0xff]
      %v840 = vld [vmem:[%s5 + $0x8] sm:$0xff]
      %v841 = vld [vmem:[%s5 + $0x10] sm:$0xff]
      %v842 = vld [vmem:[%s5 + $0x18] sm:$0xff]
      %v843 = vld [vmem:[%s6] sm:$0x1]
      %v845 = vlaneseq
      %v846 = vshrl.u32 %v845, 7
      %v847 = vsub.s32 0, %v846
      %v848 = vrot.slane %v843, %v847
      %vm850 = vcmask 261120
      %v852 = vsel %vm850, %v838, 0
      %854 = vmatprep.subr.mxu0 0.0
      %855 = vmatpush1.msra.mxu0 0.0
      %856 = vmatprep.subr.mxu0 0.0
      %857 = vmatpush1.msra.mxu0 0.0
      %858 = vmatprep.subr.mxu0 0.0
      %859 = vmatpush1.msra.mxu0 0.0
      %860 = vmatprep.subr.mxu0 0.0
      %861 = vmatpush1.msra.mxu0 0.0
      %862 = vmatprep.subr.mxu0 0.0
      %863 = vmatpush1.msra.mxu0 0.0
      %864 = vmatprep.subr.mxu0 0.0
      %865 = vmatpush1.msra.mxu0 0.0
      %866 = vmatprep.subr.mxu0 0.0
      %867 = vmatpush1.msra.mxu0 0.0
      %868 = vmatprep.subr.mxu0 0.0
      %869 = vmatpush1.msra.mxu0 0.0
      %870 = vmatprep.subr.mxu0 0.0
      %871 = vmatpush1.msra.mxu0 0.0
      %872 = vmatprep.subr.mxu0 0.0
      %873 = vmatpush1.msra.mxu0 0.0
      %874 = vmatprep.subr.mxu0 0.0
      %875 = vmatpush1.msra.mxu0 0.0
      %876 = vmatprep.subr.mxu0 0.0
      %877 = vmatpush1.msra.mxu0 0.0
      %878 = vmatprep.subr.mxu0 0.0
      %879 = vmatpush1.msra.mxu0 %v842
      %880 = vmatprep.subr.mxu0 0.0
      %881 = vmatpush1.msra.mxu0 %v841
      %882 = vmatprep.subr.mxu0 0.0
      %883 = vmatpush1.msra.mxu0 %v840
      %884 = vmatprep.subr.mxu0 0.0
      %885 = vmatpush1.msra.mxu0 %v839
      %886 = vmatprep.subr.mxu0 0.0
      %887 = vmatpush2.msra.mxu0 0.0
      %888 = vmatprep.subr.mxu0 0.0
      %889 = vmatpush2.msra.mxu0 0.0
      %890 = vmatprep.subr.mxu0 0.0
      %891 = vmatpush2.msra.mxu0 0.0
      %892 = vmatprep.subr.mxu0 0.0
      %893 = vmatpush2.msra.mxu0 0.0
      %894 = vmatprep.subr.mxu0 0.0
      %895 = vmatpush2.msra.mxu0 0.0
      %896 = vmatprep.subr.mxu0 0.0
      %897 = vmatpush2.msra.mxu0 0.0
      %898 = vmatprep.subr.mxu0 0.0
      %899 = vmatpush2.msra.mxu0 0.0
      %900 = vmatprep.subr.mxu0 0.0
      %901 = vmatpush2.msra.mxu0 0.0
      %902 = vmatprep.subr.mxu0 0.0
      %903 = vmatpush2.msra.mxu0 0.0
      %904 = vmatprep.subr.mxu0 0.0
      %905 = vmatpush2.msra.mxu0 0.0
      %906 = vmatprep.subr.mxu0 0.0
      %907 = vmatpush2.msra.mxu0 0.0
      %908 = vmatprep.subr.mxu0 0.0
      %909 = vmatpush2.msra.mxu0 0.0
      %910 = vmatprep.subr.mxu0 0.0
      %911 = vmatpush2.msra.mxu0 0.0
      %912 = vmatprep.subr.mxu0 0.0
      %913 = vmatpush2.msra.mxu0 0.0
      %914 = vmatprep.subr.mxu0 0.0
      %915 = vmatpush2.msra.mxu0 0.0
      %916 = vmatprep.subr.mxu0 0.0
      %917 = vmatpush2.msra.mxu0 0.0
      %918 = vmatprep.mubr.f32.mxu0 0.0
      %919 = vmatmul.mubr.f32.gmra.mxu0 %v852
      %v920 = vpop.f32.mrf.mxu0
      %v921 = vadd.f32 %v848, %v920
      %v922 = vpop.f32.mrf.mxu0
      %923 = vdwg.mxu0
      %v924 = vld [vmem:[%s7] sm:$0xf]
      %v925 = vld [vmem:[%s7 + $0x4] sm:$0xf]
      %v926 = vld [vmem:[%s7 + $0x8] sm:$0xf]
      %v927 = vld [vmem:[%s7 + $0xc] sm:$0xf]
      %v928 = vld [vmem:[%s7 + $0x10] sm:$0xf]
      %v929 = vld [vmem:[%s7 + $0x14] sm:$0xf]
      %v930 = vld [vmem:[%s7 + $0x18] sm:$0xf]
      %v931 = vld [vmem:[%s7 + $0x1c] sm:$0xf]
      %v932 = vld [vmem:[%s8] sm:$0x1]
      %v933 = vpack.c.bf16 %v834, %v834
      %v934 = vpack.c.bf16 %v921, %v921
      %v939 = vunpack.c.l.b16 %v928
      %v940 = vunpack.c.l.b16 %v929
      %v941 = vunpack.c.l.b16 %v930
      %v942 = vunpack.c.l.b16 %v931
      %v943 = vpack.c.b16 %v940, %v939
      %v944 = vpack.c.b16 %v942, %v941
      %v948 = vsel %vm850, %v934, 0
      %950 = vmatprep.subr.bf16.mxu0 0
      %951 = vmatpush1.bf16.msra.mxu0 0
      %952 = vmatprep.subr.bf16.mxu0 0
      %953 = vmatpush1.bf16.msra.mxu0 0
      %954 = vmatprep.subr.bf16.mxu0 0
      %955 = vmatpush1.bf16.msra.mxu0 0
      %956 = vmatprep.subr.bf16.mxu0 0
      %957 = vmatpush1.bf16.msra.mxu0 0
      %958 = vmatprep.subr.bf16.mxu0 0
      %959 = vmatpush1.bf16.msra.mxu0 0
      %960 = vmatprep.subr.bf16.mxu0 0
      %961 = vmatpush1.bf16.msra.mxu0 0
      %962 = vmatprep.subr.bf16.mxu0 0
      %963 = vmatpush1.bf16.msra.mxu0 %v944
      %964 = vmatprep.subr.bf16.mxu0 0
      %965 = vmatpush1.bf16.msra.mxu0 %v943
      %966 = vmatprep.subr.bf16.mxu0 0
      %967 = vmatpush2.bf16.msra.mxu0 0
      %968 = vmatprep.subr.bf16.mxu0 0
      %969 = vmatpush2.bf16.msra.mxu0 0
      %970 = vmatprep.subr.bf16.mxu0 0
      %971 = vmatpush2.bf16.msra.mxu0 0
      %972 = vmatprep.subr.bf16.mxu0 0
      %973 = vmatpush2.bf16.msra.mxu0 0
      %974 = vmatprep.subr.bf16.mxu0 0
      %975 = vmatpush2.bf16.msra.mxu0 0
      %976 = vmatprep.subr.bf16.mxu0 0
      %977 = vmatpush2.bf16.msra.mxu0 0
      %978 = vmatprep.subr.bf16.mxu0 0
      %979 = vmatpush2.bf16.msra.mxu0 0
      %980 = vmatprep.subr.bf16.mxu0 0
      %981 = vmatpush2.bf16.msra.mxu0 0
      %982 = vmatprep.mubr.bf16.mxu0 0
      %983 = vmatmul.mubr.bf16.gmra.mxu0 %v948
      %v984 = vpop.f32.mrf.mxu0
      %v985 = vadd.f32 0.0, %v984
      %v986 = vpop.f32.mrf.mxu0
      %v987 = vpop.f32.mrf.mxu0
      %v988 = vpop.f32.mrf.mxu0
      %989 = vdwg.mxu0
      %v994 = vunpack.c.l.b16 %v924
      %v995 = vunpack.c.l.b16 %v925
      %v996 = vunpack.c.l.b16 %v926
      %v997 = vunpack.c.l.b16 %v927
      %v998 = vpack.c.b16 %v995, %v994
      %v999 = vpack.c.b16 %v997, %v996
      %v1003 = vsel %vm850, %v933, 0
      %1005 = vmatprep.subr.bf16.mxu0 0
      %1006 = vmatpush1.bf16.msra.mxu0 0
      %1007 = vmatprep.subr.bf16.mxu0 0
      %1008 = vmatpush1.bf16.msra.mxu0 0
      %1009 = vmatprep.subr.bf16.mxu0 0
      %1010 = vmatpush1.bf16.msra.mxu0 0
      %1011 = vmatprep.subr.bf16.mxu0 0
      %1012 = vmatpush1.bf16.msra.mxu0 0
      %1013 = vmatprep.subr.bf16.mxu0 0
      %1014 = vmatpush1.bf16.msra.mxu0 0
      %1015 = vmatprep.subr.bf16.mxu0 0
      %1016 = vmatpush1.bf16.msra.mxu0 0
      %1017 = vmatprep.subr.bf16.mxu0 0
      %1018 = vmatpush1.bf16.msra.mxu0 %v999
      %1019 = vmatprep.subr.bf16.mxu0 0
      %1020 = vmatpush1.bf16.msra.mxu0 %v998
      %1021 = vmatprep.subr.bf16.mxu0 0
      %1022 = vmatpush2.bf16.msra.mxu0 0
      %1023 = vmatprep.subr.bf16.mxu0 0
      %1024 = vmatpush2.bf16.msra.mxu0 0
      %1025 = vmatprep.subr.bf16.mxu0 0
      %1026 = vmatpush2.bf16.msra.mxu0 0
      %1027 = vmatprep.subr.bf16.mxu0 0
      %1028 = vmatpush2.bf16.msra.mxu0 0
      %1029 = vmatprep.subr.bf16.mxu0 0
      %1030 = vmatpush2.bf16.msra.mxu0 0
      %1031 = vmatprep.subr.bf16.mxu0 0
      %1032 = vmatpush2.bf16.msra.mxu0 0
      %1033 = vmatprep.subr.bf16.mxu0 0
      %1034 = vmatpush2.bf16.msra.mxu0 0
      %1035 = vmatprep.subr.bf16.mxu0 0
      %1036 = vmatpush2.bf16.msra.mxu0 0
      %1037 = vmatprep.mubr.bf16.mxu0 0
      %1038 = vmatmul.mubr.bf16.gmra.mxu0 %v1003
      %v1039 = vpop.f32.mrf.mxu0
      %v1040 = vadd.f32 %v985, %v1039
      %v1041 = vpop.f32.mrf.mxu0
      %v1042 = vpop.f32.mrf.mxu0
      %v1043 = vpop.f32.mrf.mxu0
      %1044 = vdwg.mxu0
      %v1046 = vlaneseq
      %v1047 = vshrl.u32 %v1046, 7
      %v1048 = vsub.s32 0, %v1047
      %v1049 = vrot.slane %v932, %v1048
      %v1051 = vadd.f32 %v1040, %v1049
      %v1052 = vtanh.pop %v1051
      %v1053 = vld [vmem:[%s819] sm:$0xff]
      %v1054 = vld [vmem:[%s819 + $0x8] sm:$0xff]
      %v1055 = vld [vmem:[%s819 + $0x10] sm:$0xff]
      %v1056 = vld [vmem:[%s819 + $0x18] sm:$0xff]
      %v1057 = vld [vmem:[%s819 + $0x20] sm:$0xff]
      %v1058 = vld [vmem:[%s819 + $0x28] sm:$0xff]
      %v1059 = vld [vmem:[%s819 + $0x30] sm:$0xff]
      %v1060 = vpack.c.bf16 %v1054, %v1053
      %v1061 = vpack.c.bf16 %v1056, %v1055
      %v1062 = vpack.c.bf16 %v1058, %v1057
      %v1063 = vpack.c.bf16 %v1059, %v1059
      %vm1064 = vcmask 523264
      %v1066 = vsel %vm1064, %v1060, 0
      %v1069 = vsel %vm1064, %v1061, 0
      %v1072 = vsel %vm1064, %v1062, 0
      %v1075 = vsel %vm1064, %v1063, 0
      %1077 = vmatprep.subr.bf16.mxu0 0
      %1078 = vmatpush1.bf16.msra.mxu0 0
      %1079 = vmatprep.subr.bf16.mxu0 0
      %1080 = vmatpush1.bf16.msra.mxu0 0
      %1081 = vmatprep.subr.bf16.mxu0 0
      %1082 = vmatpush1.bf16.msra.mxu0 0
      %1083 = vmatprep.subr.bf16.mxu0 0
      %1084 = vmatpush1.bf16.msra.mxu0 0
      %1085 = vmatprep.subr.bf16.mxu0 0
      %1086 = vmatpush1.bf16.msra.mxu0 %v944
      %1087 = vmatprep.subr.bf16.mxu0 0
      %1088 = vmatpush1.bf16.msra.mxu0 %v943
      %1089 = vmatprep.subr.bf16.mxu0 0
      %1090 = vmatpush1.bf16.msra.mxu0 %v999
      %1091 = vmatprep.subr.bf16.mxu0 0
      %1092 = vmatpush1.bf16.msra.mxu0 %v998
      %1093 = vmatprep.subr.bf16.mxu0 0
      %1094 = vmatpush2.bf16.msra.mxu0 0
      %1095 = vmatprep.subr.bf16.mxu0 0
      %1096 = vmatpush2.bf16.msra.mxu0 0
      %1097 = vmatprep.subr.bf16.mxu0 0
      %1098 = vmatpush2.bf16.msra.mxu0 0
      %1099 = vmatprep.subr.bf16.mxu0 0
      %1100 = vmatpush2.bf16.msra.mxu0 0
      %1101 = vmatprep.subr.bf16.mxu0 0
      %1102 = vmatpush2.bf16.msra.mxu0 0
      %1103 = vmatprep.subr.bf16.mxu0 0
      %1104 = vmatpush2.bf16.msra.mxu0 0
      %1105 = vmatprep.subr.bf16.mxu0 0
      %1106 = vmatpush2.bf16.msra.mxu0 0
      %1107 = vmatprep.subr.bf16.mxu0 0
      %1108 = vmatpush2.bf16.msra.mxu0 0
      %1109 = vmatprep.mubr.bf16.mxu0 0
      %1110 = vmatmul.mubr.bf16.gmra.mxu0 %v1066
      %v1111 = vpop.f32.mrf.mxu0
      %v1112 = vadd.f32 %v1049, %v1111
      %v1113 = vpop.f32.mrf.mxu0
      %v1114 = vpop.f32.mrf.mxu0
      %v1115 = vadd.f32 %v1049, %v1114
      %v1116 = vpop.f32.mrf.mxu0
      %1117 = vmatprep.mubr.bf16.mxu0 0
      %1118 = vmatmul.mubr.bf16.gmra.mxu0 %v1069
      %v1119 = vpop.f32.mrf.mxu0
      %v1120 = vadd.f32 %v1049, %v1119
      %v1121 = vpop.f32.mrf.mxu0
      %v1122 = vpop.f32.mrf.mxu0
      %v1123 = vadd.f32 %v1049, %v1122
      %v1124 = vpop.f32.mrf.mxu0
      %1125 = vmatprep.mubr.bf16.mxu0 0
      %1126 = vmatmul.mubr.bf16.gmra.mxu0 %v1072
      %v1127 = vpop.f32.mrf.mxu0
      %v1128 = vadd.f32 %v1049, %v1127
      %v1129 = vpop.f32.mrf.mxu0
      %v1130 = vpop.f32.mrf.mxu0
      %v1131 = vadd.f32 %v1049, %v1130
      %v1132 = vpop.f32.mrf.mxu0
      %1133 = vmatprep.mubr.bf16.mxu0 0
      %1134 = vmatmul.mubr.bf16.gmra.mxu0 %v1075
      %v1135 = vpop.f32.mrf.mxu0
      %v1136 = vadd.f32 %v1049, %v1135
      %v1137 = vpop.f32.mrf.mxu0
      %v1138 = vpop.f32.mrf.mxu0
      %v1139 = vpop.f32.mrf.mxu0
      %1140 = vdwg.mxu0
      %v1141 = vtanh.pop %v1112
      %v1142 = vtanh.pop %v1115
      %v1143 = vtanh.pop %v1120
      %v1144 = vtanh.pop %v1123
      %v1145 = vtanh.pop %v1128
      %v1146 = vtanh.pop %v1131
      %v1147 = vtanh.pop %v1136
      %v1149 = vcombine.high %v1052, %v1052
      %v1151 = vunpack.c.l.s4 1966171168
      %v1152 = vunpack.c.0.s8 %v1151
      %v1153 = vlaneseq
      %v1154 = vshrl.u32 %v1153, 7
      %v1155 = vsub.s32 %v1152, %v1154
      %v1156 = vrot.slane %v1052, %v1155
      %v1158 = vunpack.c.l.s4 1966171168
      %v1159 = vunpack.c.0.s8 %v1158
      %v1160 = vlaneseq
      %v1161 = vshrl.u32 %v1160, 7
      %v1162 = vsub.s32 %v1159, %v1161
      %v1163 = vrot.slane %v1149, %v1162
      %v1164 = vcombine.high %v1156, %v1156
      %v1165 = vcombine.high %v1163, %v1163
      %v1167 = vunpack.c.l.s4 1966171168
      %v1168 = vunpack.c.0.s8 %v1167
      %v1169 = vlaneseq
      %v1170 = vshrl.u32 %v1169, 7
      %v1171 = vsub.s32 %v1168, %v1170
      %v1172 = vrot.slane %v1156, %v1171
      %v1174 = vunpack.c.l.s4 1966171168
      %v1175 = vunpack.c.0.s8 %v1174
      %v1176 = vlaneseq
      %v1177 = vshrl.u32 %v1176, 7
      %v1178 = vsub.s32 %v1175, %v1177
      %v1179 = vrot.slane %v1163, %v1178
      %v1181 = vunpack.c.l.s4 1966171168
      %v1182 = vunpack.c.0.s8 %v1181
      %v1183 = vlaneseq
      %v1184 = vshrl.u32 %v1183, 7
      %v1185 = vsub.s32 %v1182, %v1184
      %v1186 = vrot.slane %v1164, %v1185
      %v1188 = vunpack.c.l.s4 1966171168
      %v1189 = vunpack.c.0.s8 %v1188
      %v1190 = vlaneseq
      %v1191 = vshrl.u32 %v1190, 7
      %v1192 = vsub.s32 %v1189, %v1191
      %v1193 = vrot.slane %v1165, %v1192
      %v1194 = vcombine.high %v1172, %v1172
      %v1195 = vcombine.high %v1179, %v1179
      %v1196 = vcombine.high %v1186, %v1186
      %v1197 = vcombine.high %v1193, %v1193
      %vm1206 = vcmask 253952
      %1207 = vst.msk [vmem:[#allocation2] sm:$0x1] %vm1206, %v1172
      %1208 = vst.msk [vmem:[#allocation2 + $0x8] sm:$0x1] %vm1206, %v1186
      %1209 = vst.msk [vmem:[#allocation2 + $0x10] sm:$0x1] %vm1206, %v1194
      %1210 = vst.msk [vmem:[#allocation2 + $0x18] sm:$0x1] %vm1206, %v1196
      %1211 = vst.msk [vmem:[#allocation2 + $0x20] sm:$0x1] %vm1206, %v1179
      %1212 = vst.msk [vmem:[#allocation2 + $0x28] sm:$0x1] %vm1206, %v1193
      %1213 = vst.msk [vmem:[#allocation2 + $0x30] sm:$0x1] %vm1206, %v1195
      %1214 = vst.msk [vmem:[#allocation2 + $0x38] sm:$0x1] %vm1206, %v1197
      %v1222 = vcombine.high %v1141, %v1141
      %v1224 = vunpack.c.l.s4 1966171168
      %v1225 = vunpack.c.0.s8 %v1224
      %v1226 = vlaneseq
      %v1227 = vshrl.u32 %v1226, 7
      %v1228 = vsub.s32 %v1225, %v1227
      %v1229 = vrot.slane %v1141, %v1228
      %v1231 = vunpack.c.l.s4 1966171168
      %v1232 = vunpack.c.0.s8 %v1231
      %v1233 = vlaneseq
      %v1234 = vshrl.u32 %v1233, 7
      %v1235 = vsub.s32 %v1232, %v1234
      %v1236 = vrot.slane %v1222, %v1235
      %v1237 = vcombine.high %v1229, %v1229
      %v1238 = vcombine.high %v1236, %v1236
      %v1240 = vunpack.c.l.s4 1966171168
      %v1241 = vunpack.c.0.s8 %v1240
      %v1242 = vlaneseq
      %v1243 = vshrl.u32 %v1242, 7
      %v1244 = vsub.s32 %v1241, %v1243
      %v1245 = vrot.slane %v1229, %v1244
      %v1247 = vunpack.c.l.s4 1966171168
      %v1248 = vunpack.c.0.s8 %v1247
      %v1249 = vlaneseq
      %v1250 = vshrl.u32 %v1249, 7
      %v1251 = vsub.s32 %v1248, %v1250
      %v1252 = vrot.slane %v1236, %v1251
      %v1254 = vunpack.c.l.s4 1966171168
      %v1255 = vunpack.c.0.s8 %v1254
      %v1256 = vlaneseq
      %v1257 = vshrl.u32 %v1256, 7
      %v1258 = vsub.s32 %v1255, %v1257
      %v1259 = vrot.slane %v1237, %v1258
      %v1261 = vunpack.c.l.s4 1966171168
      %v1262 = vunpack.c.0.s8 %v1261
      %v1263 = vlaneseq
      %v1264 = vshrl.u32 %v1263, 7
      %v1265 = vsub.s32 %v1262, %v1264
      %v1266 = vrot.slane %v1238, %v1265
      %v1267 = vcombine.high %v1245, %v1245
      %v1268 = vcombine.high %v1252, %v1252
      %v1269 = vcombine.high %v1259, %v1259
      %v1270 = vcombine.high %v1266, %v1266
      %v1271 = vcombine.high %v1142, %v1142
      %v1273 = vunpack.c.l.s4 1966171168
      %v1274 = vunpack.c.0.s8 %v1273
      %v1275 = vlaneseq
      %v1276 = vshrl.u32 %v1275, 7
      %v1277 = vsub.s32 %v1274, %v1276
      %v1278 = vrot.slane %v1142, %v1277
      %v1280 = vunpack.c.l.s4 1966171168
      %v1281 = vunpack.c.0.s8 %v1280
      %v1282 = vlaneseq
      %v1283 = vshrl.u32 %v1282, 7
      %v1284 = vsub.s32 %v1281, %v1283
      %v1285 = vrot.slane %v1271, %v1284
      %v1286 = vcombine.high %v1278, %v1278
      %v1287 = vcombine.high %v1285, %v1285
      %v1289 = vunpack.c.l.s4 1966171168
      %v1290 = vunpack.c.0.s8 %v1289
      %v1291 = vlaneseq
      %v1292 = vshrl.u32 %v1291, 7
      %v1293 = vsub.s32 %v1290, %v1292
      %v1294 = vrot.slane %v1278, %v1293
      %v1296 = vunpack.c.l.s4 1966171168
      %v1297 = vunpack.c.0.s8 %v1296
      %v1298 = vlaneseq
      %v1299 = vshrl.u32 %v1298, 7
      %v1300 = vsub.s32 %v1297, %v1299
      %v1301 = vrot.slane %v1285, %v1300
      %v1303 = vunpack.c.l.s4 1966171168
      %v1304 = vunpack.c.0.s8 %v1303
      %v1305 = vlaneseq
      %v1306 = vshrl.u32 %v1305, 7
      %v1307 = vsub.s32 %v1304, %v1306
      %v1308 = vrot.slane %v1286, %v1307
      %v1310 = vunpack.c.l.s4 1966171168
      %v1311 = vunpack.c.0.s8 %v1310
      %v1312 = vlaneseq
      %v1313 = vshrl.u32 %v1312, 7
      %v1314 = vsub.s32 %v1311, %v1313
      %v1315 = vrot.slane %v1287, %v1314
      %v1316 = vcombine.high %v1294, %v1294
      %v1317 = vcombine.high %v1301, %v1301
      %v1318 = vcombine.high %v1308, %v1308
      %v1319 = vcombine.high %v1315, %v1315
      %v1320 = vcombine.high %v1143, %v1143
      %v1322 = vunpack.c.l.s4 1966171168
      %v1323 = vunpack.c.0.s8 %v1322
      %v1324 = vlaneseq
      %v1325 = vshrl.u32 %v1324, 7
      %v1326 = vsub.s32 %v1323, %v1325
      %v1327 = vrot.slane %v1143, %v1326
      %v1329 = vunpack.c.l.s4 1966171168
      %v1330 = vunpack.c.0.s8 %v1329
      %v1331 = vlaneseq
      %v1332 = vshrl.u32 %v1331, 7
      %v1333 = vsub.s32 %v1330, %v1332
      %v1334 = vrot.slane %v1320, %v1333
      %v1335 = vcombine.high %v1327, %v1327
      %v1336 = vcombine.high %v1334, %v1334
      %v1338 = vunpack.c.l.s4 1966171168
      %v1339 = vunpack.c.0.s8 %v1338
      %v1340 = vlaneseq
      %v1341 = vshrl.u32 %v1340, 7
      %v1342 = vsub.s32 %v1339, %v1341
      %v1343 = vrot.slane %v1327, %v1342
      %v1345 = vunpack.c.l.s4 1966171168
      %v1346 = vunpack.c.0.s8 %v1345
      %v1347 = vlaneseq
      %v1348 = vshrl.u32 %v1347, 7
      %v1349 = vsub.s32 %v1346, %v1348
      %v1350 = vrot.slane %v1334, %v1349
      %v1352 = vunpack.c.l.s4 1966171168
      %v1353 = vunpack.c.0.s8 %v1352
      %v1354 = vlaneseq
      %v1355 = vshrl.u32 %v1354, 7
      %v1356 = vsub.s32 %v1353, %v1355
      %v1357 = vrot.slane %v1335, %v1356
      %v1359 = vunpack.c.l.s4 1966171168
      %v1360 = vunpack.c.0.s8 %v1359
      %v1361 = vlaneseq
      %v1362 = vshrl.u32 %v1361, 7
      %v1363 = vsub.s32 %v1360, %v1362
      %v1364 = vrot.slane %v1336, %v1363
      %v1365 = vcombine.high %v1343, %v1343
      %v1366 = vcombine.high %v1350, %v1350
      %v1367 = vcombine.high %v1357, %v1357
      %v1368 = vcombine.high %v1364, %v1364
      %v1369 = vcombine.high %v1144, %v1144
      %v1371 = vunpack.c.l.s4 1966171168
      %v1372 = vunpack.c.0.s8 %v1371
      %v1373 = vlaneseq
      %v1374 = vshrl.u32 %v1373, 7
      %v1375 = vsub.s32 %v1372, %v1374
      %v1376 = vrot.slane %v1144, %v1375
      %v1378 = vunpack.c.l.s4 1966171168
      %v1379 = vunpack.c.0.s8 %v1378
      %v1380 = vlaneseq
      %v1381 = vshrl.u32 %v1380, 7
      %v1382 = vsub.s32 %v1379, %v1381
      %v1383 = vrot.slane %v1369, %v1382
      %v1384 = vcombine.high %v1376, %v1376
      %v1385 = vcombine.high %v1383, %v1383
      %v1387 = vunpack.c.l.s4 1966171168
      %v1388 = vunpack.c.0.s8 %v1387
      %v1389 = vlaneseq
      %v1390 = vshrl.u32 %v1389, 7
      %v1391 = vsub.s32 %v1388, %v1390
      %v1392 = vrot.slane %v1376, %v1391
      %v1394 = vunpack.c.l.s4 1966171168
      %v1395 = vunpack.c.0.s8 %v1394
      %v1396 = vlaneseq
      %v1397 = vshrl.u32 %v1396, 7
      %v1398 = vsub.s32 %v1395, %v1397
      %v1399 = vrot.slane %v1383, %v1398
      %v1401 = vunpack.c.l.s4 1966171168
      %v1402 = vunpack.c.0.s8 %v1401
      %v1403 = vlaneseq
      %v1404 = vshrl.u32 %v1403, 7
      %v1405 = vsub.s32 %v1402, %v1404
      %v1406 = vrot.slane %v1384, %v1405
      %v1408 = vunpack.c.l.s4 1966171168
      %v1409 = vunpack.c.0.s8 %v1408
      %v1410 = vlaneseq
      %v1411 = vshrl.u32 %v1410, 7
      %v1412 = vsub.s32 %v1409, %v1411
      %v1413 = vrot.slane %v1385, %v1412
      %v1414 = vcombine.high %v1392, %v1392
      %v1415 = vcombine.high %v1399, %v1399
      %v1416 = vcombine.high %v1406, %v1406
      %v1417 = vcombine.high %v1413, %v1413
      %v1418 = vcombine.high %v1145, %v1145
      %v1420 = vunpack.c.l.s4 1966171168
      %v1421 = vunpack.c.0.s8 %v1420
      %v1422 = vlaneseq
      %v1423 = vshrl.u32 %v1422, 7
      %v1424 = vsub.s32 %v1421, %v1423
      %v1425 = vrot.slane %v1145, %v1424
      %v1427 = vunpack.c.l.s4 1966171168
      %v1428 = vunpack.c.0.s8 %v1427
      %v1429 = vlaneseq
      %v1430 = vshrl.u32 %v1429, 7
      %v1431 = vsub.s32 %v1428, %v1430
      %v1432 = vrot.slane %v1418, %v1431
      %v1433 = vcombine.high %v1425, %v1425
      %v1434 = vcombine.high %v1432, %v1432
      %v1436 = vunpack.c.l.s4 1966171168
      %v1437 = vunpack.c.0.s8 %v1436
      %v1438 = vlaneseq
      %v1439 = vshrl.u32 %v1438, 7
      %v1440 = vsub.s32 %v1437, %v1439
      %v1441 = vrot.slane %v1425, %v1440
      %v1443 = vunpack.c.l.s4 1966171168
      %v1444 = vunpack.c.0.s8 %v1443
      %v1445 = vlaneseq
      %v1446 = vshrl.u32 %v1445, 7
      %v1447 = vsub.s32 %v1444, %v1446
      %v1448 = vrot.slane %v1432, %v1447
      %v1450 = vunpack.c.l.s4 1966171168
      %v1451 = vunpack.c.0.s8 %v1450
      %v1452 = vlaneseq
      %v1453 = vshrl.u32 %v1452, 7
      %v1454 = vsub.s32 %v1451, %v1453
      %v1455 = vrot.slane %v1433, %v1454
      %v1457 = vunpack.c.l.s4 1966171168
      %v1458 = vunpack.c.0.s8 %v1457
      %v1459 = vlaneseq
      %v1460 = vshrl.u32 %v1459, 7
      %v1461 = vsub.s32 %v1458, %v1460
      %v1462 = vrot.slane %v1434, %v1461
      %v1463 = vcombine.high %v1441, %v1441
      %v1464 = vcombine.high %v1448, %v1448
      %v1465 = vcombine.high %v1455, %v1455
      %v1466 = vcombine.high %v1462, %v1462
      %v1467 = vcombine.high %v1146, %v1146
      %v1469 = vunpack.c.l.s4 1966171168
      %v1470 = vunpack.c.0.s8 %v1469
      %v1471 = vlaneseq
      %v1472 = vshrl.u32 %v1471, 7
      %v1473 = vsub.s32 %v1470, %v1472
      %v1474 = vrot.slane %v1146, %v1473
      %v1476 = vunpack.c.l.s4 1966171168
      %v1477 = vunpack.c.0.s8 %v1476
      %v1478 = vlaneseq
      %v1479 = vshrl.u32 %v1478, 7
      %v1480 = vsub.s32 %v1477, %v1479
      %v1481 = vrot.slane %v1467, %v1480
      %v1482 = vcombine.high %v1474, %v1474
      %v1483 = vcombine.high %v1481, %v1481
      %v1485 = vunpack.c.l.s4 1966171168
      %v1486 = vunpack.c.0.s8 %v1485
      %v1487 = vlaneseq
      %v1488 = vshrl.u32 %v1487, 7
      %v1489 = vsub.s32 %v1486, %v1488
      %v1490 = vrot.slane %v1474, %v1489
      %v1492 = vunpack.c.l.s4 1966171168
      %v1493 = vunpack.c.0.s8 %v1492
      %v1494 = vlaneseq
      %v1495 = vshrl.u32 %v1494, 7
      %v1496 = vsub.s32 %v1493, %v1495
      %v1497 = vrot.slane %v1481, %v1496
      %v1499 = vunpack.c.l.s4 1966171168
      %v1500 = vunpack.c.0.s8 %v1499
      %v1501 = vlaneseq
      %v1502 = vshrl.u32 %v1501, 7
      %v1503 = vsub.s32 %v1500, %v1502
      %v1504 = vrot.slane %v1482, %v1503
      %v1506 = vunpack.c.l.s4 1966171168
      %v1507 = vunpack.c.0.s8 %v1506
      %v1508 = vlaneseq
      %v1509 = vshrl.u32 %v1508, 7
      %v1510 = vsub.s32 %v1507, %v1509
      %v1511 = vrot.slane %v1483, %v1510
      %v1512 = vcombine.high %v1490, %v1490
      %v1513 = vcombine.high %v1497, %v1497
      %v1514 = vcombine.high %v1504, %v1504
      %v1515 = vcombine.high %v1511, %v1511
      %v1516 = vcombine.high %v1147, %v1147
      %v1518 = vunpack.c.l.s4 1966171168
      %v1519 = vunpack.c.0.s8 %v1518
      %v1520 = vlaneseq
      %v1521 = vshrl.u32 %v1520, 7
      %v1522 = vsub.s32 %v1519, %v1521
      %v1523 = vrot.slane %v1147, %v1522
      %v1525 = vunpack.c.l.s4 1966171168
      %v1526 = vunpack.c.0.s8 %v1525
      %v1527 = vlaneseq
      %v1528 = vshrl.u32 %v1527, 7
      %v1529 = vsub.s32 %v1526, %v1528
      %v1530 = vrot.slane %v1516, %v1529
      %v1531 = vcombine.high %v1523, %v1523
      %v1532 = vcombine.high %v1530, %v1530
      %v1534 = vunpack.c.l.s4 1966171168
      %v1535 = vunpack.c.0.s8 %v1534
      %v1536 = vlaneseq
      %v1537 = vshrl.u32 %v1536, 7
      %v1538 = vsub.s32 %v1535, %v1537
      %v1539 = vrot.slane %v1523, %v1538
      %v1541 = vunpack.c.l.s4 1966171168
      %v1542 = vunpack.c.0.s8 %v1541
      %v1543 = vlaneseq
      %v1544 = vshrl.u32 %v1543, 7
      %v1545 = vsub.s32 %v1542, %v1544
      %v1546 = vrot.slane %v1530, %v1545
      %v1548 = vunpack.c.l.s4 1966171168
      %v1549 = vunpack.c.0.s8 %v1548
      %v1550 = vlaneseq
      %v1551 = vshrl.u32 %v1550, 7
      %v1552 = vsub.s32 %v1549, %v1551
      %v1553 = vrot.slane %v1531, %v1552
      %v1555 = vunpack.c.l.s4 1966171168
      %v1556 = vunpack.c.0.s8 %v1555
      %v1557 = vlaneseq
      %v1558 = vshrl.u32 %v1557, 7
      %v1559 = vsub.s32 %v1556, %v1558
      %v1560 = vrot.slane %v1532, %v1559
      %v1561 = vcombine.high %v1539, %v1539
      %v1562 = vcombine.high %v1546, %v1546
      %v1563 = vcombine.high %v1553, %v1553
      %v1564 = vcombine.high %v1560, %v1560
      %v1565 = vcombine.low %v1245, %v1259
      %v1566 = vcombine.low %v1267, %v1269
      %v1567 = vcombine.low %v1252, %v1266
      %v1569 = vunpack.c.l.s4 1966171168
      %v1570 = vunpack.c.0.s8 %v1569
      %v1571 = vlaneseq
      %v1572 = vshrl.u32 %v1571, 7
      %v1573 = vsub.s32 %v1570, %v1572
      %v1574 = vrot.slane %v1565, %v1573
      %v1576 = vunpack.c.l.s4 1966171168
      %v1577 = vunpack.c.0.s8 %v1576
      %v1578 = vlaneseq
      %v1579 = vshrl.u32 %v1578, 7
      %v1580 = vsub.s32 %v1577, %v1579
      %v1581 = vrot.slane %v1566, %v1580
      %v1583 = vunpack.c.l.s4 1966171168
      %v1584 = vunpack.c.0.s8 %v1583
      %v1585 = vlaneseq
      %v1586 = vshrl.u32 %v1585, 7
      %v1587 = vsub.s32 %v1584, %v1586
      %v1588 = vrot.slane %v1567, %v1587
      %v1590 = vunpack.c.l.s4 1966171168
      %v1591 = vunpack.c.0.s8 %v1590
      %v1592 = vlaneseq
      %v1593 = vshrl.u32 %v1592, 7
      %v1594 = vsub.s32 %v1591, %v1593
      %v1595 = vrot.slane %v1268, %v1594
      %v1596 = vcombine.low %v1574, %v1581
      %v1597 = vcombine.low %v1588, %v1595
      %v1599 = vunpack.c.l.s4 1966171168
      %v1600 = vunpack.c.0.s8 %v1599
      %v1601 = vlaneseq
      %v1602 = vshrl.u32 %v1601, 7
      %v1603 = vsub.s32 %v1600, %v1602
      %v1604 = vrot.slane %v1596, %v1603
      %v1606 = vunpack.c.l.s4 1966171168
      %v1607 = vunpack.c.0.s8 %v1606
      %v1608 = vlaneseq
      %v1609 = vshrl.u32 %v1608, 7
      %v1610 = vsub.s32 %v1607, %v1609
      %v1611 = vrot.slane %v1597, %v1610
      %v1612 = vcombine.low %v1604, %v1611
      %v1613 = vcombine.low %v1270, %v1294
      %v1614 = vcombine.low %v1308, %v1316
      %v1615 = vcombine.low %v1318, %v1301
      %v1617 = vunpack.c.l.s4 1966171168
      %v1618 = vunpack.c.0.s8 %v1617
      %v1619 = vlaneseq
      %v1620 = vshrl.u32 %v1619, 7
      %v1621 = vsub.s32 %v1618, %v1620
      %v1622 = vrot.slane %v1613, %v1621
      %v1624 = vunpack.c.l.s4 1966171168
      %v1625 = vunpack.c.0.s8 %v1624
      %v1626 = vlaneseq
      %v1627 = vshrl.u32 %v1626, 7
      %v1628 = vsub.s32 %v1625, %v1627
      %v1629 = vrot.slane %v1614, %v1628
      %v1631 = vunpack.c.l.s4 1966171168
      %v1632 = vunpack.c.0.s8 %v1631
      %v1633 = vlaneseq
      %v1634 = vshrl.u32 %v1633, 7
      %v1635 = vsub.s32 %v1632, %v1634
      %v1636 = vrot.slane %v1615, %v1635
      %v1638 = vunpack.c.l.s4 1966171168
      %v1639 = vunpack.c.0.s8 %v1638
      %v1640 = vlaneseq
      %v1641 = vshrl.u32 %v1640, 7
      %v1642 = vsub.s32 %v1639, %v1641
      %v1643 = vrot.slane %v1315, %v1642
      %v1644 = vcombine.low %v1622, %v1629
      %v1645 = vcombine.low %v1636, %v1643
      %v1647 = vunpack.c.l.s4 1966171168
      %v1648 = vunpack.c.0.s8 %v1647
      %v1649 = vlaneseq
      %v1650 = vshrl.u32 %v1649, 7
      %v1651 = vsub.s32 %v1648, %v1650
      %v1652 = vrot.slane %v1644, %v1651
      %v1654 = vunpack.c.l.s4 1966171168
      %v1655 = vunpack.c.0.s8 %v1654
      %v1656 = vlaneseq
      %v1657 = vshrl.u32 %v1656, 7
      %v1658 = vsub.s32 %v1655, %v1657
      %v1659 = vrot.slane %v1645, %v1658
      %v1660 = vcombine.low %v1652, %v1659
      %v1661 = vcombine.low %v1317, %v1319
      %v1662 = vcombine.low %v1343, %v1357
      %v1663 = vcombine.low %v1365, %v1367
      %v1665 = vunpack.c.l.s4 1966171168
      %v1666 = vunpack.c.0.s8 %v1665
      %v1667 = vlaneseq
      %v1668 = vshrl.u32 %v1667, 7
      %v1669 = vsub.s32 %v1666, %v1668
      %v1670 = vrot.slane %v1661, %v1669
      %v1672 = vunpack.c.l.s4 1966171168
      %v1673 = vunpack.c.0.s8 %v1672
      %v1674 = vlaneseq
      %v1675 = vshrl.u32 %v1674, 7
      %v1676 = vsub.s32 %v1673, %v1675
      %v1677 = vrot.slane %v1662, %v1676
      %v1679 = vunpack.c.l.s4 1966171168
      %v1680 = vunpack.c.0.s8 %v1679
      %v1681 = vlaneseq
      %v1682 = vshrl.u32 %v1681, 7
      %v1683 = vsub.s32 %v1680, %v1682
      %v1684 = vrot.slane %v1663, %v1683
      %v1686 = vunpack.c.l.s4 1966171168
      %v1687 = vunpack.c.0.s8 %v1686
      %v1688 = vlaneseq
      %v1689 = vshrl.u32 %v1688, 7
      %v1690 = vsub.s32 %v1687, %v1689
      %v1691 = vrot.slane %v1350, %v1690
      %v1692 = vcombine.low %v1670, %v1677
      %v1693 = vcombine.low %v1684, %v1691
      %v1695 = vunpack.c.l.s4 1966171168
      %v1696 = vunpack.c.0.s8 %v1695
      %v1697 = vlaneseq
      %v1698 = vshrl.u32 %v1697, 7
      %v1699 = vsub.s32 %v1696, %v1698
      %v1700 = vrot.slane %v1692, %v1699
      %v1702 = vunpack.c.l.s4 1966171168
      %v1703 = vunpack.c.0.s8 %v1702
      %v1704 = vlaneseq
      %v1705 = vshrl.u32 %v1704, 7
      %v1706 = vsub.s32 %v1703, %v1705
      %v1707 = vrot.slane %v1693, %v1706
      %v1708 = vcombine.low %v1700, %v1707
      %v1709 = vcombine.low %v1364, %v1366
      %v1710 = vcombine.low %v1368, %v1392
      %v1711 = vcombine.low %v1406, %v1414
      %v1713 = vunpack.c.l.s4 1966171168
      %v1714 = vunpack.c.0.s8 %v1713
      %v1715 = vlaneseq
      %v1716 = vshrl.u32 %v1715, 7
      %v1717 = vsub.s32 %v1714, %v1716
      %v1718 = vrot.slane %v1709, %v1717
      %v1720 = vunpack.c.l.s4 1966171168
      %v1721 = vunpack.c.0.s8 %v1720
      %v1722 = vlaneseq
      %v1723 = vshrl.u32 %v1722, 7
      %v1724 = vsub.s32 %v1721, %v1723
      %v1725 = vrot.slane %v1710, %v1724
      %v1727 = vunpack.c.l.s4 1966171168
      %v1728 = vunpack.c.0.s8 %v1727
      %v1729 = vlaneseq
      %v1730 = vshrl.u32 %v1729, 7
      %v1731 = vsub.s32 %v1728, %v1730
      %v1732 = vrot.slane %v1711, %v1731
      %v1734 = vunpack.c.l.s4 1966171168
      %v1735 = vunpack.c.0.s8 %v1734
      %v1736 = vlaneseq
      %v1737 = vshrl.u32 %v1736, 7
      %v1738 = vsub.s32 %v1735, %v1737
      %v1739 = vrot.slane %v1416, %v1738
      %v1740 = vcombine.low %v1718, %v1725
      %v1741 = vcombine.low %v1732, %v1739
      %v1743 = vunpack.c.l.s4 1966171168
      %v1744 = vunpack.c.0.s8 %v1743
      %v1745 = vlaneseq
      %v1746 = vshrl.u32 %v1745, 7
      %v1747 = vsub.s32 %v1744, %v1746
      %v1748 = vrot.slane %v1740, %v1747
      %v1750 = vunpack.c.l.s4 1966171168
      %v1751 = vunpack.c.0.s8 %v1750
      %v1752 = vlaneseq
      %v1753 = vshrl.u32 %v1752, 7
      %v1754 = vsub.s32 %v1751, %v1753
      %v1755 = vrot.slane %v1741, %v1754
      %v1756 = vcombine.low %v1748, %v1755
      %v1757 = vcombine.low %v1399, %v1413
      %v1758 = vcombine.low %v1415, %v1417
      %v1759 = vcombine.low %v1441, %v1455
      %v1761 = vunpack.c.l.s4 1966171168
      %v1762 = vunpack.c.0.s8 %v1761
      %v1763 = vlaneseq
      %v1764 = vshrl.u32 %v1763, 7
      %v1765 = vsub.s32 %v1762, %v1764
      %v1766 = vrot.slane %v1757, %v1765
      %v1768 = vunpack.c.l.s4 1966171168
      %v1769 = vunpack.c.0.s8 %v1768
      %v1770 = vlaneseq
      %v1771 = vshrl.u32 %v1770, 7
      %v1772 = vsub.s32 %v1769, %v1771
      %v1773 = vrot.slane %v1758, %v1772
      %v1775 = vunpack.c.l.s4 1966171168
      %v1776 = vunpack.c.0.s8 %v1775
      %v1777 = vlaneseq
      %v1778 = vshrl.u32 %v1777, 7
      %v1779 = vsub.s32 %v1776, %v1778
      %v1780 = vrot.slane %v1759, %v1779
      %v1782 = vunpack.c.l.s4 1966171168
      %v1783 = vunpack.c.0.s8 %v1782
      %v1784 = vlaneseq
      %v1785 = vshrl.u32 %v1784, 7
      %v1786 = vsub.s32 %v1783, %v1785
      %v1787 = vrot.slane %v1463, %v1786
      %v1788 = vcombine.low %v1766, %v1773
      %v1789 = vcombine.low %v1780, %v1787
      %v1791 = vunpack.c.l.s4 1966171168
      %v1792 = vunpack.c.0.s8 %v1791
      %v1793 = vlaneseq
      %v1794 = vshrl.u32 %v1793, 7
      %v1795 = vsub.s32 %v1792, %v1794
      %v1796 = vrot.slane %v1788, %v1795
      %v1798 = vunpack.c.l.s4 1966171168
      %v1799 = vunpack.c.0.s8 %v1798
      %v1800 = vlaneseq
      %v1801 = vshrl.u32 %v1800, 7
      %v1802 = vsub.s32 %v1799, %v1801
      %v1803 = vrot.slane %v1789, %v1802
      %v1804 = vcombine.low %v1796, %v1803
      %v1805 = vcombine.low %v1465, %v1448
      %v1806 = vcombine.low %v1462, %v1464
      %v1807 = vcombine.low %v1466, %v1490
      %v1809 = vunpack.c.l.s4 1966171168
      %v1810 = vunpack.c.0.s8 %v1809
      %v1811 = vlaneseq
      %v1812 = vshrl.u32 %v1811, 7
      %v1813 = vsub.s32 %v1810, %v1812
      %v1814 = vrot.slane %v1805, %v1813
      %v1816 = vunpack.c.l.s4 1966171168
      %v1817 = vunpack.c.0.s8 %v1816
      %v1818 = vlaneseq
      %v1819 = vshrl.u32 %v1818, 7
      %v1820 = vsub.s32 %v1817, %v1819
      %v1821 = vrot.slane %v1806, %v1820
      %v1823 = vunpack.c.l.s4 1966171168
      %v1824 = vunpack.c.0.s8 %v1823
      %v1825 = vlaneseq
      %v1826 = vshrl.u32 %v1825, 7
      %v1827 = vsub.s32 %v1824, %v1826
      %v1828 = vrot.slane %v1807, %v1827
      %v1830 = vunpack.c.l.s4 1966171168
      %v1831 = vunpack.c.0.s8 %v1830
      %v1832 = vlaneseq
      %v1833 = vshrl.u32 %v1832, 7
      %v1834 = vsub.s32 %v1831, %v1833
      %v1835 = vrot.slane %v1504, %v1834
      %v1836 = vcombine.low %v1814, %v1821
      %v1837 = vcombine.low %v1828, %v1835
      %v1839 = vunpack.c.l.s4 1966171168
      %v1840 = vunpack.c.0.s8 %v1839
      %v1841 = vlaneseq
      %v1842 = vshrl.u32 %v1841, 7
      %v1843 = vsub.s32 %v1840, %v1842
      %v1844 = vrot.slane %v1836, %v1843
      %v1846 = vunpack.c.l.s4 1966171168
      %v1847 = vunpack.c.0.s8 %v1846
      %v1848 = vlaneseq
      %v1849 = vshrl.u32 %v1848, 7
      %v1850 = vsub.s32 %v1847, %v1849
      %v1851 = vrot.slane %v1837, %v1850
      %v1852 = vcombine.low %v1844, %v1851
      %v1853 = vcombine.low %v1512, %v1514
      %v1854 = vcombine.low %v1497, %v1511
      %v1855 = vcombine.low %v1513, %v1515
      %v1857 = vunpack.c.l.s4 1966171168
      %v1858 = vunpack.c.0.s8 %v1857
      %v1859 = vlaneseq
      %v1860 = vshrl.u32 %v1859, 7
      %v1861 = vsub.s32 %v1858, %v1860
      %v1862 = vrot.slane %v1853, %v1861
      %v1864 = vunpack.c.l.s4 1966171168
      %v1865 = vunpack.c.0.s8 %v1864
      %v1866 = vlaneseq
      %v1867 = vshrl.u32 %v1866, 7
      %v1868 = vsub.s32 %v1865, %v1867
      %v1869 = vrot.slane %v1854, %v1868
      %v1871 = vunpack.c.l.s4 1966171168
      %v1872 = vunpack.c.0.s8 %v1871
      %v1873 = vlaneseq
      %v1874 = vshrl.u32 %v1873, 7
      %v1875 = vsub.s32 %v1872, %v1874
      %v1876 = vrot.slane %v1855, %v1875
      %v1878 = vunpack.c.l.s4 1966171168
      %v1879 = vunpack.c.0.s8 %v1878
      %v1880 = vlaneseq
      %v1881 = vshrl.u32 %v1880, 7
      %v1882 = vsub.s32 %v1879, %v1881
      %v1883 = vrot.slane %v1539, %v1882
      %v1884 = vcombine.low %v1862, %v1869
      %v1885 = vcombine.low %v1876, %v1883
      %v1887 = vunpack.c.l.s4 1966171168
      %v1888 = vunpack.c.0.s8 %v1887
      %v1889 = vlaneseq
      %v1890 = vshrl.u32 %v1889, 7
      %v1891 = vsub.s32 %v1888, %v1890
      %v1892 = vrot.slane %v1884, %v1891
      %v1894 = vunpack.c.l.s4 1966171168
      %v1895 = vunpack.c.0.s8 %v1894
      %v1896 = vlaneseq
      %v1897 = vshrl.u32 %v1896, 7
      %v1898 = vsub.s32 %v1895, %v1897
      %v1899 = vrot.slane %v1885, %v1898
      %v1900 = vcombine.low %v1892, %v1899
      %v1901 = vcombine.low %v1553, %v1561
      %v1902 = vcombine.low %v1563, %v1546
      %v1903 = vcombine.low %v1560, %v1562
      %v1905 = vunpack.c.l.s4 1966171168
      %v1906 = vunpack.c.0.s8 %v1905
      %v1907 = vlaneseq
      %v1908 = vshrl.u32 %v1907, 7
      %v1909 = vsub.s32 %v1906, %v1908
      %v1910 = vrot.slane %v1901, %v1909
      %v1912 = vunpack.c.l.s4 1966171168
      %v1913 = vunpack.c.0.s8 %v1912
      %v1914 = vlaneseq
      %v1915 = vshrl.u32 %v1914, 7
      %v1916 = vsub.s32 %v1913, %v1915
      %v1917 = vrot.slane %v1902, %v1916
      %v1919 = vunpack.c.l.s4 1966171168
      %v1920 = vunpack.c.0.s8 %v1919
      %v1921 = vlaneseq
      %v1922 = vshrl.u32 %v1921, 7
      %v1923 = vsub.s32 %v1920, %v1922
      %v1924 = vrot.slane %v1903, %v1923
      %v1926 = vunpack.c.l.s4 1966171168
      %v1927 = vunpack.c.0.s8 %v1926
      %v1928 = vlaneseq
      %v1929 = vshrl.u32 %v1928, 7
      %v1930 = vsub.s32 %v1927, %v1929
      %v1931 = vrot.slane %v1564, %v1930
      %v1932 = vcombine.low %v1910, %v1917
      %v1933 = vcombine.low %v1924, %v1931
      %v1935 = vunpack.c.l.s4 1966171168
      %v1936 = vunpack.c.0.s8 %v1935
      %v1937 = vlaneseq
      %v1938 = vshrl.u32 %v1937, 7
      %v1939 = vsub.s32 %v1936, %v1938
      %v1940 = vrot.slane %v1932, %v1939
      %v1942 = vunpack.c.l.s4 1966171168
      %v1943 = vunpack.c.0.s8 %v1942
      %v1944 = vlaneseq
      %v1945 = vshrl.u32 %v1944, 7
      %v1946 = vsub.s32 %v1943, %v1945
      %v1947 = vrot.slane %v1933, %v1946
      %v1948 = vcombine.low %v1940, %v1947
      %vm1957 = vcmask 260096
      %1958 = vst.msk [vmem:[#allocation2 + $0x1] sm:$0x7f] %vm1957, %v1612
      %1959 = vst.msk [vmem:[#allocation2 + $0x9] sm:$0x7f] %vm1957, %v1660
      %1960 = vst.msk [vmem:[#allocation2 + $0x11] sm:$0x7f] %vm1957, %v1708
      %1961 = vst.msk [vmem:[#allocation2 + $0x19] sm:$0x7f] %vm1957, %v1756
      %1962 = vst.msk [vmem:[#allocation2 + $0x21] sm:$0x7f] %vm1957, %v1804
      %1963 = vst.msk [vmem:[#allocation2 + $0x29] sm:$0x7f] %vm1957, %v1852
      %1964 = vst.msk [vmem:[#allocation2 + $0x31] sm:$0x7f] %vm1957, %v1900
      %1965 = vst.msk [vmem:[#allocation2 + $0x39] sm:$0x7f] %vm1957, %v1948
      %v1966 = vld [vmem:[#allocation2] sm:$0xff]
      %v1967 = vld [vmem:[#allocation2 + $0x8] sm:$0xff]
      %v1968 = vld [vmem:[#allocation2 + $0x10] sm:$0xff]
      %v1969 = vld [vmem:[#allocation2 + $0x18] sm:$0xff]
      %v1970 = vld [vmem:[#allocation2 + $0x20] sm:$0xff]
      %v1971 = vld [vmem:[#allocation2 + $0x28] sm:$0xff]
      %v1972 = vld [vmem:[#allocation2 + $0x30] sm:$0xff]
      %v1973 = vld [vmem:[#allocation2 + $0x38] sm:$0xff]
      %v1974 = vpack.c.bf16 %v1967, %v1966
      %v1975 = vpack.c.bf16 %v1969, %v1968
      %v1976 = vpack.c.bf16 %v1971, %v1970
      %v1977 = vpack.c.bf16 %v1973, %v1972
      %v1978 = vld [vmem:[%s9] sm:$0xf]
      %v1979 = vld [vmem:[%s9 + $0x4] sm:$0xf]
      %v1980 = vld [vmem:[%s9 + $0x8] sm:$0xf]
      %v1981 = vld [vmem:[%s9 + $0xc] sm:$0xf]
      %v1982 = vld [vmem:[%s10] sm:$0x1]
      %v1984 = vlaneseq
      %v1985 = vshrl.u32 %v1984, 7
      %v1986 = vsub.s32 0, %v1985
      %v1987 = vrot.slane %v1982, %v1986
      %v1993 = vunpack.c.l.b16 %v1978
      %v1994 = vunpack.c.l.b16 %v1979
      %v1995 = vunpack.c.l.b16 %v1980
      %v1996 = vunpack.c.l.b16 %v1981
      %v1997 = vpack.c.b16 %v1994, %v1993
      %v1998 = vpack.c.b16 %v1996, %v1995
      %v2002 = vsel %vm850, %v1974, 0
      %v2005 = vsel %vm850, %v1975, 0
      %v2008 = vsel %vm850, %v1976, 0
      %v2011 = vsel %vm850, %v1977, 0
      %2013 = vmatprep.subr.bf16.mxu0 0
      %2014 = vmatpush1.bf16.msra.mxu0 0
      %2015 = vmatprep.subr.bf16.mxu0 0
      %2016 = vmatpush1.bf16.msra.mxu0 0
      %2017 = vmatprep.subr.bf16.mxu0 0
      %2018 = vmatpush1.bf16.msra.mxu0 0
      %2019 = vmatprep.subr.bf16.mxu0 0
      %2020 = vmatpush1.bf16.msra.mxu0 0
      %2021 = vmatprep.subr.bf16.mxu0 0
      %2022 = vmatpush1.bf16.msra.mxu0 0
      %2023 = vmatprep.subr.bf16.mxu0 0
      %2024 = vmatpush1.bf16.msra.mxu0 0
      %2025 = vmatprep.subr.bf16.mxu0 0
      %2026 = vmatpush1.bf16.msra.mxu0 %v1998
      %2027 = vmatprep.subr.bf16.mxu0 0
      %2028 = vmatpush1.bf16.msra.mxu0 %v1997
      %2029 = vmatprep.subr.bf16.mxu0 0
      %2030 = vmatpush2.bf16.msra.mxu0 0
      %2031 = vmatprep.subr.bf16.mxu0 0
      %2032 = vmatpush2.bf16.msra.mxu0 0
      %2033 = vmatprep.subr.bf16.mxu0 0
      %2034 = vmatpush2.bf16.msra.mxu0 0
      %2035 = vmatprep.subr.bf16.mxu0 0
      %2036 = vmatpush2.bf16.msra.mxu0 0
      %2037 = vmatprep.subr.bf16.mxu0 0
      %2038 = vmatpush2.bf16.msra.mxu0 0
      %2039 = vmatprep.subr.bf16.mxu0 0
      %2040 = vmatpush2.bf16.msra.mxu0 0
      %2041 = vmatprep.subr.bf16.mxu0 0
      %2042 = vmatpush2.bf16.msra.mxu0 0
      %2043 = vmatprep.subr.bf16.mxu0 0
      %2044 = vmatpush2.bf16.msra.mxu0 0
      %2045 = vmatprep.mubr.bf16.mxu0 0
      %2046 = vmatmul.mubr.bf16.gmra.mxu0 %v2002
      %v2047 = vpop.f32.mrf.mxu0
      %v2048 = vadd.f32 %v1987, %v2047
      %v2049 = vpop.f32.mrf.mxu0
      %v2050 = vpop.f32.mrf.mxu0
      %v2051 = vadd.f32 %v1987, %v2050
      %v2052 = vpop.f32.mrf.mxu0
      %2053 = vmatprep.mubr.bf16.mxu0 0
      %2054 = vmatmul.mubr.bf16.gmra.mxu0 %v2005
      %v2055 = vpop.f32.mrf.mxu0
      %v2056 = vadd.f32 %v1987, %v2055
      %v2057 = vpop.f32.mrf.mxu0
      %v2058 = vpop.f32.mrf.mxu0
      %v2059 = vadd.f32 %v1987, %v2058
      %v2060 = vpop.f32.mrf.mxu0
      %2061 = vmatprep.mubr.bf16.mxu0 0
      %2062 = vmatmul.mubr.bf16.gmra.mxu0 %v2008
      %v2063 = vpop.f32.mrf.mxu0
      %v2064 = vadd.f32 %v1987, %v2063
      %v2065 = vpop.f32.mrf.mxu0
      %v2066 = vpop.f32.mrf.mxu0
      %v2067 = vadd.f32 %v1987, %v2066
      %v2068 = vpop.f32.mrf.mxu0
      %2069 = vmatprep.mubr.bf16.mxu0 0
      %2070 = vmatmul.mubr.bf16.gmra.mxu0 %v2011
      %v2071 = vpop.f32.mrf.mxu0
      %v2072 = vadd.f32 %v1987, %v2071
      %v2073 = vpop.f32.mrf.mxu0
      %v2074 = vpop.f32.mrf.mxu0
      %v2075 = vadd.f32 %v1987, %v2074
      %v2076 = vpop.f32.mrf.mxu0
      %2077 = vdwg.mxu0
      %2079 = vrot.lane.b32.xlu0 %v2048, 96
      %v2080 = vpop.permute.xlu0 %2079
      %v2081 = vsel %vm850, %v2048, 0
      %v2083 = vsel %vm850, %v2080, 0
      %2085 = vmatprep.subr.mxu0 0.0
      %2086 = vmatpush1.xpose.msra.mxu0 0.0
      %2087 = vmatprep.subr.mxu0 0.0
      %2088 = vmatpush1.xpose.msra.mxu0 0.0
      %2089 = vmatprep.subr.mxu0 0.0
      %2090 = vmatpush1.xpose.msra.mxu0 0.0
      %2091 = vmatprep.subr.mxu0 0.0
      %2092 = vmatpush1.xpose.msra.mxu0 0.0
      %2093 = vmatprep.subr.mxu0 0.0
      %2094 = vmatpush1.xpose.msra.mxu0 0.0
      %2095 = vmatprep.subr.mxu0 0.0
      %2096 = vmatpush1.xpose.msra.mxu0 0.0
      %2097 = vmatprep.subr.mxu0 0.0
      %2098 = vmatpush1.xpose.msra.mxu0 0.0
      %2099 = vmatprep.subr.mxu0 0.0
      %2100 = vmatpush1.xpose.msra.mxu0 0.0
      %2101 = vmatprep.subr.mxu0 0.0
      %2102 = vmatpush1.xpose.msra.mxu0 0.0
      %2103 = vmatprep.subr.mxu0 0.0
      %2104 = vmatpush1.xpose.msra.mxu0 0.0
      %2105 = vmatprep.subr.mxu0 0.0
      %2106 = vmatpush1.xpose.msra.mxu0 0.0
      %2107 = vmatprep.subr.mxu0 0.0
      %2108 = vmatpush1.xpose.msra.mxu0 0.0
      %2109 = vmatprep.subr.mxu0 0.0
      %2110 = vmatpush1.xpose.msra.mxu0 0.0
      %2111 = vmatprep.subr.mxu0 0.0
      %2112 = vmatpush1.xpose.msra.mxu0 0.0
      %2113 = vmatprep.subr.mxu0 0.0
      %2114 = vmatpush1.xpose.msra.mxu0 0.0
      %2115 = vmatprep.subr.mxu0 0.0
      %2116 = vmatpush1.xpose.msra.mxu0 %v2083
      %2117 = vmatprep.subr.mxu0 0.0
      %2118 = vmatpush2.xpose.msra.mxu0 0.0
      %2119 = vmatprep.subr.mxu0 0.0
      %2120 = vmatpush2.xpose.msra.mxu0 0.0
      %2121 = vmatprep.subr.mxu0 0.0
      %2122 = vmatpush2.xpose.msra.mxu0 0.0
      %2123 = vmatprep.subr.mxu0 0.0
      %2124 = vmatpush2.xpose.msra.mxu0 0.0
      %2125 = vmatprep.subr.mxu0 0.0
      %2126 = vmatpush2.xpose.msra.mxu0 0.0
      %2127 = vmatprep.subr.mxu0 0.0
      %2128 = vmatpush2.xpose.msra.mxu0 0.0
      %2129 = vmatprep.subr.mxu0 0.0
      %2130 = vmatpush2.xpose.msra.mxu0 0.0
      %2131 = vmatprep.subr.mxu0 0.0
      %2132 = vmatpush2.xpose.msra.mxu0 0.0
      %2133 = vmatprep.subr.mxu0 0.0
      %2134 = vmatpush2.xpose.msra.mxu0 0.0
      %2135 = vmatprep.subr.mxu0 0.0
      %2136 = vmatpush2.xpose.msra.mxu0 0.0
      %2137 = vmatprep.subr.mxu0 0.0
      %2138 = vmatpush2.xpose.msra.mxu0 0.0
      %2139 = vmatprep.subr.mxu0 0.0
      %2140 = vmatpush2.xpose.msra.mxu0 0.0
      %2141 = vmatprep.subr.mxu0 0.0
      %2142 = vmatpush2.xpose.msra.mxu0 0.0
      %2143 = vmatprep.subr.mxu0 0.0
      %2144 = vmatpush2.xpose.msra.mxu0 0.0
      %2145 = vmatprep.subr.mxu0 0.0
      %2146 = vmatpush2.xpose.msra.mxu0 0.0
      %2147 = vmatprep.subr.mxu0 0.0
      %2148 = vmatpush2.xpose.msra.mxu0 0.0
      %2149 = vmatprep.mubr.f32.mxu0 0.0
      %2150 = vmatmul.mubr.f32.gmra.mxu0 %v2081
      %v2151 = vpop.f32.mrf.mxu0
      %v2152 = vadd.f32 0.0, %v2151
      %v2153 = vpop.f32.mrf.mxu0
      %2154 = vdwg.mxu0
      %2156 = vrot.lane.b32.xlu0 %v2051, 96
      %v2157 = vpop.permute.xlu0 %2156
      %v2158 = vsel %vm850, %v2051, 0
      %v2160 = vsel %vm850, %v2157, 0
      %2162 = vmatprep.subr.mxu0 0.0
      %2163 = vmatpush1.xpose.msra.mxu0 0.0
      %2164 = vmatprep.subr.mxu0 0.0
      %2165 = vmatpush1.xpose.msra.mxu0 0.0
      %2166 = vmatprep.subr.mxu0 0.0
      %2167 = vmatpush1.xpose.msra.mxu0 0.0
      %2168 = vmatprep.subr.mxu0 0.0
      %2169 = vmatpush1.xpose.msra.mxu0 0.0
      %2170 = vmatprep.subr.mxu0 0.0
      %2171 = vmatpush1.xpose.msra.mxu0 0.0
      %2172 = vmatprep.subr.mxu0 0.0
      %2173 = vmatpush1.xpose.msra.mxu0 0.0
      %2174 = vmatprep.subr.mxu0 0.0
      %2175 = vmatpush1.xpose.msra.mxu0 0.0
      %2176 = vmatprep.subr.mxu0 0.0
      %2177 = vmatpush1.xpose.msra.mxu0 0.0
      %2178 = vmatprep.subr.mxu0 0.0
      %2179 = vmatpush1.xpose.msra.mxu0 0.0
      %2180 = vmatprep.subr.mxu0 0.0
      %2181 = vmatpush1.xpose.msra.mxu0 0.0
      %2182 = vmatprep.subr.mxu0 0.0
      %2183 = vmatpush1.xpose.msra.mxu0 0.0
      %2184 = vmatprep.subr.mxu0 0.0
      %2185 = vmatpush1.xpose.msra.mxu0 0.0
      %2186 = vmatprep.subr.mxu0 0.0
      %2187 = vmatpush1.xpose.msra.mxu0 0.0
      %2188 = vmatprep.subr.mxu0 0.0
      %2189 = vmatpush1.xpose.msra.mxu0 0.0
      %2190 = vmatprep.subr.mxu0 0.0
      %2191 = vmatpush1.xpose.msra.mxu0 0.0
      %2192 = vmatprep.subr.mxu0 0.0
      %2193 = vmatpush1.xpose.msra.mxu0 %v2160
      %2194 = vmatprep.subr.mxu0 0.0
      %2195 = vmatpush2.xpose.msra.mxu0 0.0
      %2196 = vmatprep.subr.mxu0 0.0
      %2197 = vmatpush2.xpose.msra.mxu0 0.0
      %2198 = vmatprep.subr.mxu0 0.0
      %2199 = vmatpush2.xpose.msra.mxu0 0.0
      %2200 = vmatprep.subr.mxu0 0.0
      %2201 = vmatpush2.xpose.msra.mxu0 0.0
      %2202 = vmatprep.subr.mxu0 0.0
      %2203 = vmatpush2.xpose.msra.mxu0 0.0
      %2204 = vmatprep.subr.mxu0 0.0
      %2205 = vmatpush2.xpose.msra.mxu0 0.0
      %2206 = vmatprep.subr.mxu0 0.0
      %2207 = vmatpush2.xpose.msra.mxu0 0.0
      %2208 = vmatprep.subr.mxu0 0.0
      %2209 = vmatpush2.xpose.msra.mxu0 0.0
      %2210 = vmatprep.subr.mxu0 0.0
      %2211 = vmatpush2.xpose.msra.mxu0 0.0
      %2212 = vmatprep.subr.mxu0 0.0
      %2213 = vmatpush2.xpose.msra.mxu0 0.0
      %2214 = vmatprep.subr.mxu0 0.0
      %2215 = vmatpush2.xpose.msra.mxu0 0.0
      %2216 = vmatprep.subr.mxu0 0.0
      %2217 = vmatpush2.xpose.msra.mxu0 0.0
      %2218 = vmatprep.subr.mxu0 0.0
      %2219 = vmatpush2.xpose.msra.mxu0 0.0
      %2220 = vmatprep.subr.mxu0 0.0
      %2221 = vmatpush2.xpose.msra.mxu0 0.0
      %2222 = vmatprep.subr.mxu0 0.0
      %2223 = vmatpush2.xpose.msra.mxu0 0.0
      %2224 = vmatprep.subr.mxu0 0.0
      %2225 = vmatpush2.xpose.msra.mxu0 0.0
      %2226 = vmatprep.mubr.f32.mxu0 0.0
      %2227 = vmatmul.mubr.f32.gmra.mxu0 %v2158
      %v2228 = vpop.f32.mrf.mxu0
      %v2229 = vadd.f32 0.0, %v2228
      %v2230 = vpop.f32.mrf.mxu0
      %2231 = vdwg.mxu0
      %2233 = vrot.lane.b32.xlu0 %v2056, 96
      %v2234 = vpop.permute.xlu0 %2233
      %v2235 = vsel %vm850, %v2056, 0
      %v2237 = vsel %vm850, %v2234, 0
      %2239 = vmatprep.subr.mxu0 0.0
      %2240 = vmatpush1.xpose.msra.mxu0 0.0
      %2241 = vmatprep.subr.mxu0 0.0
      %2242 = vmatpush1.xpose.msra.mxu0 0.0
      %2243 = vmatprep.subr.mxu0 0.0
      %2244 = vmatpush1.xpose.msra.mxu0 0.0
      %2245 = vmatprep.subr.mxu0 0.0
      %2246 = vmatpush1.xpose.msra.mxu0 0.0
      %2247 = vmatprep.subr.mxu0 0.0
      %2248 = vmatpush1.xpose.msra.mxu0 0.0
      %2249 = vmatprep.subr.mxu0 0.0
      %2250 = vmatpush1.xpose.msra.mxu0 0.0
      %2251 = vmatprep.subr.mxu0 0.0
      %2252 = vmatpush1.xpose.msra.mxu0 0.0
      %2253 = vmatprep.subr.mxu0 0.0
      %2254 = vmatpush1.xpose.msra.mxu0 0.0
      %2255 = vmatprep.subr.mxu0 0.0
      %2256 = vmatpush1.xpose.msra.mxu0 0.0
      %2257 = vmatprep.subr.mxu0 0.0
      %2258 = vmatpush1.xpose.msra.mxu0 0.0
      %2259 = vmatprep.subr.mxu0 0.0
      %2260 = vmatpush1.xpose.msra.mxu0 0.0
      %2261 = vmatprep.subr.mxu0 0.0
      %2262 = vmatpush1.xpose.msra.mxu0 0.0
      %2263 = vmatprep.subr.mxu0 0.0
      %2264 = vmatpush1.xpose.msra.mxu0 0.0
      %2265 = vmatprep.subr.mxu0 0.0
      %2266 = vmatpush1.xpose.msra.mxu0 0.0
      %2267 = vmatprep.subr.mxu0 0.0
      %2268 = vmatpush1.xpose.msra.mxu0 0.0
      %2269 = vmatprep.subr.mxu0 0.0
      %2270 = vmatpush1.xpose.msra.mxu0 %v2237
      %2271 = vmatprep.subr.mxu0 0.0
      %2272 = vmatpush2.xpose.msra.mxu0 0.0
      %2273 = vmatprep.subr.mxu0 0.0
      %2274 = vmatpush2.xpose.msra.mxu0 0.0
      %2275 = vmatprep.subr.mxu0 0.0
      %2276 = vmatpush2.xpose.msra.mxu0 0.0
      %2277 = vmatprep.subr.mxu0 0.0
      %2278 = vmatpush2.xpose.msra.mxu0 0.0
      %2279 = vmatprep.subr.mxu0 0.0
      %2280 = vmatpush2.xpose.msra.mxu0 0.0
      %2281 = vmatprep.subr.mxu0 0.0
      %2282 = vmatpush2.xpose.msra.mxu0 0.0
      %2283 = vmatprep.subr.mxu0 0.0
      %2284 = vmatpush2.xpose.msra.mxu0 0.0
      %2285 = vmatprep.subr.mxu0 0.0
      %2286 = vmatpush2.xpose.msra.mxu0 0.0
      %2287 = vmatprep.subr.mxu0 0.0
      %2288 = vmatpush2.xpose.msra.mxu0 0.0
      %2289 = vmatprep.subr.mxu0 0.0
      %2290 = vmatpush2.xpose.msra.mxu0 0.0
      %2291 = vmatprep.subr.mxu0 0.0
      %2292 = vmatpush2.xpose.msra.mxu0 0.0
      %2293 = vmatprep.subr.mxu0 0.0
      %2294 = vmatpush2.xpose.msra.mxu0 0.0
      %2295 = vmatprep.subr.mxu0 0.0
      %2296 = vmatpush2.xpose.msra.mxu0 0.0
      %2297 = vmatprep.subr.mxu0 0.0
      %2298 = vmatpush2.xpose.msra.mxu0 0.0
      %2299 = vmatprep.subr.mxu0 0.0
      %2300 = vmatpush2.xpose.msra.mxu0 0.0
      %2301 = vmatprep.subr.mxu0 0.0
      %2302 = vmatpush2.xpose.msra.mxu0 0.0
      %2303 = vmatprep.mubr.f32.mxu0 0.0
      %2304 = vmatmul.mubr.f32.gmra.mxu0 %v2235
      %v2305 = vpop.f32.mrf.mxu0
      %v2306 = vadd.f32 0.0, %v2305
      %v2307 = vpop.f32.mrf.mxu0
      %2308 = vdwg.mxu0
      %2310 = vrot.lane.b32.xlu0 %v2059, 96
      %v2311 = vpop.permute.xlu0 %2310
      %v2312 = vsel %vm850, %v2059, 0
      %v2314 = vsel %vm850, %v2311, 0
      %2316 = vmatprep.subr.mxu0 0.0
      %2317 = vmatpush1.xpose.msra.mxu0 0.0
      %2318 = vmatprep.subr.mxu0 0.0
      %2319 = vmatpush1.xpose.msra.mxu0 0.0
      %2320 = vmatprep.subr.mxu0 0.0
      %2321 = vmatpush1.xpose.msra.mxu0 0.0
      %2322 = vmatprep.subr.mxu0 0.0
      %2323 = vmatpush1.xpose.msra.mxu0 0.0
      %2324 = vmatprep.subr.mxu0 0.0
      %2325 = vmatpush1.xpose.msra.mxu0 0.0
      %2326 = vmatprep.subr.mxu0 0.0
      %2327 = vmatpush1.xpose.msra.mxu0 0.0
      %2328 = vmatprep.subr.mxu0 0.0
      %2329 = vmatpush1.xpose.msra.mxu0 0.0
      %2330 = vmatprep.subr.mxu0 0.0
      %2331 = vmatpush1.xpose.msra.mxu0 0.0
      %2332 = vmatprep.subr.mxu0 0.0
      %2333 = vmatpush1.xpose.msra.mxu0 0.0
      %2334 = vmatprep.subr.mxu0 0.0
      %2335 = vmatpush1.xpose.msra.mxu0 0.0
      %2336 = vmatprep.subr.mxu0 0.0
      %2337 = vmatpush1.xpose.msra.mxu0 0.0
      %2338 = vmatprep.subr.mxu0 0.0
      %2339 = vmatpush1.xpose.msra.mxu0 0.0
      %2340 = vmatprep.subr.mxu0 0.0
      %2341 = vmatpush1.xpose.msra.mxu0 0.0
      %2342 = vmatprep.subr.mxu0 0.0
      %2343 = vmatpush1.xpose.msra.mxu0 0.0
      %2344 = vmatprep.subr.mxu0 0.0
      %2345 = vmatpush1.xpose.msra.mxu0 0.0
      %2346 = vmatprep.subr.mxu0 0.0
      %2347 = vmatpush1.xpose.msra.mxu0 %v2314
      %2348 = vmatprep.subr.mxu0 0.0
      %2349 = vmatpush2.xpose.msra.mxu0 0.0
      %2350 = vmatprep.subr.mxu0 0.0
      %2351 = vmatpush2.xpose.msra.mxu0 0.0
      %2352 = vmatprep.subr.mxu0 0.0
      %2353 = vmatpush2.xpose.msra.mxu0 0.0
      %2354 = vmatprep.subr.mxu0 0.0
      %2355 = vmatpush2.xpose.msra.mxu0 0.0
      %2356 = vmatprep.subr.mxu0 0.0
      %2357 = vmatpush2.xpose.msra.mxu0 0.0
      %2358 = vmatprep.subr.mxu0 0.0
      %2359 = vmatpush2.xpose.msra.mxu0 0.0
      %2360 = vmatprep.subr.mxu0 0.0
      %2361 = vmatpush2.xpose.msra.mxu0 0.0
      %2362 = vmatprep.subr.mxu0 0.0
      %2363 = vmatpush2.xpose.msra.mxu0 0.0
      %2364 = vmatprep.subr.mxu0 0.0
      %2365 = vmatpush2.xpose.msra.mxu0 0.0
      %2366 = vmatprep.subr.mxu0 0.0
      %2367 = vmatpush2.xpose.msra.mxu0 0.0
      %2368 = vmatprep.subr.mxu0 0.0
      %2369 = vmatpush2.xpose.msra.mxu0 0.0
      %2370 = vmatprep.subr.mxu0 0.0
      %2371 = vmatpush2.xpose.msra.mxu0 0.0
      %2372 = vmatprep.subr.mxu0 0.0
      %2373 = vmatpush2.xpose.msra.mxu0 0.0
      %2374 = vmatprep.subr.mxu0 0.0
      %2375 = vmatpush2.xpose.msra.mxu0 0.0
      %2376 = vmatprep.subr.mxu0 0.0
      %2377 = vmatpush2.xpose.msra.mxu0 0.0
      %2378 = vmatprep.subr.mxu0 0.0
      %2379 = vmatpush2.xpose.msra.mxu0 0.0
      %2380 = vmatprep.mubr.f32.mxu0 0.0
      %2381 = vmatmul.mubr.f32.gmra.mxu0 %v2312
      %v2382 = vpop.f32.mrf.mxu0
      %v2383 = vadd.f32 0.0, %v2382
      %v2384 = vpop.f32.mrf.mxu0
      %2385 = vdwg.mxu0
      %2387 = vrot.lane.b32.xlu0 %v2064, 96
      %v2388 = vpop.permute.xlu0 %2387
      %v2389 = vsel %vm850, %v2064, 0
      %v2391 = vsel %vm850, %v2388, 0
      %2393 = vmatprep.subr.mxu0 0.0
      %2394 = vmatpush1.xpose.msra.mxu0 0.0
      %2395 = vmatprep.subr.mxu0 0.0
      %2396 = vmatpush1.xpose.msra.mxu0 0.0
      %2397 = vmatprep.subr.mxu0 0.0
      %2398 = vmatpush1.xpose.msra.mxu0 0.0
      %2399 = vmatprep.subr.mxu0 0.0
      %2400 = vmatpush1.xpose.msra.mxu0 0.0
      %2401 = vmatprep.subr.mxu0 0.0
      %2402 = vmatpush1.xpose.msra.mxu0 0.0
      %2403 = vmatprep.subr.mxu0 0.0
      %2404 = vmatpush1.xpose.msra.mxu0 0.0
      %2405 = vmatprep.subr.mxu0 0.0
      %2406 = vmatpush1.xpose.msra.mxu0 0.0
      %2407 = vmatprep.subr.mxu0 0.0
      %2408 = vmatpush1.xpose.msra.mxu0 0.0
      %2409 = vmatprep.subr.mxu0 0.0
      %2410 = vmatpush1.xpose.msra.mxu0 0.0
      %2411 = vmatprep.subr.mxu0 0.0
      %2412 = vmatpush1.xpose.msra.mxu0 0.0
      %2413 = vmatprep.subr.mxu0 0.0
      %2414 = vmatpush1.xpose.msra.mxu0 0.0
      %2415 = vmatprep.subr.mxu0 0.0
      %2416 = vmatpush1.xpose.msra.mxu0 0.0
      %2417 = vmatprep.subr.mxu0 0.0
      %2418 = vmatpush1.xpose.msra.mxu0 0.0
      %2419 = vmatprep.subr.mxu0 0.0
      %2420 = vmatpush1.xpose.msra.mxu0 0.0
      %2421 = vmatprep.subr.mxu0 0.0
      %2422 = vmatpush1.xpose.msra.mxu0 0.0
      %2423 = vmatprep.subr.mxu0 0.0
      %2424 = vmatpush1.xpose.msra.mxu0 %v2391
      %2425 = vmatprep.subr.mxu0 0.0
      %2426 = vmatpush2.xpose.msra.mxu0 0.0
      %2427 = vmatprep.subr.mxu0 0.0
      %2428 = vmatpush2.xpose.msra.mxu0 0.0
      %2429 = vmatprep.subr.mxu0 0.0
      %2430 = vmatpush2.xpose.msra.mxu0 0.0
      %2431 = vmatprep.subr.mxu0 0.0
      %2432 = vmatpush2.xpose.msra.mxu0 0.0
      %2433 = vmatprep.subr.mxu0 0.0
      %2434 = vmatpush2.xpose.msra.mxu0 0.0
      %2435 = vmatprep.subr.mxu0 0.0
      %2436 = vmatpush2.xpose.msra.mxu0 0.0
      %2437 = vmatprep.subr.mxu0 0.0
      %2438 = vmatpush2.xpose.msra.mxu0 0.0
      %2439 = vmatprep.subr.mxu0 0.0
      %2440 = vmatpush2.xpose.msra.mxu0 0.0
      %2441 = vmatprep.subr.mxu0 0.0
      %2442 = vmatpush2.xpose.msra.mxu0 0.0
      %2443 = vmatprep.subr.mxu0 0.0
      %2444 = vmatpush2.xpose.msra.mxu0 0.0
      %2445 = vmatprep.subr.mxu0 0.0
      %2446 = vmatpush2.xpose.msra.mxu0 0.0
      %2447 = vmatprep.subr.mxu0 0.0
      %2448 = vmatpush2.xpose.msra.mxu0 0.0
      %2449 = vmatprep.subr.mxu0 0.0
      %2450 = vmatpush2.xpose.msra.mxu0 0.0
      %2451 = vmatprep.subr.mxu0 0.0
      %2452 = vmatpush2.xpose.msra.mxu0 0.0
      %2453 = vmatprep.subr.mxu0 0.0
      %2454 = vmatpush2.xpose.msra.mxu0 0.0
      %2455 = vmatprep.subr.mxu0 0.0
      %2456 = vmatpush2.xpose.msra.mxu0 0.0
      %2457 = vmatprep.mubr.f32.mxu0 0.0
      %2458 = vmatmul.mubr.f32.gmra.mxu0 %v2389
      %v2459 = vpop.f32.mrf.mxu0
      %v2460 = vadd.f32 0.0, %v2459
      %v2461 = vpop.f32.mrf.mxu0
      %2462 = vdwg.mxu0
      %2464 = vrot.lane.b32.xlu0 %v2067, 96
      %v2465 = vpop.permute.xlu0 %2464
      %v2466 = vsel %vm850, %v2067, 0
      %v2468 = vsel %vm850, %v2465, 0
      %2470 = vmatprep.subr.mxu0 0.0
      %2471 = vmatpush1.xpose.msra.mxu0 0.0
      %2472 = vmatprep.subr.mxu0 0.0
      %2473 = vmatpush1.xpose.msra.mxu0 0.0
      %2474 = vmatprep.subr.mxu0 0.0
      %2475 = vmatpush1.xpose.msra.mxu0 0.0
      %2476 = vmatprep.subr.mxu0 0.0
      %2477 = vmatpush1.xpose.msra.mxu0 0.0
      %2478 = vmatprep.subr.mxu0 0.0
      %2479 = vmatpush1.xpose.msra.mxu0 0.0
      %2480 = vmatprep.subr.mxu0 0.0
      %2481 = vmatpush1.xpose.msra.mxu0 0.0
      %2482 = vmatprep.subr.mxu0 0.0
      %2483 = vmatpush1.xpose.msra.mxu0 0.0
      %2484 = vmatprep.subr.mxu0 0.0
      %2485 = vmatpush1.xpose.msra.mxu0 0.0
      %2486 = vmatprep.subr.mxu0 0.0
      %2487 = vmatpush1.xpose.msra.mxu0 0.0
      %2488 = vmatprep.subr.mxu0 0.0
      %2489 = vmatpush1.xpose.msra.mxu0 0.0
      %2490 = vmatprep.subr.mxu0 0.0
      %2491 = vmatpush1.xpose.msra.mxu0 0.0
      %2492 = vmatprep.subr.mxu0 0.0
      %2493 = vmatpush1.xpose.msra.mxu0 0.0
      %2494 = vmatprep.subr.mxu0 0.0
      %2495 = vmatpush1.xpose.msra.mxu0 0.0
      %2496 = vmatprep.subr.mxu0 0.0
      %2497 = vmatpush1.xpose.msra.mxu0 0.0
      %2498 = vmatprep.subr.mxu0 0.0
      %2499 = vmatpush1.xpose.msra.mxu0 0.0
      %2500 = vmatprep.subr.mxu0 0.0
      %2501 = vmatpush1.xpose.msra.mxu0 %v2468
      %2502 = vmatprep.subr.mxu0 0.0
      %2503 = vmatpush2.xpose.msra.mxu0 0.0
      %2504 = vmatprep.subr.mxu0 0.0
      %2505 = vmatpush2.xpose.msra.mxu0 0.0
      %2506 = vmatprep.subr.mxu0 0.0
      %2507 = vmatpush2.xpose.msra.mxu0 0.0
      %2508 = vmatprep.subr.mxu0 0.0
      %2509 = vmatpush2.xpose.msra.mxu0 0.0
      %2510 = vmatprep.subr.mxu0 0.0
      %2511 = vmatpush2.xpose.msra.mxu0 0.0
      %2512 = vmatprep.subr.mxu0 0.0
      %2513 = vmatpush2.xpose.msra.mxu0 0.0
      %2514 = vmatprep.subr.mxu0 0.0
      %2515 = vmatpush2.xpose.msra.mxu0 0.0
      %2516 = vmatprep.subr.mxu0 0.0
      %2517 = vmatpush2.xpose.msra.mxu0 0.0
      %2518 = vmatprep.subr.mxu0 0.0
      %2519 = vmatpush2.xpose.msra.mxu0 0.0
      %2520 = vmatprep.subr.mxu0 0.0
      %2521 = vmatpush2.xpose.msra.mxu0 0.0
      %2522 = vmatprep.subr.mxu0 0.0
      %2523 = vmatpush2.xpose.msra.mxu0 0.0
      %2524 = vmatprep.subr.mxu0 0.0
      %2525 = vmatpush2.xpose.msra.mxu0 0.0
      %2526 = vmatprep.subr.mxu0 0.0
      %2527 = vmatpush2.xpose.msra.mxu0 0.0
      %2528 = vmatprep.subr.mxu0 0.0
      %2529 = vmatpush2.xpose.msra.mxu0 0.0
      %2530 = vmatprep.subr.mxu0 0.0
      %2531 = vmatpush2.xpose.msra.mxu0 0.0
      %2532 = vmatprep.subr.mxu0 0.0
      %2533 = vmatpush2.xpose.msra.mxu0 0.0
      %2534 = vmatprep.mubr.f32.mxu0 0.0
      %2535 = vmatmul.mubr.f32.gmra.mxu0 %v2466
      %v2536 = vpop.f32.mrf.mxu0
      %v2537 = vadd.f32 0.0, %v2536
      %v2538 = vpop.f32.mrf.mxu0
      %2539 = vdwg.mxu0
      %2541 = vrot.lane.b32.xlu0 %v2072, 96
      %v2542 = vpop.permute.xlu0 %2541
      %v2543 = vsel %vm850, %v2072, 0
      %v2545 = vsel %vm850, %v2542, 0
      %2547 = vmatprep.subr.mxu0 0.0
      %2548 = vmatpush1.xpose.msra.mxu0 0.0
      %2549 = vmatprep.subr.mxu0 0.0
      %2550 = vmatpush1.xpose.msra.mxu0 0.0
      %2551 = vmatprep.subr.mxu0 0.0
      %2552 = vmatpush1.xpose.msra.mxu0 0.0
      %2553 = vmatprep.subr.mxu0 0.0
      %2554 = vmatpush1.xpose.msra.mxu0 0.0
      %2555 = vmatprep.subr.mxu0 0.0
      %2556 = vmatpush1.xpose.msra.mxu0 0.0
      %2557 = vmatprep.subr.mxu0 0.0
      %2558 = vmatpush1.xpose.msra.mxu0 0.0
      %2559 = vmatprep.subr.mxu0 0.0
      %2560 = vmatpush1.xpose.msra.mxu0 0.0
      %2561 = vmatprep.subr.mxu0 0.0
      %2562 = vmatpush1.xpose.msra.mxu0 0.0
      %2563 = vmatprep.subr.mxu0 0.0
      %2564 = vmatpush1.xpose.msra.mxu0 0.0
      %2565 = vmatprep.subr.mxu0 0.0
      %2566 = vmatpush1.xpose.msra.mxu0 0.0
      %2567 = vmatprep.subr.mxu0 0.0
      %2568 = vmatpush1.xpose.msra.mxu0 0.0
      %2569 = vmatprep.subr.mxu0 0.0
      %2570 = vmatpush1.xpose.msra.mxu0 0.0
      %2571 = vmatprep.subr.mxu0 0.0
      %2572 = vmatpush1.xpose.msra.mxu0 0.0
      %2573 = vmatprep.subr.mxu0 0.0
      %2574 = vmatpush1.xpose.msra.mxu0 0.0
      %2575 = vmatprep.subr.mxu0 0.0
      %2576 = vmatpush1.xpose.msra.mxu0 0.0
      %2577 = vmatprep.subr.mxu0 0.0
      %2578 = vmatpush1.xpose.msra.mxu0 %v2545
      %2579 = vmatprep.subr.mxu0 0.0
      %2580 = vmatpush2.xpose.msra.mxu0 0.0
      %2581 = vmatprep.subr.mxu0 0.0
      %2582 = vmatpush2.xpose.msra.mxu0 0.0
      %2583 = vmatprep.subr.mxu0 0.0
      %2584 = vmatpush2.xpose.msra.mxu0 0.0
      %2585 = vmatprep.subr.mxu0 0.0
      %2586 = vmatpush2.xpose.msra.mxu0 0.0
      %2587 = vmatprep.subr.mxu0 0.0
      %2588 = vmatpush2.xpose.msra.mxu0 0.0
      %2589 = vmatprep.subr.mxu0 0.0
      %2590 = vmatpush2.xpose.msra.mxu0 0.0
      %2591 = vmatprep.subr.mxu0 0.0
      %2592 = vmatpush2.xpose.msra.mxu0 0.0
      %2593 = vmatprep.subr.mxu0 0.0
      %2594 = vmatpush2.xpose.msra.mxu0 0.0
      %2595 = vmatprep.subr.mxu0 0.0
      %2596 = vmatpush2.xpose.msra.mxu0 0.0
      %2597 = vmatprep.subr.mxu0 0.0
      %2598 = vmatpush2.xpose.msra.mxu0 0.0
      %2599 = vmatprep.subr.mxu0 0.0
      %2600 = vmatpush2.xpose.msra.mxu0 0.0
      %2601 = vmatprep.subr.mxu0 0.0
      %2602 = vmatpush2.xpose.msra.mxu0 0.0
      %2603 = vmatprep.subr.mxu0 0.0
      %2604 = vmatpush2.xpose.msra.mxu0 0.0
      %2605 = vmatprep.subr.mxu0 0.0
      %2606 = vmatpush2.xpose.msra.mxu0 0.0
      %2607 = vmatprep.subr.mxu0 0.0
      %2608 = vmatpush2.xpose.msra.mxu0 0.0
      %2609 = vmatprep.subr.mxu0 0.0
      %2610 = vmatpush2.xpose.msra.mxu0 0.0
      %2611 = vmatprep.mubr.f32.mxu0 0.0
      %2612 = vmatmul.mubr.f32.gmra.mxu0 %v2543
      %v2613 = vpop.f32.mrf.mxu0
      %v2614 = vadd.f32 0.0, %v2613
      %v2615 = vpop.f32.mrf.mxu0
      %2616 = vdwg.mxu0
      %2618 = vrot.lane.b32.xlu0 %v2075, 96
      %v2619 = vpop.permute.xlu0 %2618
      %v2620 = vsel %vm850, %v2075, 0
      %v2622 = vsel %vm850, %v2619, 0
      %2624 = vmatprep.subr.mxu0 0.0
      %2625 = vmatpush1.xpose.msra.mxu0 0.0
      %2626 = vmatprep.subr.mxu0 0.0
      %2627 = vmatpush1.xpose.msra.mxu0 0.0
      %2628 = vmatprep.subr.mxu0 0.0
      %2629 = vmatpush1.xpose.msra.mxu0 0.0
      %2630 = vmatprep.subr.mxu0 0.0
      %2631 = vmatpush1.xpose.msra.mxu0 0.0
      %2632 = vmatprep.subr.mxu0 0.0
      %2633 = vmatpush1.xpose.msra.mxu0 0.0
      %2634 = vmatprep.subr.mxu0 0.0
      %2635 = vmatpush1.xpose.msra.mxu0 0.0
      %2636 = vmatprep.subr.mxu0 0.0
      %2637 = vmatpush1.xpose.msra.mxu0 0.0
      %2638 = vmatprep.subr.mxu0 0.0
      %2639 = vmatpush1.xpose.msra.mxu0 0.0
      %2640 = vmatprep.subr.mxu0 0.0
      %2641 = vmatpush1.xpose.msra.mxu0 0.0
      %2642 = vmatprep.subr.mxu0 0.0
      %2643 = vmatpush1.xpose.msra.mxu0 0.0
      %2644 = vmatprep.subr.mxu0 0.0
      %2645 = vmatpush1.xpose.msra.mxu0 0.0
      %2646 = vmatprep.subr.mxu0 0.0
      %2647 = vmatpush1.xpose.msra.mxu0 0.0
      %2648 = vmatprep.subr.mxu0 0.0
      %2649 = vmatpush1.xpose.msra.mxu0 0.0
      %2650 = vmatprep.subr.mxu0 0.0
      %2651 = vmatpush1.xpose.msra.mxu0 0.0
      %2652 = vmatprep.subr.mxu0 0.0
      %2653 = vmatpush1.xpose.msra.mxu0 0.0
      %2654 = vmatprep.subr.mxu0 0.0
      %2655 = vmatpush1.xpose.msra.mxu0 %v2622
      %2656 = vmatprep.subr.mxu0 0.0
      %2657 = vmatpush2.xpose.msra.mxu0 0.0
      %2658 = vmatprep.subr.mxu0 0.0
      %2659 = vmatpush2.xpose.msra.mxu0 0.0
      %2660 = vmatprep.subr.mxu0 0.0
      %2661 = vmatpush2.xpose.msra.mxu0 0.0
      %2662 = vmatprep.subr.mxu0 0.0
      %2663 = vmatpush2.xpose.msra.mxu0 0.0
      %2664 = vmatprep.subr.mxu0 0.0
      %2665 = vmatpush2.xpose.msra.mxu0 0.0
      %2666 = vmatprep.subr.mxu0 0.0
      %2667 = vmatpush2.xpose.msra.mxu0 0.0
      %2668 = vmatprep.subr.mxu0 0.0
      %2669 = vmatpush2.xpose.msra.mxu0 0.0
      %2670 = vmatprep.subr.mxu0 0.0
      %2671 = vmatpush2.xpose.msra.mxu0 0.0
      %2672 = vmatprep.subr.mxu0 0.0
      %2673 = vmatpush2.xpose.msra.mxu0 0.0
      %2674 = vmatprep.subr.mxu0 0.0
      %2675 = vmatpush2.xpose.msra.mxu0 0.0
      %2676 = vmatprep.subr.mxu0 0.0
      %2677 = vmatpush2.xpose.msra.mxu0 0.0
      %2678 = vmatprep.subr.mxu0 0.0
      %2679 = vmatpush2.xpose.msra.mxu0 0.0
      %2680 = vmatprep.subr.mxu0 0.0
      %2681 = vmatpush2.xpose.msra.mxu0 0.0
      %2682 = vmatprep.subr.mxu0 0.0
      %2683 = vmatpush2.xpose.msra.mxu0 0.0
      %2684 = vmatprep.subr.mxu0 0.0
      %2685 = vmatpush2.xpose.msra.mxu0 0.0
      %2686 = vmatprep.subr.mxu0 0.0
      %2687 = vmatpush2.xpose.msra.mxu0 0.0
      %2688 = vmatprep.mubr.f32.mxu0 0.0
      %2689 = vmatmul.mubr.f32.gmra.mxu0 %v2620
      %v2690 = vpop.f32.mrf.mxu0
      %v2691 = vadd.f32 0.0, %v2690
      %v2692 = vpop.f32.mrf.mxu0
      %2693 = vdwg.mxu0
      %v2694 = vmul.f32 %v2152, 0.17677669
      %v2695 = vmul.f32 %v2229, 0.17677669
      %v2696 = vmul.f32 %v2306, 0.17677669
      %v2697 = vmul.f32 %v2383, 0.17677669
      %v2698 = vmul.f32 %v2460, 0.17677669
      %v2699 = vmul.f32 %v2537, 0.17677669
      %v2700 = vmul.f32 %v2614, 0.17677669
      %v2701 = vmul.f32 %v2691, 0.17677669
      %v2703 = vcombine.high %v836, %v836
      %v2705 = vunpack.c.l.s4 1966171168
      %v2706 = vunpack.c.0.s8 %v2705
      %v2707 = vlaneseq
      %v2708 = vshrl.u32 %v2707, 7
      %v2709 = vsub.s32 %v2706, %v2708
      %v2710 = vrot.slane %v836, %v2709
      %v2712 = vunpack.c.l.s4 1966171168
      %v2713 = vunpack.c.0.s8 %v2712
      %v2714 = vlaneseq
      %v2715 = vshrl.u32 %v2714, 7
      %v2716 = vsub.s32 %v2713, %v2715
      %v2717 = vrot.slane %v2703, %v2716
      %v2718 = vcombine.high %v2710, %v2710
      %v2719 = vcombine.high %v2717, %v2717
      %v2721 = vunpack.c.l.s4 1966171168
      %v2722 = vunpack.c.0.s8 %v2721
      %v2723 = vlaneseq
      %v2724 = vshrl.u32 %v2723, 7
      %v2725 = vsub.s32 %v2722, %v2724
      %v2726 = vrot.slane %v2710, %v2725
      %v2728 = vunpack.c.l.s4 1966171168
      %v2729 = vunpack.c.0.s8 %v2728
      %v2730 = vlaneseq
      %v2731 = vshrl.u32 %v2730, 7
      %v2732 = vsub.s32 %v2729, %v2731
      %v2733 = vrot.slane %v2717, %v2732
      %v2735 = vunpack.c.l.s4 1966171168
      %v2736 = vunpack.c.0.s8 %v2735
      %v2737 = vlaneseq
      %v2738 = vshrl.u32 %v2737, 7
      %v2739 = vsub.s32 %v2736, %v2738
      %v2740 = vrot.slane %v2718, %v2739
      %v2742 = vunpack.c.l.s4 1966171168
      %v2743 = vunpack.c.0.s8 %v2742
      %v2744 = vlaneseq
      %v2745 = vshrl.u32 %v2744, 7
      %v2746 = vsub.s32 %v2743, %v2745
      %v2747 = vrot.slane %v2719, %v2746
      %v2748 = vcombine.high %v2726, %v2726
      %v2749 = vcombine.high %v2733, %v2733
      %v2750 = vcombine.high %v2740, %v2740
      %v2751 = vcombine.high %v2747, %v2747
      %v2752 = vlaneseq
      %v2753 = vshrl.u32 %v2752, 7
      %v2754 = vsub.s32 0, %v2753
      %v2755 = vrot.slane %v2726, %v2754
      %v2756 = vlaneseq
      %v2757 = vshrl.u32 %v2756, 7
      %v2758 = vsub.s32 0, %v2757
      %v2759 = vrot.slane %v2740, %v2758
      %v2760 = vlaneseq
      %v2761 = vshrl.u32 %v2760, 7
      %v2762 = vsub.s32 0, %v2761
      %v2763 = vrot.slane %v2748, %v2762
      %v2764 = vlaneseq
      %v2765 = vshrl.u32 %v2764, 7
      %v2766 = vsub.s32 0, %v2765
      %v2767 = vrot.slane %v2750, %v2766
      %v2768 = vlaneseq
      %v2769 = vshrl.u32 %v2768, 7
      %v2770 = vsub.s32 0, %v2769
      %v2771 = vrot.slane %v2733, %v2770
      %v2772 = vlaneseq
      %v2773 = vshrl.u32 %v2772, 7
      %v2774 = vsub.s32 0, %v2773
      %v2775 = vrot.slane %v2747, %v2774
      %v2776 = vlaneseq
      %v2777 = vshrl.u32 %v2776, 7
      %v2778 = vsub.s32 0, %v2777
      %v2779 = vrot.slane %v2749, %v2778
      %v2780 = vlaneseq
      %v2781 = vshrl.u32 %v2780, 7
      %v2782 = vsub.s32 0, %v2781
      %v2783 = vrot.slane %v2751, %v2782
      %v2792 = vadd.f32 %v2694, %v2755
      %v2793 = vadd.f32 %v2695, %v2759
      %v2794 = vadd.f32 %v2696, %v2763
      %v2795 = vadd.f32 %v2697, %v2767
      %v2796 = vadd.f32 %v2698, %v2771
      %v2797 = vadd.f32 %v2699, %v2775
      %v2798 = vadd.f32 %v2700, %v2779
      %v2799 = vadd.f32 %v2701, %v2783
      %vm2800 = vcmask 64512
      %v2801 = vsel %vm2800, %v2792, -inf
      %2802 = vmax.xlane.f32.xlu0 %v2801
      %v2803 = vpop.xlane.xlu0 %2802
      %v2804 = vsel %vm2800, %v2793, -inf
      %2805 = vmax.xlane.f32.xlu0 %v2804
      %v2806 = vpop.xlane.xlu0 %2805
      %v2807 = vsel %vm2800, %v2794, -inf
      %2808 = vmax.xlane.f32.xlu0 %v2807
      %v2809 = vpop.xlane.xlu0 %2808
      %v2810 = vsel %vm2800, %v2795, -inf
      %2811 = vmax.xlane.f32.xlu0 %v2810
      %v2812 = vpop.xlane.xlu0 %2811
      %v2813 = vsel %vm2800, %v2796, -inf
      %2814 = vmax.xlane.f32.xlu0 %v2813
      %v2815 = vpop.xlane.xlu0 %2814
      %v2816 = vsel %vm2800, %v2797, -inf
      %2817 = vmax.xlane.f32.xlu0 %v2816
      %v2818 = vpop.xlane.xlu0 %2817
      %v2819 = vsel %vm2800, %v2798, -inf
      %2820 = vmax.xlane.f32.xlu0 %v2819
      %v2821 = vpop.xlane.xlu0 %2820
      %v2822 = vsel %vm2800, %v2799, -inf
      %2823 = vmax.xlane.f32.xlu0 %v2822
      %v2824 = vpop.xlane.xlu0 %2823
      %v2825 = vsub.f32 %v2792, %v2803
      %v2826 = vsub.f32 %v2793, %v2806
      %v2827 = vsub.f32 %v2794, %v2809
      %v2828 = vsub.f32 %v2795, %v2812
      %v2829 = vsub.f32 %v2796, %v2815
      %v2830 = vsub.f32 %v2797, %v2818
      %v2831 = vsub.f32 %v2798, %v2821
      %v2832 = vsub.f32 %v2799, %v2824
      %v2833 = vmul.f32 %v2825, 1.442695
      %v2834 = vpow.pop %v2833
      %v2835 = vmul.f32 %v2826, 1.442695
      %v2836 = vpow.pop %v2835
      %v2837 = vmul.f32 %v2827, 1.442695
      %v2838 = vpow.pop %v2837
      %v2839 = vmul.f32 %v2828, 1.442695
      %v2840 = vpow.pop %v2839
      %v2841 = vmul.f32 %v2829, 1.442695
      %v2842 = vpow.pop %v2841
      %v2843 = vmul.f32 %v2830, 1.442695
      %v2844 = vpow.pop %v2843
      %v2845 = vmul.f32 %v2831, 1.442695
      %v2846 = vpow.pop %v2845
      %v2847 = vmul.f32 %v2832, 1.442695
      %v2848 = vpow.pop %v2847
      %v2849 = vsel %vm2800, %v2834, 0.0
      %2850 = vadd.xlane.f32.xlu0 %v2849
      %v2851 = vpop.xlane.xlu0 %2850
      %v2852 = vsel %vm2800, %v2836, 0.0
      %2853 = vadd.xlane.f32.xlu0 %v2852
      %v2854 = vpop.xlane.xlu0 %2853
      %v2855 = vsel %vm2800, %v2838, 0.0
      %2856 = vadd.xlane.f32.xlu0 %v2855
      %v2857 = vpop.xlane.xlu0 %2856
      %v2858 = vsel %vm2800, %v2840, 0.0
      %2859 = vadd.xlane.f32.xlu0 %v2858
      %v2860 = vpop.xlane.xlu0 %2859
      %v2861 = vsel %vm2800, %v2842, 0.0
      %2862 = vadd.xlane.f32.xlu0 %v2861
      %v2863 = vpop.xlane.xlu0 %2862
      %v2864 = vsel %vm2800, %v2844, 0.0
      %2865 = vadd.xlane.f32.xlu0 %v2864
      %v2866 = vpop.xlane.xlu0 %2865
      %v2867 = vsel %vm2800, %v2846, 0.0
      %2868 = vadd.xlane.f32.xlu0 %v2867
      %v2869 = vpop.xlane.xlu0 %2868
      %v2870 = vsel %vm2800, %v2848, 0.0
      %2871 = vadd.xlane.f32.xlu0 %v2870
      %v2872 = vpop.xlane.xlu0 %2871
      %v2873 = vrcp.pop %v2851
      %v2874 = vrcp.pop %v2854
      %v2875 = vrcp.pop %v2857
      %v2876 = vrcp.pop %v2860
      %v2877 = vrcp.pop %v2863
      %v2878 = vrcp.pop %v2866
      %v2879 = vrcp.pop %v2869
      %v2880 = vrcp.pop %v2872
      %v2881 = vmul.f32 %v2834, %v2873
      %v2882 = vmul.f32 %v2836, %v2874
      %v2883 = vmul.f32 %v2838, %v2875
      %v2884 = vmul.f32 %v2840, %v2876
      %v2885 = vmul.f32 %v2842, %v2877
      %v2886 = vmul.f32 %v2844, %v2878
      %v2887 = vmul.f32 %v2846, %v2879
      %v2888 = vmul.f32 %v2848, %v2880
      %2889 = vrot.lane.b32.xlu0 %v2048, 64
      %v2890 = vpop.permute.xlu0 %2889
      %v2893 = vsel %vm2800, %v2881, 0
      %2895 = vmatprep.subr.mxu0 0.0
      %2896 = vmatpush1.msra.mxu0 0.0
      %2897 = vmatprep.subr.mxu0 0.0
      %2898 = vmatpush1.msra.mxu0 0.0
      %2899 = vmatprep.subr.mxu0 0.0
      %2900 = vmatpush1.msra.mxu0 0.0
      %2901 = vmatprep.subr.mxu0 0.0
      %2902 = vmatpush1.msra.mxu0 0.0
      %2903 = vmatprep.subr.mxu0 0.0
      %2904 = vmatpush1.msra.mxu0 0.0
      %2905 = vmatprep.subr.mxu0 0.0
      %2906 = vmatpush1.msra.mxu0 0.0
      %2907 = vmatprep.subr.mxu0 0.0
      %2908 = vmatpush1.msra.mxu0 0.0
      %2909 = vmatprep.subr.mxu0 0.0
      %2910 = vmatpush1.msra.mxu0 0.0
      %2911 = vmatprep.subr.mxu0 0.0
      %2912 = vmatpush1.msra.mxu0 0.0
      %2913 = vmatprep.subr.mxu0 0.0
      %2914 = vmatpush1.msra.mxu0 0.0
      %2915 = vmatprep.subr.mxu0 0.0
      %2916 = vmatpush1.msra.mxu0 0.0
      %2917 = vmatprep.subr.mxu0 0.0
      %2918 = vmatpush1.msra.mxu0 0.0
      %2919 = vmatprep.subr.mxu0 0.0
      %2920 = vmatpush1.msra.mxu0 0.0
      %2921 = vmatprep.subr.mxu0 0.0
      %2922 = vmatpush1.msra.mxu0 0.0
      %2923 = vmatprep.subr.mxu0 0.0
      %2924 = vmatpush1.msra.mxu0 0.0
      %2925 = vmatprep.subr.mxu0 0.0
      %2926 = vmatpush1.msra.mxu0 %v2890
      %2927 = vmatprep.subr.mxu0 0.0
      %2928 = vmatpush2.msra.mxu0 0.0
      %2929 = vmatprep.subr.mxu0 0.0
      %2930 = vmatpush2.msra.mxu0 0.0
      %2931 = vmatprep.subr.mxu0 0.0
      %2932 = vmatpush2.msra.mxu0 0.0
      %2933 = vmatprep.subr.mxu0 0.0
      %2934 = vmatpush2.msra.mxu0 0.0
      %2935 = vmatprep.subr.mxu0 0.0
      %2936 = vmatpush2.msra.mxu0 0.0
      %2937 = vmatprep.subr.mxu0 0.0
      %2938 = vmatpush2.msra.mxu0 0.0
      %2939 = vmatprep.subr.mxu0 0.0
      %2940 = vmatpush2.msra.mxu0 0.0
      %2941 = vmatprep.subr.mxu0 0.0
      %2942 = vmatpush2.msra.mxu0 0.0
      %2943 = vmatprep.subr.mxu0 0.0
      %2944 = vmatpush2.msra.mxu0 0.0
      %2945 = vmatprep.subr.mxu0 0.0
      %2946 = vmatpush2.msra.mxu0 0.0
      %2947 = vmatprep.subr.mxu0 0.0
      %2948 = vmatpush2.msra.mxu0 0.0
      %2949 = vmatprep.subr.mxu0 0.0
      %2950 = vmatpush2.msra.mxu0 0.0
      %2951 = vmatprep.subr.mxu0 0.0
      %2952 = vmatpush2.msra.mxu0 0.0
      %2953 = vmatprep.subr.mxu0 0.0
      %2954 = vmatpush2.msra.mxu0 0.0
      %2955 = vmatprep.subr.mxu0 0.0
      %2956 = vmatpush2.msra.mxu0 0.0
      %2957 = vmatprep.subr.mxu0 0.0
      %2958 = vmatpush2.msra.mxu0 0.0
      %2959 = vmatprep.mubr.f32.mxu0 0.0
      %2960 = vmatmul.mubr.f32.gmra.mxu0 %v2893
      %v2961 = vpop.f32.mrf.mxu0
      %v2962 = vadd.f32 0.0, %v2961
      %v2963 = vpop.f32.mrf.mxu0
      %2964 = vdwg.mxu0
      %2965 = vrot.lane.b32.xlu0 %v2051, 64
      %v2966 = vpop.permute.xlu0 %2965
      %v2969 = vsel %vm2800, %v2882, 0
      %2971 = vmatprep.subr.mxu0 0.0
      %2972 = vmatpush1.msra.mxu0 0.0
      %2973 = vmatprep.subr.mxu0 0.0
      %2974 = vmatpush1.msra.mxu0 0.0
      %2975 = vmatprep.subr.mxu0 0.0
      %2976 = vmatpush1.msra.mxu0 0.0
      %2977 = vmatprep.subr.mxu0 0.0
      %2978 = vmatpush1.msra.mxu0 0.0
      %2979 = vmatprep.subr.mxu0 0.0
      %2980 = vmatpush1.msra.mxu0 0.0
      %2981 = vmatprep.subr.mxu0 0.0
      %2982 = vmatpush1.msra.mxu0 0.0
      %2983 = vmatprep.subr.mxu0 0.0
      %2984 = vmatpush1.msra.mxu0 0.0
      %2985 = vmatprep.subr.mxu0 0.0
      %2986 = vmatpush1.msra.mxu0 0.0
      %2987 = vmatprep.subr.mxu0 0.0
      %2988 = vmatpush1.msra.mxu0 0.0
      %2989 = vmatprep.subr.mxu0 0.0
      %2990 = vmatpush1.msra.mxu0 0.0
      %2991 = vmatprep.subr.mxu0 0.0
      %2992 = vmatpush1.msra.mxu0 0.0
      %2993 = vmatprep.subr.mxu0 0.0
      %2994 = vmatpush1.msra.mxu0 0.0
      %2995 = vmatprep.subr.mxu0 0.0
      %2996 = vmatpush1.msra.mxu0 0.0
      %2997 = vmatprep.subr.mxu0 0.0
      %2998 = vmatpush1.msra.mxu0 0.0
      %2999 = vmatprep.subr.mxu0 0.0
      %3000 = vmatpush1.msra.mxu0 0.0
      %3001 = vmatprep.subr.mxu0 0.0
      %3002 = vmatpush1.msra.mxu0 %v2966
      %3003 = vmatprep.subr.mxu0 0.0
      %3004 = vmatpush2.msra.mxu0 0.0
      %3005 = vmatprep.subr.mxu0 0.0
      %3006 = vmatpush2.msra.mxu0 0.0
      %3007 = vmatprep.subr.mxu0 0.0
      %3008 = vmatpush2.msra.mxu0 0.0
      %3009 = vmatprep.subr.mxu0 0.0
      %3010 = vmatpush2.msra.mxu0 0.0
      %3011 = vmatprep.subr.mxu0 0.0
      %3012 = vmatpush2.msra.mxu0 0.0
      %3013 = vmatprep.subr.mxu0 0.0
      %3014 = vmatpush2.msra.mxu0 0.0
      %3015 = vmatprep.subr.mxu0 0.0
      %3016 = vmatpush2.msra.mxu0 0.0
      %3017 = vmatprep.subr.mxu0 0.0
      %3018 = vmatpush2.msra.mxu0 0.0
      %3019 = vmatprep.subr.mxu0 0.0
      %3020 = vmatpush2.msra.mxu0 0.0
      %3021 = vmatprep.subr.mxu0 0.0
      %3022 = vmatpush2.msra.mxu0 0.0
      %3023 = vmatprep.subr.mxu0 0.0
      %3024 = vmatpush2.msra.mxu0 0.0
      %3025 = vmatprep.subr.mxu0 0.0
      %3026 = vmatpush2.msra.mxu0 0.0
      %3027 = vmatprep.subr.mxu0 0.0
      %3028 = vmatpush2.msra.mxu0 0.0
      %3029 = vmatprep.subr.mxu0 0.0
      %3030 = vmatpush2.msra.mxu0 0.0
      %3031 = vmatprep.subr.mxu0 0.0
      %3032 = vmatpush2.msra.mxu0 0.0
      %3033 = vmatprep.subr.mxu0 0.0
      %3034 = vmatpush2.msra.mxu0 0.0
      %3035 = vmatprep.mubr.f32.mxu0 0.0
      %3036 = vmatmul.mubr.f32.gmra.mxu0 %v2969
      %v3037 = vpop.f32.mrf.mxu0
      %v3038 = vadd.f32 0.0, %v3037
      %v3039 = vpop.f32.mrf.mxu0
      %3040 = vdwg.mxu0
      %3041 = vrot.lane.b32.xlu0 %v2056, 64
      %v3042 = vpop.permute.xlu0 %3041
      %v3045 = vsel %vm2800, %v2883, 0
      %3047 = vmatprep.subr.mxu0 0.0
      %3048 = vmatpush1.msra.mxu0 0.0
      %3049 = vmatprep.subr.mxu0 0.0
      %3050 = vmatpush1.msra.mxu0 0.0
      %3051 = vmatprep.subr.mxu0 0.0
      %3052 = vmatpush1.msra.mxu0 0.0
      %3053 = vmatprep.subr.mxu0 0.0
      %3054 = vmatpush1.msra.mxu0 0.0
      %3055 = vmatprep.subr.mxu0 0.0
      %3056 = vmatpush1.msra.mxu0 0.0
      %3057 = vmatprep.subr.mxu0 0.0
      %3058 = vmatpush1.msra.mxu0 0.0
      %3059 = vmatprep.subr.mxu0 0.0
      %3060 = vmatpush1.msra.mxu0 0.0
      %3061 = vmatprep.subr.mxu0 0.0
      %3062 = vmatpush1.msra.mxu0 0.0
      %3063 = vmatprep.subr.mxu0 0.0
      %3064 = vmatpush1.msra.mxu0 0.0
      %3065 = vmatprep.subr.mxu0 0.0
      %3066 = vmatpush1.msra.mxu0 0.0
      %3067 = vmatprep.subr.mxu0 0.0
      %3068 = vmatpush1.msra.mxu0 0.0
      %3069 = vmatprep.subr.mxu0 0.0
      %3070 = vmatpush1.msra.mxu0 0.0
      %3071 = vmatprep.subr.mxu0 0.0
      %3072 = vmatpush1.msra.mxu0 0.0
      %3073 = vmatprep.subr.mxu0 0.0
      %3074 = vmatpush1.msra.mxu0 0.0
      %3075 = vmatprep.subr.mxu0 0.0
      %3076 = vmatpush1.msra.mxu0 0.0
      %3077 = vmatprep.subr.mxu0 0.0
      %3078 = vmatpush1.msra.mxu0 %v3042
      %3079 = vmatprep.subr.mxu0 0.0
      %3080 = vmatpush2.msra.mxu0 0.0
      %3081 = vmatprep.subr.mxu0 0.0
      %3082 = vmatpush2.msra.mxu0 0.0
      %3083 = vmatprep.subr.mxu0 0.0
      %3084 = vmatpush2.msra.mxu0 0.0
      %3085 = vmatprep.subr.mxu0 0.0
      %3086 = vmatpush2.msra.mxu0 0.0
      %3087 = vmatprep.subr.mxu0 0.0
      %3088 = vmatpush2.msra.mxu0 0.0
      %3089 = vmatprep.subr.mxu0 0.0
      %3090 = vmatpush2.msra.mxu0 0.0
      %3091 = vmatprep.subr.mxu0 0.0
      %3092 = vmatpush2.msra.mxu0 0.0
      %3093 = vmatprep.subr.mxu0 0.0
      %3094 = vmatpush2.msra.mxu0 0.0
      %3095 = vmatprep.subr.mxu0 0.0
      %3096 = vmatpush2.msra.mxu0 0.0
      %3097 = vmatprep.subr.mxu0 0.0
      %3098 = vmatpush2.msra.mxu0 0.0
      %3099 = vmatprep.subr.mxu0 0.0
      %3100 = vmatpush2.msra.mxu0 0.0
      %3101 = vmatprep.subr.mxu0 0.0
      %3102 = vmatpush2.msra.mxu0 0.0
      %3103 = vmatprep.subr.mxu0 0.0
      %3104 = vmatpush2.msra.mxu0 0.0
      %3105 = vmatprep.subr.mxu0 0.0
      %3106 = vmatpush2.msra.mxu0 0.0
      %3107 = vmatprep.subr.mxu0 0.0
      %3108 = vmatpush2.msra.mxu0 0.0
      %3109 = vmatprep.subr.mxu0 0.0
      %3110 = vmatpush2.msra.mxu0 0.0
      %3111 = vmatprep.mubr.f32.mxu0 0.0
      %3112 = vmatmul.mubr.f32.gmra.mxu0 %v3045
      %v3113 = vpop.f32.mrf.mxu0
      %v3114 = vadd.f32 0.0, %v3113
      %v3115 = vpop.f32.mrf.mxu0
      %3116 = vdwg.mxu0
      %3117 = vrot.lane.b32.xlu0 %v2059, 64
      %v3118 = vpop.permute.xlu0 %3117
      %v3121 = vsel %vm2800, %v2884, 0
      %3123 = vmatprep.subr.mxu0 0.0
      %3124 = vmatpush1.msra.mxu0 0.0
      %3125 = vmatprep.subr.mxu0 0.0
      %3126 = vmatpush1.msra.mxu0 0.0
      %3127 = vmatprep.subr.mxu0 0.0
      %3128 = vmatpush1.msra.mxu0 0.0
      %3129 = vmatprep.subr.mxu0 0.0
      %3130 = vmatpush1.msra.mxu0 0.0
      %3131 = vmatprep.subr.mxu0 0.0
      %3132 = vmatpush1.msra.mxu0 0.0
      %3133 = vmatprep.subr.mxu0 0.0
      %3134 = vmatpush1.msra.mxu0 0.0
      %3135 = vmatprep.subr.mxu0 0.0
      %3136 = vmatpush1.msra.mxu0 0.0
      %3137 = vmatprep.subr.mxu0 0.0
      %3138 = vmatpush1.msra.mxu0 0.0
      %3139 = vmatprep.subr.mxu0 0.0
      %3140 = vmatpush1.msra.mxu0 0.0
      %3141 = vmatprep.subr.mxu0 0.0
      %3142 = vmatpush1.msra.mxu0 0.0
      %3143 = vmatprep.subr.mxu0 0.0
      %3144 = vmatpush1.msra.mxu0 0.0
      %3145 = vmatprep.subr.mxu0 0.0
      %3146 = vmatpush1.msra.mxu0 0.0
      %3147 = vmatprep.subr.mxu0 0.0
      %3148 = vmatpush1.msra.mxu0 0.0
      %3149 = vmatprep.subr.mxu0 0.0
      %3150 = vmatpush1.msra.mxu0 0.0
      %3151 = vmatprep.subr.mxu0 0.0
      %3152 = vmatpush1.msra.mxu0 0.0
      %3153 = vmatprep.subr.mxu0 0.0
      %3154 = vmatpush1.msra.mxu0 %v3118
      %3155 = vmatprep.subr.mxu0 0.0
      %3156 = vmatpush2.msra.mxu0 0.0
      %3157 = vmatprep.subr.mxu0 0.0
      %3158 = vmatpush2.msra.mxu0 0.0
      %3159 = vmatprep.subr.mxu0 0.0
      %3160 = vmatpush2.msra.mxu0 0.0
      %3161 = vmatprep.subr.mxu0 0.0
      %3162 = vmatpush2.msra.mxu0 0.0
      %3163 = vmatprep.subr.mxu0 0.0
      %3164 = vmatpush2.msra.mxu0 0.0
      %3165 = vmatprep.subr.mxu0 0.0
      %3166 = vmatpush2.msra.mxu0 0.0
      %3167 = vmatprep.subr.mxu0 0.0
      %3168 = vmatpush2.msra.mxu0 0.0
      %3169 = vmatprep.subr.mxu0 0.0
      %3170 = vmatpush2.msra.mxu0 0.0
      %3171 = vmatprep.subr.mxu0 0.0
      %3172 = vmatpush2.msra.mxu0 0.0
      %3173 = vmatprep.subr.mxu0 0.0
      %3174 = vmatpush2.msra.mxu0 0.0
      %3175 = vmatprep.subr.mxu0 0.0
      %3176 = vmatpush2.msra.mxu0 0.0
      %3177 = vmatprep.subr.mxu0 0.0
      %3178 = vmatpush2.msra.mxu0 0.0
      %3179 = vmatprep.subr.mxu0 0.0
      %3180 = vmatpush2.msra.mxu0 0.0
      %3181 = vmatprep.subr.mxu0 0.0
      %3182 = vmatpush2.msra.mxu0 0.0
      %3183 = vmatprep.subr.mxu0 0.0
      %3184 = vmatpush2.msra.mxu0 0.0
      %3185 = vmatprep.subr.mxu0 0.0
      %3186 = vmatpush2.msra.mxu0 0.0
      %3187 = vmatprep.mubr.f32.mxu0 0.0
      %3188 = vmatmul.mubr.f32.gmra.mxu0 %v3121
      %v3189 = vpop.f32.mrf.mxu0
      %v3190 = vadd.f32 0.0, %v3189
      %v3191 = vpop.f32.mrf.mxu0
      %3192 = vdwg.mxu0
      %3193 = vrot.lane.b32.xlu0 %v2064, 64
      %v3194 = vpop.permute.xlu0 %3193
      %v3197 = vsel %vm2800, %v2885, 0
      %3199 = vmatprep.subr.mxu0 0.0
      %3200 = vmatpush1.msra.mxu0 0.0
      %3201 = vmatprep.subr.mxu0 0.0
      %3202 = vmatpush1.msra.mxu0 0.0
      %3203 = vmatprep.subr.mxu0 0.0
      %3204 = vmatpush1.msra.mxu0 0.0
      %3205 = vmatprep.subr.mxu0 0.0
      %3206 = vmatpush1.msra.mxu0 0.0
      %3207 = vmatprep.subr.mxu0 0.0
      %3208 = vmatpush1.msra.mxu0 0.0
      %3209 = vmatprep.subr.mxu0 0.0
      %3210 = vmatpush1.msra.mxu0 0.0
      %3211 = vmatprep.subr.mxu0 0.0
      %3212 = vmatpush1.msra.mxu0 0.0
      %3213 = vmatprep.subr.mxu0 0.0
      %3214 = vmatpush1.msra.mxu0 0.0
      %3215 = vmatprep.subr.mxu0 0.0
      %3216 = vmatpush1.msra.mxu0 0.0
      %3217 = vmatprep.subr.mxu0 0.0
      %3218 = vmatpush1.msra.mxu0 0.0
      %3219 = vmatprep.subr.mxu0 0.0
      %3220 = vmatpush1.msra.mxu0 0.0
      %3221 = vmatprep.subr.mxu0 0.0
      %3222 = vmatpush1.msra.mxu0 0.0
      %3223 = vmatprep.subr.mxu0 0.0
      %3224 = vmatpush1.msra.mxu0 0.0
      %3225 = vmatprep.subr.mxu0 0.0
      %3226 = vmatpush1.msra.mxu0 0.0
      %3227 = vmatprep.subr.mxu0 0.0
      %3228 = vmatpush1.msra.mxu0 0.0
      %3229 = vmatprep.subr.mxu0 0.0
      %3230 = vmatpush1.msra.mxu0 %v3194
      %3231 = vmatprep.subr.mxu0 0.0
      %3232 = vmatpush2.msra.mxu0 0.0
      %3233 = vmatprep.subr.mxu0 0.0
      %3234 = vmatpush2.msra.mxu0 0.0
      %3235 = vmatprep.subr.mxu0 0.0
      %3236 = vmatpush2.msra.mxu0 0.0
      %3237 = vmatprep.subr.mxu0 0.0
      %3238 = vmatpush2.msra.mxu0 0.0
      %3239 = vmatprep.subr.mxu0 0.0
      %3240 = vmatpush2.msra.mxu0 0.0
      %3241 = vmatprep.subr.mxu0 0.0
      %3242 = vmatpush2.msra.mxu0 0.0
      %3243 = vmatprep.subr.mxu0 0.0
      %3244 = vmatpush2.msra.mxu0 0.0
      %3245 = vmatprep.subr.mxu0 0.0
      %3246 = vmatpush2.msra.mxu0 0.0
      %3247 = vmatprep.subr.mxu0 0.0
      %3248 = vmatpush2.msra.mxu0 0.0
      %3249 = vmatprep.subr.mxu0 0.0
      %3250 = vmatpush2.msra.mxu0 0.0
      %3251 = vmatprep.subr.mxu0 0.0
      %3252 = vmatpush2.msra.mxu0 0.0
      %3253 = vmatprep.subr.mxu0 0.0
      %3254 = vmatpush2.msra.mxu0 0.0
      %3255 = vmatprep.subr.mxu0 0.0
      %3256 = vmatpush2.msra.mxu0 0.0
      %3257 = vmatprep.subr.mxu0 0.0
      %3258 = vmatpush2.msra.mxu0 0.0
      %3259 = vmatprep.subr.mxu0 0.0
      %3260 = vmatpush2.msra.mxu0 0.0
      %3261 = vmatprep.subr.mxu0 0.0
      %3262 = vmatpush2.msra.mxu0 0.0
      %3263 = vmatprep.mubr.f32.mxu0 0.0
      %3264 = vmatmul.mubr.f32.gmra.mxu0 %v3197
      %v3265 = vpop.f32.mrf.mxu0
      %v3266 = vadd.f32 0.0, %v3265
      %v3267 = vpop.f32.mrf.mxu0
      %3268 = vdwg.mxu0
      %3269 = vrot.lane.b32.xlu0 %v2067, 64
      %v3270 = vpop.permute.xlu0 %3269
      %v3273 = vsel %vm2800, %v2886, 0
      %3275 = vmatprep.subr.mxu0 0.0
      %3276 = vmatpush1.msra.mxu0 0.0
      %3277 = vmatprep.subr.mxu0 0.0
      %3278 = vmatpush1.msra.mxu0 0.0
      %3279 = vmatprep.subr.mxu0 0.0
      %3280 = vmatpush1.msra.mxu0 0.0
      %3281 = vmatprep.subr.mxu0 0.0
      %3282 = vmatpush1.msra.mxu0 0.0
      %3283 = vmatprep.subr.mxu0 0.0
      %3284 = vmatpush1.msra.mxu0 0.0
      %3285 = vmatprep.subr.mxu0 0.0
      %3286 = vmatpush1.msra.mxu0 0.0
      %3287 = vmatprep.subr.mxu0 0.0
      %3288 = vmatpush1.msra.mxu0 0.0
      %3289 = vmatprep.subr.mxu0 0.0
      %3290 = vmatpush1.msra.mxu0 0.0
      %3291 = vmatprep.subr.mxu0 0.0
      %3292 = vmatpush1.msra.mxu0 0.0
      %3293 = vmatprep.subr.mxu0 0.0
      %3294 = vmatpush1.msra.mxu0 0.0
      %3295 = vmatprep.subr.mxu0 0.0
      %3296 = vmatpush1.msra.mxu0 0.0
      %3297 = vmatprep.subr.mxu0 0.0
      %3298 = vmatpush1.msra.mxu0 0.0
      %3299 = vmatprep.subr.mxu0 0.0
      %3300 = vmatpush1.msra.mxu0 0.0
      %3301 = vmatprep.subr.mxu0 0.0
      %3302 = vmatpush1.msra.mxu0 0.0
      %3303 = vmatprep.subr.mxu0 0.0
      %3304 = vmatpush1.msra.mxu0 0.0
      %3305 = vmatprep.subr.mxu0 0.0
      %3306 = vmatpush1.msra.mxu0 %v3270
      %3307 = vmatprep.subr.mxu0 0.0
      %3308 = vmatpush2.msra.mxu0 0.0
      %3309 = vmatprep.subr.mxu0 0.0
      %3310 = vmatpush2.msra.mxu0 0.0
      %3311 = vmatprep.subr.mxu0 0.0
      %3312 = vmatpush2.msra.mxu0 0.0
      %3313 = vmatprep.subr.mxu0 0.0
      %3314 = vmatpush2.msra.mxu0 0.0
      %3315 = vmatprep.subr.mxu0 0.0
      %3316 = vmatpush2.msra.mxu0 0.0
      %3317 = vmatprep.subr.mxu0 0.0
      %3318 = vmatpush2.msra.mxu0 0.0
      %3319 = vmatprep.subr.mxu0 0.0
      %3320 = vmatpush2.msra.mxu0 0.0
      %3321 = vmatprep.subr.mxu0 0.0
      %3322 = vmatpush2.msra.mxu0 0.0
      %3323 = vmatprep.subr.mxu0 0.0
      %3324 = vmatpush2.msra.mxu0 0.0
      %3325 = vmatprep.subr.mxu0 0.0
      %3326 = vmatpush2.msra.mxu0 0.0
      %3327 = vmatprep.subr.mxu0 0.0
      %3328 = vmatpush2.msra.mxu0 0.0
      %3329 = vmatprep.subr.mxu0 0.0
      %3330 = vmatpush2.msra.mxu0 0.0
      %3331 = vmatprep.subr.mxu0 0.0
      %3332 = vmatpush2.msra.mxu0 0.0
      %3333 = vmatprep.subr.mxu0 0.0
      %3334 = vmatpush2.msra.mxu0 0.0
      %3335 = vmatprep.subr.mxu0 0.0
      %3336 = vmatpush2.msra.mxu0 0.0
      %3337 = vmatprep.subr.mxu0 0.0
      %3338 = vmatpush2.msra.mxu0 0.0
      %3339 = vmatprep.mubr.f32.mxu0 0.0
      %3340 = vmatmul.mubr.f32.gmra.mxu0 %v3273
      %v3341 = vpop.f32.mrf.mxu0
      %v3342 = vadd.f32 0.0, %v3341
      %v3343 = vpop.f32.mrf.mxu0
      %3344 = vdwg.mxu0
      %3345 = vrot.lane.b32.xlu0 %v2072, 64
      %v3346 = vpop.permute.xlu0 %3345
      %v3349 = vsel %vm2800, %v2887, 0
      %3351 = vmatprep.subr.mxu0 0.0
      %3352 = vmatpush1.msra.mxu0 0.0
      %3353 = vmatprep.subr.mxu0 0.0
      %3354 = vmatpush1.msra.mxu0 0.0
      %3355 = vmatprep.subr.mxu0 0.0
      %3356 = vmatpush1.msra.mxu0 0.0
      %3357 = vmatprep.subr.mxu0 0.0
      %3358 = vmatpush1.msra.mxu0 0.0
      %3359 = vmatprep.subr.mxu0 0.0
      %3360 = vmatpush1.msra.mxu0 0.0
      %3361 = vmatprep.subr.mxu0 0.0
      %3362 = vmatpush1.msra.mxu0 0.0
      %3363 = vmatprep.subr.mxu0 0.0
      %3364 = vmatpush1.msra.mxu0 0.0
      %3365 = vmatprep.subr.mxu0 0.0
      %3366 = vmatpush1.msra.mxu0 0.0
      %3367 = vmatprep.subr.mxu0 0.0
      %3368 = vmatpush1.msra.mxu0 0.0
      %3369 = vmatprep.subr.mxu0 0.0
      %3370 = vmatpush1.msra.mxu0 0.0
      %3371 = vmatprep.subr.mxu0 0.0
      %3372 = vmatpush1.msra.mxu0 0.0
      %3373 = vmatprep.subr.mxu0 0.0
      %3374 = vmatpush1.msra.mxu0 0.0
      %3375 = vmatprep.subr.mxu0 0.0
      %3376 = vmatpush1.msra.mxu0 0.0
      %3377 = vmatprep.subr.mxu0 0.0
      %3378 = vmatpush1.msra.mxu0 0.0
      %3379 = vmatprep.subr.mxu0 0.0
      %3380 = vmatpush1.msra.mxu0 0.0
      %3381 = vmatprep.subr.mxu0 0.0
      %3382 = vmatpush1.msra.mxu0 %v3346
      %3383 = vmatprep.subr.mxu0 0.0
      %3384 = vmatpush2.msra.mxu0 0.0
      %3385 = vmatprep.subr.mxu0 0.0
      %3386 = vmatpush2.msra.mxu0 0.0
      %3387 = vmatprep.subr.mxu0 0.0
      %3388 = vmatpush2.msra.mxu0 0.0
      %3389 = vmatprep.subr.mxu0 0.0
      %3390 = vmatpush2.msra.mxu0 0.0
      %3391 = vmatprep.subr.mxu0 0.0
      %3392 = vmatpush2.msra.mxu0 0.0
      %3393 = vmatprep.subr.mxu0 0.0
      %3394 = vmatpush2.msra.mxu0 0.0
      %3395 = vmatprep.subr.mxu0 0.0
      %3396 = vmatpush2.msra.mxu0 0.0
      %3397 = vmatprep.subr.mxu0 0.0
      %3398 = vmatpush2.msra.mxu0 0.0
      %3399 = vmatprep.subr.mxu0 0.0
      %3400 = vmatpush2.msra.mxu0 0.0
      %3401 = vmatprep.subr.mxu0 0.0
      %3402 = vmatpush2.msra.mxu0 0.0
      %3403 = vmatprep.subr.mxu0 0.0
      %3404 = vmatpush2.msra.mxu0 0.0
      %3405 = vmatprep.subr.mxu0 0.0
      %3406 = vmatpush2.msra.mxu0 0.0
      %3407 = vmatprep.subr.mxu0 0.0
      %3408 = vmatpush2.msra.mxu0 0.0
      %3409 = vmatprep.subr.mxu0 0.0
      %3410 = vmatpush2.msra.mxu0 0.0
      %3411 = vmatprep.subr.mxu0 0.0
      %3412 = vmatpush2.msra.mxu0 0.0
      %3413 = vmatprep.subr.mxu0 0.0
      %3414 = vmatpush2.msra.mxu0 0.0
      %3415 = vmatprep.mubr.f32.mxu0 0.0
      %3416 = vmatmul.mubr.f32.gmra.mxu0 %v3349
      %v3417 = vpop.f32.mrf.mxu0
      %v3418 = vadd.f32 0.0, %v3417
      %v3419 = vpop.f32.mrf.mxu0
      %3420 = vdwg.mxu0
      %3421 = vrot.lane.b32.xlu0 %v2075, 64
      %v3422 = vpop.permute.xlu0 %3421
      %v3425 = vsel %vm2800, %v2888, 0
      %3427 = vmatprep.subr.mxu0 0.0
      %3428 = vmatpush1.msra.mxu0 0.0
      %3429 = vmatprep.subr.mxu0 0.0
      %3430 = vmatpush1.msra.mxu0 0.0
      %3431 = vmatprep.subr.mxu0 0.0
      %3432 = vmatpush1.msra.mxu0 0.0
      %3433 = vmatprep.subr.mxu0 0.0
      %3434 = vmatpush1.msra.mxu0 0.0
      %3435 = vmatprep.subr.mxu0 0.0
      %3436 = vmatpush1.msra.mxu0 0.0
      %3437 = vmatprep.subr.mxu0 0.0
      %3438 = vmatpush1.msra.mxu0 0.0
      %3439 = vmatprep.subr.mxu0 0.0
      %3440 = vmatpush1.msra.mxu0 0.0
      %3441 = vmatprep.subr.mxu0 0.0
      %3442 = vmatpush1.msra.mxu0 0.0
      %3443 = vmatprep.subr.mxu0 0.0
      %3444 = vmatpush1.msra.mxu0 0.0
      %3445 = vmatprep.subr.mxu0 0.0
      %3446 = vmatpush1.msra.mxu0 0.0
      %3447 = vmatprep.subr.mxu0 0.0
      %3448 = vmatpush1.msra.mxu0 0.0
      %3449 = vmatprep.subr.mxu0 0.0
      %3450 = vmatpush1.msra.mxu0 0.0
      %3451 = vmatprep.subr.mxu0 0.0
      %3452 = vmatpush1.msra.mxu0 0.0
      %3453 = vmatprep.subr.mxu0 0.0
      %3454 = vmatpush1.msra.mxu0 0.0
      %3455 = vmatprep.subr.mxu0 0.0
      %3456 = vmatpush1.msra.mxu0 0.0
      %3457 = vmatprep.subr.mxu0 0.0
      %3458 = vmatpush1.msra.mxu0 %v3422
      %3459 = vmatprep.subr.mxu0 0.0
      %3460 = vmatpush2.msra.mxu0 0.0
      %3461 = vmatprep.subr.mxu0 0.0
      %3462 = vmatpush2.msra.mxu0 0.0
      %3463 = vmatprep.subr.mxu0 0.0
      %3464 = vmatpush2.msra.mxu0 0.0
      %3465 = vmatprep.subr.mxu0 0.0
      %3466 = vmatpush2.msra.mxu0 0.0
      %3467 = vmatprep.subr.mxu0 0.0
      %3468 = vmatpush2.msra.mxu0 0.0
      %3469 = vmatprep.subr.mxu0 0.0
      %3470 = vmatpush2.msra.mxu0 0.0
      %3471 = vmatprep.subr.mxu0 0.0
      %3472 = vmatpush2.msra.mxu0 0.0
      %3473 = vmatprep.subr.mxu0 0.0
      %3474 = vmatpush2.msra.mxu0 0.0
      %3475 = vmatprep.subr.mxu0 0.0
      %3476 = vmatpush2.msra.mxu0 0.0
      %3477 = vmatprep.subr.mxu0 0.0
      %3478 = vmatpush2.msra.mxu0 0.0
      %3479 = vmatprep.subr.mxu0 0.0
      %3480 = vmatpush2.msra.mxu0 0.0
      %3481 = vmatprep.subr.mxu0 0.0
      %3482 = vmatpush2.msra.mxu0 0.0
      %3483 = vmatprep.subr.mxu0 0.0
      %3484 = vmatpush2.msra.mxu0 0.0
      %3485 = vmatprep.subr.mxu0 0.0
      %3486 = vmatpush2.msra.mxu0 0.0
      %3487 = vmatprep.subr.mxu0 0.0
      %3488 = vmatpush2.msra.mxu0 0.0
      %3489 = vmatprep.subr.mxu0 0.0
      %3490 = vmatpush2.msra.mxu0 0.0
      %3491 = vmatprep.mubr.f32.mxu0 0.0
      %3492 = vmatmul.mubr.f32.gmra.mxu0 %v3425
      %v3493 = vpop.f32.mrf.mxu0
      %v3494 = vadd.f32 0.0, %v3493
      %v3495 = vpop.f32.mrf.mxu0
      %3496 = vdwg.mxu0
      %v3497 = vpack.c.bf16 %v3038, %v2962
      %v3498 = vpack.c.bf16 %v3190, %v3114
      %v3499 = vpack.c.bf16 %v3342, %v3266
      %v3500 = vpack.c.bf16 %v3494, %v3418
      %v3501 = vld [vmem:[%s11] sm:$0xf]
      %v3502 = vld [vmem:[%s11 + $0x4] sm:$0xf]
      %v3503 = vld [vmem:[%s11 + $0x8] sm:$0xf]
      %v3504 = vld [vmem:[%s11 + $0xc] sm:$0xf]
      %v3505 = vld [vmem:[%s12] sm:$0x1]
      %v3507 = vlaneseq
      %v3508 = vshrl.u32 %v3507, 7
      %v3509 = vsub.s32 0, %v3508
      %v3510 = vrot.slane %v3505, %v3509
      %v3516 = vunpack.c.l.b16 %v3501
      %v3517 = vunpack.c.l.b16 %v3502
      %v3518 = vunpack.c.l.b16 %v3503
      %v3519 = vunpack.c.l.b16 %v3504
      %v3520 = vpack.c.b16 %v3517, %v3516
      %v3521 = vpack.c.b16 %v3519, %v3518
      %v3525 = vsel %vm850, %v3497, 0
      %v3528 = vsel %vm850, %v3498, 0
      %v3531 = vsel %vm850, %v3499, 0
      %v3534 = vsel %vm850, %v3500, 0
      %3536 = vmatprep.subr.bf16.mxu0 0
      %3537 = vmatpush1.bf16.msra.mxu0 0
      %3538 = vmatprep.subr.bf16.mxu0 0
      %3539 = vmatpush1.bf16.msra.mxu0 0
      %3540 = vmatprep.subr.bf16.mxu0 0
      %3541 = vmatpush1.bf16.msra.mxu0 0
      %3542 = vmatprep.subr.bf16.mxu0 0
      %3543 = vmatpush1.bf16.msra.mxu0 0
      %3544 = vmatprep.subr.bf16.mxu0 0
      %3545 = vmatpush1.bf16.msra.mxu0 0
      %3546 = vmatprep.subr.bf16.mxu0 0
      %3547 = vmatpush1.bf16.msra.mxu0 0
      %3548 = vmatprep.subr.bf16.mxu0 0
      %3549 = vmatpush1.bf16.msra.mxu0 %v3521
      %3550 = vmatprep.subr.bf16.mxu0 0
      %3551 = vmatpush1.bf16.msra.mxu0 %v3520
      %3552 = vmatprep.subr.bf16.mxu0 0
      %3553 = vmatpush2.bf16.msra.mxu0 0
      %3554 = vmatprep.subr.bf16.mxu0 0
      %3555 = vmatpush2.bf16.msra.mxu0 0
      %3556 = vmatprep.subr.bf16.mxu0 0
      %3557 = vmatpush2.bf16.msra.mxu0 0
      %3558 = vmatprep.subr.bf16.mxu0 0
      %3559 = vmatpush2.bf16.msra.mxu0 0
      %3560 = vmatprep.subr.bf16.mxu0 0
      %3561 = vmatpush2.bf16.msra.mxu0 0
      %3562 = vmatprep.subr.bf16.mxu0 0
      %3563 = vmatpush2.bf16.msra.mxu0 0
      %3564 = vmatprep.subr.bf16.mxu0 0
      %3565 = vmatpush2.bf16.msra.mxu0 0
      %3566 = vmatprep.subr.bf16.mxu0 0
      %3567 = vmatpush2.bf16.msra.mxu0 0
      %3568 = vmatprep.mubr.bf16.mxu0 0
      %3569 = vmatmul.mubr.bf16.gmra.mxu0 %v3525
      %v3570 = vpop.f32.mrf.mxu0
      %v3571 = vadd.f32 %v3510, %v3570
      %v3572 = vpop.f32.mrf.mxu0
      %v3573 = vpop.f32.mrf.mxu0
      %v3574 = vadd.f32 %v3510, %v3573
      %v3575 = vpop.f32.mrf.mxu0
      %3576 = vmatprep.mubr.bf16.mxu0 0
      %3577 = vmatmul.mubr.bf16.gmra.mxu0 %v3528
      %v3578 = vpop.f32.mrf.mxu0
      %v3579 = vadd.f32 %v3510, %v3578
      %v3580 = vpop.f32.mrf.mxu0
      %v3581 = vpop.f32.mrf.mxu0
      %v3582 = vadd.f32 %v3510, %v3581
      %v3583 = vpop.f32.mrf.mxu0
      %3584 = vmatprep.mubr.bf16.mxu0 0
      %3585 = vmatmul.mubr.bf16.gmra.mxu0 %v3531
      %v3586 = vpop.f32.mrf.mxu0
      %v3587 = vadd.f32 %v3510, %v3586
      %v3588 = vpop.f32.mrf.mxu0
      %v3589 = vpop.f32.mrf.mxu0
      %v3590 = vadd.f32 %v3510, %v3589
      %v3591 = vpop.f32.mrf.mxu0
      %3592 = vmatprep.mubr.bf16.mxu0 0
      %3593 = vmatmul.mubr.bf16.gmra.mxu0 %v3534
      %v3594 = vpop.f32.mrf.mxu0
      %v3595 = vadd.f32 %v3510, %v3594
      %v3596 = vpop.f32.mrf.mxu0
      %v3597 = vpop.f32.mrf.mxu0
      %v3598 = vadd.f32 %v3510, %v3597
      %v3599 = vpop.f32.mrf.mxu0
      %3600 = vdwg.mxu0
      %v3601 = vadd.f32 %v1966, %v3571
      %v3602 = vadd.f32 %v1967, %v3574
      %v3603 = vadd.f32 %v1968, %v3579
      %v3604 = vadd.f32 %v1969, %v3582
      %v3605 = vadd.f32 %v1970, %v3587
      %v3606 = vadd.f32 %v1971, %v3590
      %v3607 = vadd.f32 %v1972, %v3595
      %v3608 = vadd.f32 %v1973, %v3598
      %v3609 = vld [vmem:[%s13] sm:$0x1]
      %v3610 = vld [vmem:[%s14] sm:$0x1]
      %v3611 = vsel %vm850, %v3601, 0.0
      %3612 = vadd.xlane.f32.xlu0 %v3611
      %v3613 = vpop.xlane.xlu0 %3612
      %v3614 = vsel %vm850, %v3602, 0.0
      %3615 = vadd.xlane.f32.xlu0 %v3614
      %v3616 = vpop.xlane.xlu0 %3615
      %v3617 = vsel %vm850, %v3603, 0.0
      %3618 = vadd.xlane.f32.xlu0 %v3617
      %v3619 = vpop.xlane.xlu0 %3618
      %v3620 = vsel %vm850, %v3604, 0.0
      %3621 = vadd.xlane.f32.xlu0 %v3620
      %v3622 = vpop.xlane.xlu0 %3621
      %v3623 = vsel %vm850, %v3605, 0.0
      %3624 = vadd.xlane.f32.xlu0 %v3623
      %v3625 = vpop.xlane.xlu0 %3624
      %v3626 = vsel %vm850, %v3606, 0.0
      %3627 = vadd.xlane.f32.xlu0 %v3626
      %v3628 = vpop.xlane.xlu0 %3627
      %v3629 = vsel %vm850, %v3607, 0.0
      %3630 = vadd.xlane.f32.xlu0 %v3629
      %v3631 = vpop.xlane.xlu0 %3630
      %v3632 = vsel %vm850, %v3608, 0.0
      %3633 = vadd.xlane.f32.xlu0 %v3632
      %v3634 = vpop.xlane.xlu0 %3633
      %v3635 = vrcp.pop 32.0
      %v3636 = vmul.f32 %v3613, %v3635
      %v3637 = vmul.f32 %v3616, %v3635
      %v3638 = vmul.f32 %v3619, %v3635
      %v3639 = vmul.f32 %v3622, %v3635
      %v3640 = vmul.f32 %v3625, %v3635
      %v3641 = vmul.f32 %v3628, %v3635
      %v3642 = vmul.f32 %v3631, %v3635
      %v3643 = vmul.f32 %v3634, %v3635
      %v3644 = vsub.f32 %v3601, %v3636
      %v3645 = vsub.f32 %v3602, %v3637
      %v3646 = vsub.f32 %v3603, %v3638
      %v3647 = vsub.f32 %v3604, %v3639
      %v3648 = vsub.f32 %v3605, %v3640
      %v3649 = vsub.f32 %v3606, %v3641
      %v3650 = vsub.f32 %v3607, %v3642
      %v3651 = vsub.f32 %v3608, %v3643
      %v3652 = vmul.f32 %v3644, %v3644
      %v3653 = vmul.f32 %v3645, %v3645
      %v3654 = vmul.f32 %v3646, %v3646
      %v3655 = vmul.f32 %v3647, %v3647
      %v3656 = vmul.f32 %v3648, %v3648
      %v3657 = vmul.f32 %v3649, %v3649
      %v3658 = vmul.f32 %v3650, %v3650
      %v3659 = vmul.f32 %v3651, %v3651
      %v3660 = vsel %vm850, %v3652, 0.0
      %3661 = vadd.xlane.f32.xlu0 %v3660
      %v3662 = vpop.xlane.xlu0 %3661
      %v3663 = vsel %vm850, %v3653, 0.0
      %3664 = vadd.xlane.f32.xlu0 %v3663
      %v3665 = vpop.xlane.xlu0 %3664
      %v3666 = vsel %vm850, %v3654, 0.0
      %3667 = vadd.xlane.f32.xlu0 %v3666
      %v3668 = vpop.xlane.xlu0 %3667
      %v3669 = vsel %vm850, %v3655, 0.0
      %3670 = vadd.xlane.f32.xlu0 %v3669
      %v3671 = vpop.xlane.xlu0 %3670
      %v3672 = vsel %vm850, %v3656, 0.0
      %3673 = vadd.xlane.f32.xlu0 %v3672
      %v3674 = vpop.xlane.xlu0 %3673
      %v3675 = vsel %vm850, %v3657, 0.0
      %3676 = vadd.xlane.f32.xlu0 %v3675
      %v3677 = vpop.xlane.xlu0 %3676
      %v3678 = vsel %vm850, %v3658, 0.0
      %3679 = vadd.xlane.f32.xlu0 %v3678
      %v3680 = vpop.xlane.xlu0 %3679
      %v3681 = vsel %vm850, %v3659, 0.0
      %3682 = vadd.xlane.f32.xlu0 %v3681
      %v3683 = vpop.xlane.xlu0 %3682
      %v3684 = vmul.f32 %v3662, %v3635
      %v3685 = vmul.f32 %v3665, %v3635
      %v3686 = vmul.f32 %v3668, %v3635
      %v3687 = vmul.f32 %v3671, %v3635
      %v3688 = vmul.f32 %v3674, %v3635
      %v3689 = vmul.f32 %v3677, %v3635
      %v3690 = vmul.f32 %v3680, %v3635
      %v3691 = vmul.f32 %v3683, %v3635
      %v3692 = vadd.f32 %v3684, 1e-12
      %v3693 = vadd.f32 %v3685, 1e-12
      %v3694 = vadd.f32 %v3686, 1e-12
      %v3695 = vadd.f32 %v3687, 1e-12
      %v3696 = vadd.f32 %v3688, 1e-12
      %v3697 = vadd.f32 %v3689, 1e-12
      %v3698 = vadd.f32 %v3690, 1e-12
      %v3699 = vadd.f32 %v3691, 1e-12
      %v3700 = vrsqrt.pop %v3692
      %v3701 = vrsqrt.pop %v3693
      %v3702 = vrsqrt.pop %v3694
      %v3703 = vrsqrt.pop %v3695
      %v3704 = vrsqrt.pop %v3696
      %v3705 = vrsqrt.pop %v3697
      %v3706 = vrsqrt.pop %v3698
      %v3707 = vrsqrt.pop %v3699
      %v3708 = vmul.f32 %v3644, %v3700
      %v3709 = vmul.f32 %v3645, %v3701
      %v3710 = vmul.f32 %v3646, %v3702
      %v3711 = vmul.f32 %v3647, %v3703
      %v3712 = vmul.f32 %v3648, %v3704
      %v3713 = vmul.f32 %v3649, %v3705
      %v3714 = vmul.f32 %v3650, %v3706
      %v3715 = vmul.f32 %v3651, %v3707
      %v3717 = vlaneseq
      %v3718 = vshrl.u32 %v3717, 7
      %v3719 = vsub.s32 0, %v3718
      %v3720 = vrot.slane %v3609, %v3719
      %v3722 = vmul.f32 %v3708, %v3720
      %v3723 = vmul.f32 %v3709, %v3720
      %v3724 = vmul.f32 %v3710, %v3720
      %v3725 = vmul.f32 %v3711, %v3720
      %v3726 = vmul.f32 %v3712, %v3720
      %v3727 = vmul.f32 %v3713, %v3720
      %v3728 = vmul.f32 %v3714, %v3720
      %v3729 = vmul.f32 %v3715, %v3720
      %v3731 = vlaneseq
      %v3732 = vshrl.u32 %v3731, 7
      %v3733 = vsub.s32 0, %v3732
      %v3734 = vrot.slane %v3610, %v3733
      %v3736 = vadd.f32 %v3722, %v3734
      %v3737 = vadd.f32 %v3723, %v3734
      %v3738 = vadd.f32 %v3724, %v3734
      %v3739 = vadd.f32 %v3725, %v3734
      %v3740 = vadd.f32 %v3726, %v3734
      %v3741 = vadd.f32 %v3727, %v3734
      %v3742 = vadd.f32 %v3728, %v3734
      %v3743 = vadd.f32 %v3729, %v3734
      %v3744 = vpack.c.bf16 %v3737, %v3736
      %v3745 = vpack.c.bf16 %v3739, %v3738
      %v3746 = vpack.c.bf16 %v3741, %v3740
      %v3747 = vpack.c.bf16 %v3743, %v3742
      %v3748 = vld [vmem:[%s15] sm:$0xf]
      %v3749 = vld [vmem:[%s15 + $0x4] sm:$0xf]
      %v3750 = vld [vmem:[%s15 + $0x8] sm:$0xf]
      %v3751 = vld [vmem:[%s15 + $0xc] sm:$0xf]
      %v3752 = vld [vmem:[%s16] sm:$0x1]
      %v3754 = vlaneseq
      %v3755 = vshrl.u32 %v3754, 7
      %v3756 = vsub.s32 0, %v3755
      %v3757 = vrot.slane %v3752, %v3756
      %v3763 = vunpack.c.l.b16 %v3748
      %v3764 = vunpack.c.l.b16 %v3749
      %v3765 = vunpack.c.l.b16 %v3750
      %v3766 = vunpack.c.l.b16 %v3751
      %v3767 = vpack.c.b16 %v3764, %v3763
      %v3768 = vpack.c.b16 %v3766, %v3765
      %v3772 = vsel %vm850, %v3744, 0
      %v3775 = vsel %vm850, %v3745, 0
      %v3778 = vsel %vm850, %v3746, 0
      %v3781 = vsel %vm850, %v3747, 0
      %3783 = vmatprep.subr.bf16.mxu0 0
      %3784 = vmatpush1.bf16.msra.mxu0 0
      %3785 = vmatprep.subr.bf16.mxu0 0
      %3786 = vmatpush1.bf16.msra.mxu0 0
      %3787 = vmatprep.subr.bf16.mxu0 0
      %3788 = vmatpush1.bf16.msra.mxu0 0
      %3789 = vmatprep.subr.bf16.mxu0 0
      %3790 = vmatpush1.bf16.msra.mxu0 0
      %3791 = vmatprep.subr.bf16.mxu0 0
      %3792 = vmatpush1.bf16.msra.mxu0 0
      %3793 = vmatprep.subr.bf16.mxu0 0
      %3794 = vmatpush1.bf16.msra.mxu0 0
      %3795 = vmatprep.subr.bf16.mxu0 0
      %3796 = vmatpush1.bf16.msra.mxu0 %v3768
      %3797 = vmatprep.subr.bf16.mxu0 0
      %3798 = vmatpush1.bf16.msra.mxu0 %v3767
      %3799 = vmatprep.subr.bf16.mxu0 0
      %3800 = vmatpush2.bf16.msra.mxu0 0
      %3801 = vmatprep.subr.bf16.mxu0 0
      %3802 = vmatpush2.bf16.msra.mxu0 0
      %3803 = vmatprep.subr.bf16.mxu0 0
      %3804 = vmatpush2.bf16.msra.mxu0 0
      %3805 = vmatprep.subr.bf16.mxu0 0
      %3806 = vmatpush2.bf16.msra.mxu0 0
      %3807 = vmatprep.subr.bf16.mxu0 0
      %3808 = vmatpush2.bf16.msra.mxu0 0
      %3809 = vmatprep.subr.bf16.mxu0 0
      %3810 = vmatpush2.bf16.msra.mxu0 0
      %3811 = vmatprep.subr.bf16.mxu0 0
      %3812 = vmatpush2.bf16.msra.mxu0 0
      %3813 = vmatprep.subr.bf16.mxu0 0
      %3814 = vmatpush2.bf16.msra.mxu0 0
      %3815 = vmatprep.mubr.bf16.mxu0 0
      %3816 = vmatmul.mubr.bf16.gmra.mxu0 %v3772
      %v3817 = vpop.f32.mrf.mxu0
      %v3818 = vadd.f32 %v3757, %v3817
      %v3819 = vpop.f32.mrf.mxu0
      %v3820 = vpop.f32.mrf.mxu0
      %v3821 = vadd.f32 %v3757, %v3820
      %v3822 = vpop.f32.mrf.mxu0
      %3823 = vmatprep.mubr.bf16.mxu0 0
      %3824 = vmatmul.mubr.bf16.gmra.mxu0 %v3775
      %v3825 = vpop.f32.mrf.mxu0
      %v3826 = vadd.f32 %v3757, %v3825
      %v3827 = vpop.f32.mrf.mxu0
      %v3828 = vpop.f32.mrf.mxu0
      %v3829 = vadd.f32 %v3757, %v3828
      %v3830 = vpop.f32.mrf.mxu0
      %3831 = vmatprep.mubr.bf16.mxu0 0
      %3832 = vmatmul.mubr.bf16.gmra.mxu0 %v3778
      %v3833 = vpop.f32.mrf.mxu0
      %v3834 = vadd.f32 %v3757, %v3833
      %v3835 = vpop.f32.mrf.mxu0
      %v3836 = vpop.f32.mrf.mxu0
      %v3837 = vadd.f32 %v3757, %v3836
      %v3838 = vpop.f32.mrf.mxu0
      %3839 = vmatprep.mubr.bf16.mxu0 0
      %3840 = vmatmul.mubr.bf16.gmra.mxu0 %v3781
      %v3841 = vpop.f32.mrf.mxu0
      %v3842 = vadd.f32 %v3757, %v3841
      %v3843 = vpop.f32.mrf.mxu0
      %v3844 = vpop.f32.mrf.mxu0
      %v3845 = vadd.f32 %v3757, %v3844
      %v3846 = vpop.f32.mrf.mxu0
      %3847 = vdwg.mxu0
      %v3848 = vmul.f32 %v3818, %v3818
      %v3849 = vmul.f32 %v3821, %v3821
      %v3850 = vmul.f32 %v3826, %v3826
      %v3851 = vmul.f32 %v3829, %v3829
      %v3852 = vmul.f32 %v3834, %v3834
      %v3853 = vmul.f32 %v3837, %v3837
      %v3854 = vmul.f32 %v3842, %v3842
      %v3855 = vmul.f32 %v3845, %v3845
      %v3856 = vmul.f32 %v3818, %v3848
      %v3857 = vmul.f32 %v3821, %v3849
      %v3858 = vmul.f32 %v3826, %v3850
      %v3859 = vmul.f32 %v3829, %v3851
      %v3860 = vmul.f32 %v3834, %v3852
      %v3861 = vmul.f32 %v3837, %v3853
      %v3862 = vmul.f32 %v3842, %v3854
      %v3863 = vmul.f32 %v3845, %v3855
      %v3864 = vmul.f32 %v3856, 0.044715
      %v3865 = vmul.f32 %v3857, 0.044715
      %v3866 = vmul.f32 %v3858, 0.044715
      %v3867 = vmul.f32 %v3859, 0.044715
      %v3868 = vmul.f32 %v3860, 0.044715
      %v3869 = vmul.f32 %v3861, 0.044715
      %v3870 = vmul.f32 %v3862, 0.044715
      %v3871 = vmul.f32 %v3863, 0.044715
      %v3872 = vadd.f32 %v3818, %v3864
      %v3873 = vadd.f32 %v3821, %v3865
      %v3874 = vadd.f32 %v3826, %v3866
      %v3875 = vadd.f32 %v3829, %v3867
      %v3876 = vadd.f32 %v3834, %v3868
      %v3877 = vadd.f32 %v3837, %v3869
      %v3878 = vadd.f32 %v3842, %v3870
      %v3879 = vadd.f32 %v3845, %v3871
      %v3880 = vmul.f32 %v3872, 0.7978846
      %v3881 = vmul.f32 %v3873, 0.7978846
      %v3882 = vmul.f32 %v3874, 0.7978846
      %v3883 = vmul.f32 %v3875, 0.7978846
      %v3884 = vmul.f32 %v3876, 0.7978846
      %v3885 = vmul.f32 %v3877, 0.7978846
      %v3886 = vmul.f32 %v3878, 0.7978846
      %v3887 = vmul.f32 %v3879, 0.7978846
      %v3888 = vtanh.pop %v3880
      %v3889 = vtanh.pop %v3881
      %v3890 = vtanh.pop %v3882
      %v3891 = vtanh.pop %v3883
      %v3892 = vtanh.pop %v3884
      %v3893 = vtanh.pop %v3885
      %v3894 = vtanh.pop %v3886
      %v3895 = vtanh.pop %v3887
      %v3896 = vadd.f32 %v3888, 1.0
      %v3897 = vadd.f32 %v3889, 1.0
      %v3898 = vadd.f32 %v3890, 1.0
      %v3899 = vadd.f32 %v3891, 1.0
      %v3900 = vadd.f32 %v3892, 1.0
      %v3901 = vadd.f32 %v3893, 1.0
      %v3902 = vadd.f32 %v3894, 1.0
      %v3903 = vadd.f32 %v3895, 1.0
      %v3904 = vmul.f32 %v3896, 0.5
      %v3905 = vmul.f32 %v3897, 0.5
      %v3906 = vmul.f32 %v3898, 0.5
      %v3907 = vmul.f32 %v3899, 0.5
      %v3908 = vmul.f32 %v3900, 0.5
      %v3909 = vmul.f32 %v3901, 0.5
      %v3910 = vmul.f32 %v3902, 0.5
      %v3911 = vmul.f32 %v3903, 0.5
      %v3912 = vmul.f32 %v3818, %v3904
      %v3913 = vmul.f32 %v3821, %v3905
      %v3914 = vmul.f32 %v3826, %v3906
      %v3915 = vmul.f32 %v3829, %v3907
      %v3916 = vmul.f32 %v3834, %v3908
      %v3917 = vmul.f32 %v3837, %v3909
      %v3918 = vmul.f32 %v3842, %v3910
      %v3919 = vmul.f32 %v3845, %v3911
      %v3920 = vpack.c.bf16 %v3913, %v3912
      %v3921 = vpack.c.bf16 %v3915, %v3914
      %v3922 = vpack.c.bf16 %v3917, %v3916
      %v3923 = vpack.c.bf16 %v3919, %v3918
      %v3924 = vld [vmem:[%s17] sm:$0xf]
      %v3925 = vld [vmem:[%s17 + $0x4] sm:$0xf]
      %v3926 = vld [vmem:[%s17 + $0x8] sm:$0xf]
      %v3927 = vld [vmem:[%s17 + $0xc] sm:$0xf]
      %v3928 = vld [vmem:[%s17 + $0x10] sm:$0xf]
      %v3929 = vld [vmem:[%s17 + $0x14] sm:$0xf]
      %v3930 = vld [vmem:[%s17 + $0x18] sm:$0xf]
      %v3931 = vld [vmem:[%s17 + $0x1c] sm:$0xf]
      %v3932 = vld [vmem:[%s17 + $0x20] sm:$0xf]
      %v3933 = vld [vmem:[%s17 + $0x24] sm:$0xf]
      %v3934 = vld [vmem:[%s17 + $0x28] sm:$0xf]
      %v3935 = vld [vmem:[%s17 + $0x2c] sm:$0xf]
      %v3936 = vld [vmem:[%s17 + $0x30] sm:$0xf]
      %v3937 = vld [vmem:[%s17 + $0x34] sm:$0xf]
      %v3938 = vld [vmem:[%s17 + $0x38] sm:$0xf]
      %v3939 = vld [vmem:[%s17 + $0x3c] sm:$0xf]
      %v3940 = vld [vmem:[%s18] sm:$0x1]
      %v3942 = vlaneseq
      %v3943 = vshrl.u32 %v3942, 7
      %v3944 = vsub.s32 0, %v3943
      %v3945 = vrot.slane %v3940, %v3944
      %v3963 = vunpack.c.l.b16 %v3924
      %v3964 = vunpack.c.l.b16 %v3925
      %v3965 = vunpack.c.l.b16 %v3926
      %v3966 = vunpack.c.l.b16 %v3927
      %v3967 = vunpack.c.l.b16 %v3928
      %v3968 = vunpack.c.l.b16 %v3929
      %v3969 = vunpack.c.l.b16 %v3930
      %v3970 = vunpack.c.l.b16 %v3931
      %v3971 = vunpack.c.l.b16 %v3932
      %v3972 = vunpack.c.l.b16 %v3933
      %v3973 = vunpack.c.l.b16 %v3934
      %v3974 = vunpack.c.l.b16 %v3935
      %v3975 = vunpack.c.l.b16 %v3936
      %v3976 = vunpack.c.l.b16 %v3937
      %v3977 = vunpack.c.l.b16 %v3938
      %v3978 = vunpack.c.l.b16 %v3939
      %v3979 = vpack.c.b16 %v3964, %v3963
      %v3980 = vpack.c.b16 %v3966, %v3965
      %v3981 = vpack.c.b16 %v3968, %v3967
      %v3982 = vpack.c.b16 %v3970, %v3969
      %v3983 = vpack.c.b16 %v3972, %v3971
      %v3984 = vpack.c.b16 %v3974, %v3973
      %v3985 = vpack.c.b16 %v3976, %v3975
      %v3986 = vpack.c.b16 %v3978, %v3977
      %3995 = vmatprep.subr.bf16.mxu0 0
      %3996 = vmatpush1.bf16.msra.mxu0 %v3986
      %3997 = vmatprep.subr.bf16.mxu0 0
      %3998 = vmatpush1.bf16.msra.mxu0 %v3985
      %3999 = vmatprep.subr.bf16.mxu0 0
      %4000 = vmatpush1.bf16.msra.mxu0 %v3984
      %4001 = vmatprep.subr.bf16.mxu0 0
      %4002 = vmatpush1.bf16.msra.mxu0 %v3983
      %4003 = vmatprep.subr.bf16.mxu0 0
      %4004 = vmatpush1.bf16.msra.mxu0 %v3982
      %4005 = vmatprep.subr.bf16.mxu0 0
      %4006 = vmatpush1.bf16.msra.mxu0 %v3981
      %4007 = vmatprep.subr.bf16.mxu0 0
      %4008 = vmatpush1.bf16.msra.mxu0 %v3980
      %4009 = vmatprep.subr.bf16.mxu0 0
      %4010 = vmatpush1.bf16.msra.mxu0 %v3979
      %4011 = vmatprep.subr.bf16.mxu0 0
      %4012 = vmatpush2.bf16.msra.mxu0 0
      %4013 = vmatprep.subr.bf16.mxu0 0
      %4014 = vmatpush2.bf16.msra.mxu0 0
      %4015 = vmatprep.subr.bf16.mxu0 0
      %4016 = vmatpush2.bf16.msra.mxu0 0
      %4017 = vmatprep.subr.bf16.mxu0 0
      %4018 = vmatpush2.bf16.msra.mxu0 0
      %4019 = vmatprep.subr.bf16.mxu0 0
      %4020 = vmatpush2.bf16.msra.mxu0 0
      %4021 = vmatprep.subr.bf16.mxu0 0
      %4022 = vmatpush2.bf16.msra.mxu0 0
      %4023 = vmatprep.subr.bf16.mxu0 0
      %4024 = vmatpush2.bf16.msra.mxu0 0
      %4025 = vmatprep.subr.bf16.mxu0 0
      %4026 = vmatpush2.bf16.msra.mxu0 0
      %4027 = vmatprep.mubr.bf16.mxu0 0
      %4028 = vmatmul.mubr.bf16.gmra.mxu0 %v3920
      %v4029 = vpop.f32.mrf.mxu0
      %v4030 = vadd.f32 %v3945, %v4029
      %v4031 = vpop.f32.mrf.mxu0
      %v4032 = vpop.f32.mrf.mxu0
      %v4033 = vadd.f32 %v3945, %v4032
      %v4034 = vpop.f32.mrf.mxu0
      %4035 = vmatprep.mubr.bf16.mxu0 0
      %4036 = vmatmul.mubr.bf16.gmra.mxu0 %v3921
      %v4037 = vpop.f32.mrf.mxu0
      %v4038 = vadd.f32 %v3945, %v4037
      %v4039 = vpop.f32.mrf.mxu0
      %v4040 = vpop.f32.mrf.mxu0
      %v4041 = vadd.f32 %v3945, %v4040
      %v4042 = vpop.f32.mrf.mxu0
      %4043 = vmatprep.mubr.bf16.mxu0 0
      %4044 = vmatmul.mubr.bf16.gmra.mxu0 %v3922
      %v4045 = vpop.f32.mrf.mxu0
      %v4046 = vadd.f32 %v3945, %v4045
      %v4047 = vpop.f32.mrf.mxu0
      %v4048 = vpop.f32.mrf.mxu0
      %v4049 = vadd.f32 %v3945, %v4048
      %v4050 = vpop.f32.mrf.mxu0
      %4051 = vmatprep.mubr.bf16.mxu0 0
      %4052 = vmatmul.mubr.bf16.gmra.mxu0 %v3923
      %v4053 = vpop.f32.mrf.mxu0
      %v4054 = vadd.f32 %v3945, %v4053
      %v4055 = vpop.f32.mrf.mxu0
      %v4056 = vpop.f32.mrf.mxu0
      %v4057 = vadd.f32 %v3945, %v4056
      %v4058 = vpop.f32.mrf.mxu0
      %4059 = vdwg.mxu0
      %v4060 = vadd.f32 %v3736, %v4030
      %v4061 = vadd.f32 %v3737, %v4033
      %v4062 = vadd.f32 %v3738, %v4038
      %v4063 = vadd.f32 %v3739, %v4041
      %v4064 = vadd.f32 %v3740, %v4046
      %v4065 = vadd.f32 %v3741, %v4049
      %v4066 = vadd.f32 %v3742, %v4054
      %v4067 = vadd.f32 %v3743, %v4057
      %v4068 = vld [vmem:[%s19] sm:$0x1]
      %v4069 = vld [vmem:[%s20] sm:$0x1]
      %v4070 = vsel %vm850, %v4060, 0.0
      %4071 = vadd.xlane.f32.xlu0 %v4070
      %v4072 = vpop.xlane.xlu0 %4071
      %v4073 = vsel %vm850, %v4061, 0.0
      %4074 = vadd.xlane.f32.xlu0 %v4073
      %v4075 = vpop.xlane.xlu0 %4074
      %v4076 = vsel %vm850, %v4062, 0.0
      %4077 = vadd.xlane.f32.xlu0 %v4076
      %v4078 = vpop.xlane.xlu0 %4077
      %v4079 = vsel %vm850, %v4063, 0.0
      %4080 = vadd.xlane.f32.xlu0 %v4079
      %v4081 = vpop.xlane.xlu0 %4080
      %v4082 = vsel %vm850, %v4064, 0.0
      %4083 = vadd.xlane.f32.xlu0 %v4082
      %v4084 = vpop.xlane.xlu0 %4083
      %v4085 = vsel %vm850, %v4065, 0.0
      %4086 = vadd.xlane.f32.xlu0 %v4085
      %v4087 = vpop.xlane.xlu0 %4086
      %v4088 = vsel %vm850, %v4066, 0.0
      %4089 = vadd.xlane.f32.xlu0 %v4088
      %v4090 = vpop.xlane.xlu0 %4089
      %v4091 = vsel %vm850, %v4067, 0.0
      %4092 = vadd.xlane.f32.xlu0 %v4091
      %v4093 = vpop.xlane.xlu0 %4092
      %v4094 = vmul.f32 %v4072, %v3635
      %v4095 = vmul.f32 %v4075, %v3635
      %v4096 = vmul.f32 %v4078, %v3635
      %v4097 = vmul.f32 %v4081, %v3635
      %v4098 = vmul.f32 %v4084, %v3635
      %v4099 = vmul.f32 %v4087, %v3635
      %v4100 = vmul.f32 %v4090, %v3635
      %v4101 = vmul.f32 %v4093, %v3635
      %v4102 = vsub.f32 %v4060, %v4094
      %v4103 = vsub.f32 %v4061, %v4095
      %v4104 = vsub.f32 %v4062, %v4096
      %v4105 = vsub.f32 %v4063, %v4097
      %v4106 = vsub.f32 %v4064, %v4098
      %v4107 = vsub.f32 %v4065, %v4099
      %v4108 = vsub.f32 %v4066, %v4100
      %v4109 = vsub.f32 %v4067, %v4101
      %v4110 = vmul.f32 %v4102, %v4102
      %v4111 = vmul.f32 %v4103, %v4103
      %v4112 = vmul.f32 %v4104, %v4104
      %v4113 = vmul.f32 %v4105, %v4105
      %v4114 = vmul.f32 %v4106, %v4106
      %v4115 = vmul.f32 %v4107, %v4107
      %v4116 = vmul.f32 %v4108, %v4108
      %v4117 = vmul.f32 %v4109, %v4109
      %v4118 = vsel %vm850, %v4110, 0.0
      %4119 = vadd.xlane.f32.xlu0 %v4118
      %v4120 = vpop.xlane.xlu0 %4119
      %v4121 = vsel %vm850, %v4111, 0.0
      %4122 = vadd.xlane.f32.xlu0 %v4121
      %v4123 = vpop.xlane.xlu0 %4122
      %v4124 = vsel %vm850, %v4112, 0.0
      %4125 = vadd.xlane.f32.xlu0 %v4124
      %v4126 = vpop.xlane.xlu0 %4125
      %v4127 = vsel %vm850, %v4113, 0.0
      %4128 = vadd.xlane.f32.xlu0 %v4127
      %v4129 = vpop.xlane.xlu0 %4128
      %v4130 = vsel %vm850, %v4114, 0.0
      %4131 = vadd.xlane.f32.xlu0 %v4130
      %v4132 = vpop.xlane.xlu0 %4131
      %v4133 = vsel %vm850, %v4115, 0.0
      %4134 = vadd.xlane.f32.xlu0 %v4133
      %v4135 = vpop.xlane.xlu0 %4134
      %v4136 = vsel %vm850, %v4116, 0.0
      %4137 = vadd.xlane.f32.xlu0 %v4136
      %v4138 = vpop.xlane.xlu0 %4137
      %v4139 = vsel %vm850, %v4117, 0.0
      %4140 = vadd.xlane.f32.xlu0 %v4139
      %v4141 = vpop.xlane.xlu0 %4140
      %v4142 = vmul.f32 %v4120, %v3635
      %v4143 = vmul.f32 %v4123, %v3635
      %v4144 = vmul.f32 %v4126, %v3635
      %v4145 = vmul.f32 %v4129, %v3635
      %v4146 = vmul.f32 %v4132, %v3635
      %v4147 = vmul.f32 %v4135, %v3635
      %v4148 = vmul.f32 %v4138, %v3635
      %v4149 = vmul.f32 %v4141, %v3635
      %v4150 = vadd.f32 %v4142, 1e-12
      %v4151 = vadd.f32 %v4143, 1e-12
      %v4152 = vadd.f32 %v4144, 1e-12
      %v4153 = vadd.f32 %v4145, 1e-12
      %v4154 = vadd.f32 %v4146, 1e-12
      %v4155 = vadd.f32 %v4147, 1e-12
      %v4156 = vadd.f32 %v4148, 1e-12
      %v4157 = vadd.f32 %v4149, 1e-12
      %v4158 = vrsqrt.pop %v4150
      %v4159 = vrsqrt.pop %v4151
      %v4160 = vrsqrt.pop %v4152
      %v4161 = vrsqrt.pop %v4153
      %v4162 = vrsqrt.pop %v4154
      %v4163 = vrsqrt.pop %v4155
      %v4164 = vrsqrt.pop %v4156
      %v4165 = vrsqrt.pop %v4157
      %v4166 = vmul.f32 %v4102, %v4158
      %v4167 = vmul.f32 %v4103, %v4159
      %v4168 = vmul.f32 %v4104, %v4160
      %v4169 = vmul.f32 %v4105, %v4161
      %v4170 = vmul.f32 %v4106, %v4162
      %v4171 = vmul.f32 %v4107, %v4163
      %v4172 = vmul.f32 %v4108, %v4164
      %v4173 = vmul.f32 %v4109, %v4165
      %v4175 = vlaneseq
      %v4176 = vshrl.u32 %v4175, 7
      %v4177 = vsub.s32 0, %v4176
      %v4178 = vrot.slane %v4068, %v4177
      %v4180 = vmul.f32 %v4166, %v4178
      %v4181 = vmul.f32 %v4167, %v4178
      %v4182 = vmul.f32 %v4168, %v4178
      %v4183 = vmul.f32 %v4169, %v4178
      %v4184 = vmul.f32 %v4170, %v4178
      %v4185 = vmul.f32 %v4171, %v4178
      %v4186 = vmul.f32 %v4172, %v4178
      %v4187 = vmul.f32 %v4173, %v4178
      %v4189 = vlaneseq
      %v4190 = vshrl.u32 %v4189, 7
      %v4191 = vsub.s32 0, %v4190
      %v4192 = vrot.slane %v4069, %v4191
      %v4194 = vadd.f32 %v4180, %v4192
      %v4195 = vadd.f32 %v4181, %v4192
      %v4196 = vadd.f32 %v4182, %v4192
      %v4197 = vadd.f32 %v4183, %v4192
      %v4198 = vadd.f32 %v4184, %v4192
      %v4199 = vadd.f32 %v4185, %v4192
      %v4200 = vadd.f32 %v4186, %v4192
      %v4201 = vadd.f32 %v4187, %v4192
      %v4202 = vld [vmem:[%s21] sm:$0xff]
      %v4203 = vld [vmem:[%s21 + $0x8] sm:$0xff]
      %v4204 = vld [vmem:[%s21 + $0x10] sm:$0xff]
      %v4205 = vld [vmem:[%s21 + $0x18] sm:$0xff]
      %v4206 = vld [vmem:[%s22] sm:$0x1]
      %v4208 = vlaneseq
      %v4209 = vshrl.u32 %v4208, 7
      %v4210 = vsub.s32 0, %v4209
      %v4211 = vrot.slane %v4206, %v4210
      %v4221 = vrot.slane %v4195, 7
      %vm4222 = vcmask 1041409
      %v4223 = vsel %vm4222, %v4221, %v4194
      %v4224 = vrot.slane %v4196, 6
      %vm4225 = vcmask 1042434
      %v4226 = vsel %vm4225, %v4224, %v4223
      %v4227 = vrot.slane %v4197, 5
      %vm4228 = vcmask 1043459
      %v4229 = vsel %vm4228, %v4227, %v4226
      %v4230 = vrot.slane %v4198, 4
      %vm4231 = vcmask 1044484
      %v4232 = vsel %vm4231, %v4230, %v4229
      %v4233 = vrot.slane %v4199, 3
      %vm4234 = vcmask 1045509
      %v4235 = vsel %vm4234, %v4233, %v4232
      %v4236 = vrot.slane %v4200, 2
      %vm4237 = vcmask 1046534
      %v4238 = vsel %vm4237, %v4236, %v4235
      %v4239 = vrot.slane %v4201, 1
      %vm4240 = vcmask 1047559
      %v4241 = vsel %vm4240, %v4239, %v4238
      %v4242 = vsel %vm850, %v4241, 0
      %4244 = vmatprep.subr.mxu0 0.0
      %4245 = vmatpush1.msra.mxu0 0.0
      %4246 = vmatprep.subr.mxu0 0.0
      %4247 = vmatpush1.msra.mxu0 0.0
      %4248 = vmatprep.subr.mxu0 0.0
      %4249 = vmatpush1.msra.mxu0 0.0
      %4250 = vmatprep.subr.mxu0 0.0
      %4251 = vmatpush1.msra.mxu0 0.0
      %4252 = vmatprep.subr.mxu0 0.0
      %4253 = vmatpush1.msra.mxu0 0.0
      %4254 = vmatprep.subr.mxu0 0.0
      %4255 = vmatpush1.msra.mxu0 0.0
      %4256 = vmatprep.subr.mxu0 0.0
      %4257 = vmatpush1.msra.mxu0 0.0
      %4258 = vmatprep.subr.mxu0 0.0
      %4259 = vmatpush1.msra.mxu0 0.0
      %4260 = vmatprep.subr.mxu0 0.0
      %4261 = vmatpush1.msra.mxu0 0.0
      %4262 = vmatprep.subr.mxu0 0.0
      %4263 = vmatpush1.msra.mxu0 0.0
      %4264 = vmatprep.subr.mxu0 0.0
      %4265 = vmatpush1.msra.mxu0 0.0
      %4266 = vmatprep.subr.mxu0 0.0
      %4267 = vmatpush1.msra.mxu0 0.0
      %4268 = vmatprep.subr.mxu0 0.0
      %4269 = vmatpush1.msra.mxu0 %v4205
      %4270 = vmatprep.subr.mxu0 0.0
      %4271 = vmatpush1.msra.mxu0 %v4204
      %4272 = vmatprep.subr.mxu0 0.0
      %4273 = vmatpush1.msra.mxu0 %v4203
      %4274 = vmatprep.subr.mxu0 0.0
      %4275 = vmatpush1.msra.mxu0 %v4202
      %4276 = vmatprep.subr.mxu0 0.0
      %4277 = vmatpush2.msra.mxu0 0.0
      %4278 = vmatprep.subr.mxu0 0.0
      %4279 = vmatpush2.msra.mxu0 0.0
      %4280 = vmatprep.subr.mxu0 0.0
      %4281 = vmatpush2.msra.mxu0 0.0
      %4282 = vmatprep.subr.mxu0 0.0
      %4283 = vmatpush2.msra.mxu0 0.0
      %4284 = vmatprep.subr.mxu0 0.0
      %4285 = vmatpush2.msra.mxu0 0.0
      %4286 = vmatprep.subr.mxu0 0.0
      %4287 = vmatpush2.msra.mxu0 0.0
      %4288 = vmatprep.subr.mxu0 0.0
      %4289 = vmatpush2.msra.mxu0 0.0
      %4290 = vmatprep.subr.mxu0 0.0
      %4291 = vmatpush2.msra.mxu0 0.0
      %4292 = vmatprep.subr.mxu0 0.0
      %4293 = vmatpush2.msra.mxu0 0.0
      %4294 = vmatprep.subr.mxu0 0.0
      %4295 = vmatpush2.msra.mxu0 0.0
      %4296 = vmatprep.subr.mxu0 0.0
      %4297 = vmatpush2.msra.mxu0 0.0
      %4298 = vmatprep.subr.mxu0 0.0
      %4299 = vmatpush2.msra.mxu0 0.0
      %4300 = vmatprep.subr.mxu0 0.0
      %4301 = vmatpush2.msra.mxu0 0.0
      %4302 = vmatprep.subr.mxu0 0.0
      %4303 = vmatpush2.msra.mxu0 0.0
      %4304 = vmatprep.subr.mxu0 0.0
      %4305 = vmatpush2.msra.mxu0 0.0
      %4306 = vmatprep.subr.mxu0 0.0
      %4307 = vmatpush2.msra.mxu0 0.0
      %4308 = vmatprep.mubr.f32.mxu0 0.0
      %4309 = vmatmul.mubr.f32.gmra.mxu0 %v4242
      %v4310 = vpop.f32.mrf.mxu0
      %v4311 = vadd.f32 %v4211, %v4310
      %v4312 = vpop.f32.mrf.mxu0
      %4313 = vdwg.mxu0
      %v4314 = vtanh.pop %v4311
      %v4315 = vlaneseq
      %v4316 = vshrl.u32 %v4315, 7
      %v4317 = vsub.s32 0, %v4316
      %v4318 = vrot.slane %v837, %v4317
      %4320 = vbcast.lane.b32.xlu0 %v4318, 256
      %v4321 = vpop.permute.xlu0 %4320
      %v4322 = vlaneseq
      %v4323 = vshrl.u32 %v4322, 7
      %v4324 = vsub.s32 1, %v4323
      %v4325 = vrot.slane %v837, %v4324
      %4327 = vbcast.lane.b32.xlu0 %v4325, 256
      %v4328 = vpop.permute.xlu0 %4327
      %v4329 = vlaneseq
      %v4330 = vshrl.u32 %v4329, 7
      %v4331 = vsub.s32 2, %v4330
      %v4332 = vrot.slane %v837, %v4331
      %4334 = vbcast.lane.b32.xlu0 %v4332, 256
      %v4335 = vpop.permute.xlu0 %4334
      %v4336 = vlaneseq
      %v4337 = vshrl.u32 %v4336, 7
      %v4338 = vsub.s32 3, %v4337
      %v4339 = vrot.slane %v837, %v4338
      %4341 = vbcast.lane.b32.xlu0 %v4339, 256
      %v4342 = vpop.permute.xlu0 %4341
      %v4343 = vlaneseq
      %v4344 = vshrl.u32 %v4343, 7
      %v4345 = vsub.s32 4, %v4344
      %v4346 = vrot.slane %v837, %v4345
      %4348 = vbcast.lane.b32.xlu0 %v4346, 256
      %v4349 = vpop.permute.xlu0 %4348
      %v4350 = vlaneseq
      %v4351 = vshrl.u32 %v4350, 7
      %v4352 = vsub.s32 5, %v4351
      %v4353 = vrot.slane %v837, %v4352
      %4355 = vbcast.lane.b32.xlu0 %v4353, 256
      %v4356 = vpop.permute.xlu0 %4355
      %v4357 = vlaneseq
      %v4358 = vshrl.u32 %v4357, 7
      %v4359 = vsub.s32 6, %v4358
      %v4360 = vrot.slane %v837, %v4359
      %4362 = vbcast.lane.b32.xlu0 %v4360, 256
      %v4363 = vpop.permute.xlu0 %4362
      %v4364 = vlaneseq
      %v4365 = vshrl.u32 %v4364, 7
      %v4366 = vsub.s32 7, %v4365
      %v4367 = vrot.slane %v837, %v4366
      %4369 = vbcast.lane.b32.xlu0 %v4367, 256
      %v4370 = vpop.permute.xlu0 %4369
      %v4371 = vmul.f32 %v4194, %v4321
      %v4372 = vmul.f32 %v4195, %v4328
      %v4373 = vmul.f32 %v4196, %v4335
      %v4374 = vmul.f32 %v4197, %v4342
      %v4375 = vmul.f32 %v4198, %v4349
      %v4376 = vmul.f32 %v4199, %v4356
      %v4377 = vmul.f32 %v4200, %v4363
      %v4378 = vmul.f32 %v4201, %v4370
      %v4379 = vsel %vm850, %v4371, 0.0
      %v4380 = vrot.slane %v4379, 4
      %v4381 = vadd.f32 %v4379, %v4380
      %v4382 = vrot.slane %v4381, 2
      %v4383 = vadd.f32 %v4381, %v4382
      %v4384 = vrot.slane %v4383, 1
      %v4385 = vadd.f32 %v4383, %v4384
      %v4386 = vsel %vm850, %v4372, 0.0
      %v4387 = vrot.slane %v4386, 4
      %v4388 = vadd.f32 %v4386, %v4387
      %v4389 = vrot.slane %v4388, 2
      %v4390 = vadd.f32 %v4388, %v4389
      %v4391 = vrot.slane %v4390, 1
      %v4392 = vadd.f32 %v4390, %v4391
      %v4393 = vsel %vm850, %v4373, 0.0
      %v4394 = vrot.slane %v4393, 4
      %v4395 = vadd.f32 %v4393, %v4394
      %v4396 = vrot.slane %v4395, 2
      %v4397 = vadd.f32 %v4395, %v4396
      %v4398 = vrot.slane %v4397, 1
      %v4399 = vadd.f32 %v4397, %v4398
      %v4400 = vsel %vm850, %v4374, 0.0
      %v4401 = vrot.slane %v4400, 4
      %v4402 = vadd.f32 %v4400, %v4401
      %v4403 = vrot.slane %v4402, 2
      %v4404 = vadd.f32 %v4402, %v4403
      %v4405 = vrot.slane %v4404, 1
      %v4406 = vadd.f32 %v4404, %v4405
      %v4407 = vsel %vm850, %v4375, 0.0
      %v4408 = vrot.slane %v4407, 4
      %v4409 = vadd.f32 %v4407, %v4408
      %v4410 = vrot.slane %v4409, 2
      %v4411 = vadd.f32 %v4409, %v4410
      %v4412 = vrot.slane %v4411, 1
      %v4413 = vadd.f32 %v4411, %v4412
      %v4414 = vsel %vm850, %v4376, 0.0
      %v4415 = vrot.slane %v4414, 4
      %v4416 = vadd.f32 %v4414, %v4415
      %v4417 = vrot.slane %v4416, 2
      %v4418 = vadd.f32 %v4416, %v4417
      %v4419 = vrot.slane %v4418, 1
      %v4420 = vadd.f32 %v4418, %v4419
      %v4421 = vsel %vm850, %v4377, 0.0
      %v4422 = vrot.slane %v4421, 4
      %v4423 = vadd.f32 %v4421, %v4422
      %v4424 = vrot.slane %v4423, 2
      %v4425 = vadd.f32 %v4423, %v4424
      %v4426 = vrot.slane %v4425, 1
      %v4427 = vadd.f32 %v4425, %v4426
      %v4428 = vsel %vm850, %v4378, 0.0
      %v4429 = vrot.slane %v4428, 4
      %v4430 = vadd.f32 %v4428, %v4429
      %v4431 = vrot.slane %v4430, 2
      %v4432 = vadd.f32 %v4430, %v4431
      %v4433 = vrot.slane %v4432, 1
      %v4434 = vadd.f32 %v4432, %v4433
      %v4443 = vsel %vm4222, %v4392, %v4385
      %v4444 = vsel %vm4225, %v4399, %v4443
      %v4445 = vsel %vm4228, %v4406, %v4444
      %v4446 = vsel %vm4231, %v4413, %v4445
      %v4447 = vsel %vm4234, %v4420, %v4446
      %v4448 = vsel %vm4237, %v4427, %v4447
      %v4449 = vsel %vm4240, %v4434, %v4448
      %v4451 = vadd.f32 %v4314, %v4449
      %v4452 = vld [vmem:[%s23] sm:$0xff]
      %v4453 = vld [vmem:[%s23 + $0x8] sm:$0xff]
      %v4454 = vld [vmem:[%s23 + $0x10] sm:$0xff]
      %v4455 = vld [vmem:[%s23 + $0x18] sm:$0xff]
      %v4456 = vld [vmem:[%s24] sm:$0x1]
      %v4458 = vlaneseq
      %v4459 = vshrl.u32 %v4458, 7
      %v4460 = vsub.s32 0, %v4459
      %v4461 = vrot.slane %v4456, %v4460
      %v4464 = vsel %vm850, %v4451, 0
      %4466 = vmatprep.subr.mxu0 0.0
      %4467 = vmatpush1.msra.mxu0 0.0
      %4468 = vmatprep.subr.mxu0 0.0
      %4469 = vmatpush1.msra.mxu0 0.0
      %4470 = vmatprep.subr.mxu0 0.0
      %4471 = vmatpush1.msra.mxu0 0.0
      %4472 = vmatprep.subr.mxu0 0.0
      %4473 = vmatpush1.msra.mxu0 0.0
      %4474 = vmatprep.subr.mxu0 0.0
      %4475 = vmatpush1.msra.mxu0 0.0
      %4476 = vmatprep.subr.mxu0 0.0
      %4477 = vmatpush1.msra.mxu0 0.0
      %4478 = vmatprep.subr.mxu0 0.0
      %4479 = vmatpush1.msra.mxu0 0.0
      %4480 = vmatprep.subr.mxu0 0.0
      %4481 = vmatpush1.msra.mxu0 0.0
      %4482 = vmatprep.subr.mxu0 0.0
      %4483 = vmatpush1.msra.mxu0 0.0
      %4484 = vmatprep.subr.mxu0 0.0
      %4485 = vmatpush1.msra.mxu0 0.0
      %4486 = vmatprep.subr.mxu0 0.0
      %4487 = vmatpush1.msra.mxu0 0.0
      %4488 = vmatprep.subr.mxu0 0.0
      %4489 = vmatpush1.msra.mxu0 0.0
      %4490 = vmatprep.subr.mxu0 0.0
      %4491 = vmatpush1.msra.mxu0 %v4455
      %4492 = vmatprep.subr.mxu0 0.0
      %4493 = vmatpush1.msra.mxu0 %v4454
      %4494 = vmatprep.subr.mxu0 0.0
      %4495 = vmatpush1.msra.mxu0 %v4453
      %4496 = vmatprep.subr.mxu0 0.0
      %4497 = vmatpush1.msra.mxu0 %v4452
      %4498 = vmatprep.subr.mxu0 0.0
      %4499 = vmatpush2.msra.mxu0 0.0
      %4500 = vmatprep.subr.mxu0 0.0
      %4501 = vmatpush2.msra.mxu0 0.0
      %4502 = vmatprep.subr.mxu0 0.0
      %4503 = vmatpush2.msra.mxu0 0.0
      %4504 = vmatprep.subr.mxu0 0.0
      %4505 = vmatpush2.msra.mxu0 0.0
      %4506 = vmatprep.subr.mxu0 0.0
      %4507 = vmatpush2.msra.mxu0 0.0
      %4508 = vmatprep.subr.mxu0 0.0
      %4509 = vmatpush2.msra.mxu0 0.0
      %4510 = vmatprep.subr.mxu0 0.0
      %4511 = vmatpush2.msra.mxu0 0.0
      %4512 = vmatprep.subr.mxu0 0.0
      %4513 = vmatpush2.msra.mxu0 0.0
      %4514 = vmatprep.subr.mxu0 0.0
      %4515 = vmatpush2.msra.mxu0 0.0
      %4516 = vmatprep.subr.mxu0 0.0
      %4517 = vmatpush2.msra.mxu0 0.0
      %4518 = vmatprep.subr.mxu0 0.0
      %4519 = vmatpush2.msra.mxu0 0.0
      %4520 = vmatprep.subr.mxu0 0.0
      %4521 = vmatpush2.msra.mxu0 0.0
      %4522 = vmatprep.subr.mxu0 0.0
      %4523 = vmatpush2.msra.mxu0 0.0
      %4524 = vmatprep.subr.mxu0 0.0
      %4525 = vmatpush2.msra.mxu0 0.0
      %4526 = vmatprep.subr.mxu0 0.0
      %4527 = vmatpush2.msra.mxu0 0.0
      %4528 = vmatprep.subr.mxu0 0.0
      %4529 = vmatpush2.msra.mxu0 0.0
      %4530 = vmatprep.mubr.f32.mxu0 0.0
      %4531 = vmatmul.mubr.f32.gmra.mxu0 %v4464
      %v4532 = vpop.f32.mrf.mxu0
      %v4533 = vadd.f32 %v4461, %v4532
      %v4534 = vpop.f32.mrf.mxu0
      %4535 = vdwg.mxu0
      %v4536 = vtanh.pop %v4533
      %4537 = vst.msk [vmem:[%s832] sm:$0xff] %vm850, %v4536
      %p4538 = scmp.lt.s32.totalorder %s36, 1
      %s4539 = scalar_select %p4538, %s36, 1
      %s4540 = smul.addr %s4539, 8
      %s4541 = scalar_lea.vmem %s25, %s4540
      // Predicated region
      $region121: #{my_entity_encoder.1} parent=119 // pred_check
        %p4542 = pneg %p604
      $region122: #{my_entity_encoder.1} parent=119 // pred_check_branch
        %4544 = sbr.rel (%p4542) target = $region124
      $region123: #{my_entity_encoder.1} parent=119 // pred_region
        _
      $region124: #{my_entity_encoder.1} parent=119 // pred_fallthru
        _
    $region120: #{my_entity_encoder.1} parent=5 // pred_fallthru
      _
    %p4545 = scmp.le.s32.totalorder 2, %s31
    // Predicated region
    $region125: #{my_entity_encoder.1} parent=5 // pred_check
      %p4546 = pneg %p4545
    $region126: #{my_entity_encoder.1} parent=5 // pred_check_branch
      %4548 = sbr.rel (%p4546) target = $region128
    $region127: #{my_entity_encoder.1} parent=5 // pred_region
      %s4549 = ssub.s32 %s31, 2
      // Predicated region
      $region129: #{my_entity_encoder.1} parent=127 // pred_check
        %p4550 = pneg %p610
      $region130: #{my_entity_encoder.1} parent=127 // pred_check_branch
        %4552 = sbr.rel (%p4550) target = $region132
      $region131: #{my_entity_encoder.1} parent=127 // pred_region
        %p4553 = scmp.lt.s32.totalorder %s37, 1
        %s4554 = scalar_select %p4553, %s37, 1
        %s4555 = smul.addr %s4554, 8
        %s4556 = scalar_lea.vmem %s25, %s4555
      $region132: #{my_entity_encoder.1} parent=127 // pred_fallthru
        _
    $region128: #{my_entity_encoder.1} parent=5 // pred_fallthru
      _
  $region6: #{my_entity_encoder.1} parent=0 // loop_footer
    %s35 = sadd.s32 1, %s31
  $region7: #{my_entity_encoder.1} parent=0 // loop_footer_branch
    %30 = sbr.rel target = $region3
  $region8: #{my_entity_encoder.1} parent=0 // loop_exit
    _

</llo_original>
